<compile_context>
chip_gen: v7x
topology: tpu7x:2x2x1
jax: 0.10.0
libtpu: 0.0.40
codegen_flags: <defaults>
</compile_context>

<pallas_src>
import functools

import jax
import jax.numpy as jnp
from jax.experimental import pallas as pl
from jax.experimental.pallas import tpu as pltpu

_EPS = 1e-5
_LANE = 128


def _round_up(x, m):
    return (x + m - 1) // m * m


# ----------------------------- Pallas kernel ------------------------------- #

def _fused_block_kernel(patches_ref, w1_ref, b1_ref, w2_ref, b2_ref, *refs,
                        h_out, w_out, cin, planes, cpad, has_projection):
    """Whole BasicBlock for one image.

    patches_ref : (1, M, 9*Cin)  bf16 conv1 im2col patches (center tap = shortcut in)
    w1_ref      : (9*Cin, Cpad)  bf16, bn1 scale folded into columns
    b1_ref      : (1, Cpad)      f32 folded bn1 bias (padded entries are zero)
    w2_ref      : (9, Cpad, Cpad) bf16, bn2 scale folded
    b2_ref      : (1, planes)    f32 folded bn2 bias
    [ws_ref     : (Cin, planes)  bf16 projection 1x1 weight, bn_s scale folded]
    [bs_ref     : (1, planes)    f32 folded bn_s bias]
    o_ref       : (1, h_out, w_out, planes)  output block (un-padded channels)
    out1_sc     : (h_out+2, Wpad, Cpad) bf16 scratch: relu(out1) with 1-px zero halo
    acc_ref     : (M, Cpad) f32 scratch: conv2 accumulator
    """
    if has_projection:
        ws_ref, bs_ref, o_ref, out1_sc, acc_ref = refs
    else:
        o_ref, out1_sc, acc_ref = refs

    m = h_out * w_out
    ws_cols = out1_sc.shape[1]

    # ---- conv1 (3x3, stride folded into patches) + bn1 + relu: ONE K=9*Cin dot ----
    pat = patches_ref[0]                                     # (m, 9*cin) bf16
    out1 = jnp.dot(pat, w1_ref[...], preferred_element_type=jnp.float32)
    out1 = jnp.maximum(out1 + b1_ref[...], 0.0)              # padded cols stay 0

    # ---- zero only the 1-pixel halo ring (interior is fully overwritten below) ----
    zrow = jnp.zeros((1, ws_cols, cpad), out1_sc.dtype)
    zcol = jnp.zeros((h_out, 1, cpad), out1_sc.dtype)
    out1_sc[pl.ds(0, 1), :, :] = zrow
    out1_sc[pl.ds(h_out + 1, 1), :, :] = zrow
    out1_sc[pl.ds(1, h_out), pl.ds(0, 1), :] = zcol
    out1_sc[pl.ds(1, h_out), pl.ds(w_out + 1, 1), :] = zcol

    out1_sc[pl.ds(1, h_out), pl.ds(1, w_out), :] = (
        out1.reshape(h_out, w_out, cpad).astype(out1_sc.dtype))

    # ---- conv2 (3x3, stride 1, pad 1) + bn2: 9 taps accumulated into a VMEM ref ----
    t = 0
    for dh in range(3):
        for dw in range(3):
            lhs = out1_sc[pl.ds(dh, h_out), pl.ds(dw, w_out), :].reshape(m, cpad)
            d = jnp.dot(lhs, w2_ref[t], preferred_element_type=jnp.float32)
            if t == 0:
                acc_ref[...] = d
            else:
                acc_ref[...] += d
            t += 1

    # ---- epilogue at the real channel width (no padded-channel writeback) ----
    main = acc_ref[...][:, :planes] + b2_ref[...]            # (m, planes) f32
    center = pat[:, 4 * cin:5 * cin]                         # x[s*i, s*j, :] (bf16)
    if has_projection:
        shortcut = jnp.dot(center, ws_ref[...],
                           preferred_element_type=jnp.float32) + bs_ref[...]
    else:
        # Identity shortcut: plain VPU add of the (bf16-quantized) input tile.
        shortcut = center.astype(jnp.float32)
    y = jnp.maximum(main + shortcut, 0.0)
    o_ref[...] = y.reshape(1, h_out, w_out, planes).astype(o_ref.dtype)


def _fused_block_call(patches, w1, b1, w2, b2, ws, bs, *, h_out, w_out,
                      cin, planes, cpad, out_dtype):
    n, m, k1 = patches.shape
    has_projection = ws is not None
    kernel = functools.partial(_fused_block_kernel, h_out=h_out, w_out=w_out,
                               cin=cin, planes=planes, cpad=cpad,
                               has_projection=has_projection)

    def _full(a):
        nd = a.ndim
        return pl.BlockSpec(a.shape, lambda i: (0,) * nd)

    in_arrays = [patches, w1, b1, w2, b2]
    in_specs = [pl.BlockSpec((1, m, k1), lambda i: (i, 0, 0)),
                _full(w1), _full(b1), _full(w2), _full(b2)]
    if has_projection:
        in_arrays += [ws, bs]
        in_specs += [_full(ws), _full(bs)]

    ws_cols = _round_up(w_out + 2, 8)   # 8-sublane-aligned second-minor scratch dim
    return pl.pallas_call(
        kernel,
        out_shape=jax.ShapeDtypeStruct((n, h_out, w_out, planes), out_dtype),
        grid=(n,),
        in_specs=in_specs,
        out_specs=pl.BlockSpec((1, h_out, w_out, planes), lambda i: (i, 0, 0, 0)),
        scratch_shapes=[pltpu.VMEM((h_out + 2, ws_cols, cpad), jnp.bfloat16),
                        pltpu.VMEM((m, cpad), jnp.float32)],
        compiler_params=pltpu.CompilerParams(
            dimension_semantics=("parallel",)),
    )(*in_arrays)


# ------------------------------ JAX-side glue ------------------------------ #

def _im2col_3x3(x_nhwc, stride, h_out, w_out):
    """(N,H,W,C) -> (N, h_out*w_out, 9*C): 3x3 pad-1 patches, stride folded in.
    Tap order is (dh, dw) row-major, so the center tap occupies cols [4C, 5C)."""
    n, _, _, c = x_nhwc.shape
    xp = jnp.pad(x_nhwc, ((0, 0), (1, 1), (1, 1), (0, 0)))
    taps = []
    for dh in range(3):
        for dw in range(3):
            taps.append(xp[:, dh:dh + stride * (h_out - 1) + 1:stride,
                            dw:dw + stride * (w_out - 1) + 1:stride, :])
    return jnp.concatenate(taps, axis=-1).reshape(n, h_out * w_out, 9 * c)


def _fold_bn(gamma, beta, mean, var, eps=_EPS):
    scale = gamma / jnp.sqrt(var + eps)
    bias = beta - mean * scale
    return scale, bias


def _conv1_mat(w_oihw, scale, cpad):
    """(Cout,Cin,3,3) -> (9*Cin, Cpad) with BN scale folded; padded cols are zero."""
    cout, cin, kh, kw = w_oihw.shape
    wm = jnp.transpose(w_oihw, (2, 3, 1, 0)).reshape(kh * kw * cin, cout)
    wm = wm * scale[None, :]
    wm = jnp.pad(wm, ((0, 0), (0, cpad - cout)))
    return wm.astype(jnp.bfloat16)


def _conv2_taps(w_oihw, scale, cpad):
    """(Cout,Cin,3,3) -> (9, Cpad, Cpad) with BN scale folded; padded rows/cols zero."""
    cout, cin, kh, kw = w_oihw.shape
    wm = jnp.transpose(w_oihw, (2, 3, 1, 0)).reshape(kh * kw, cin, cout)
    wm = wm * scale.reshape(1, 1, cout)
    wm = jnp.pad(wm, ((0, 0), (0, cpad - cin), (0, cpad - cout)))
    return wm.astype(jnp.bfloat16)


def init_basic_block(key, in_planes, planes, stride):
    k1, k2, k3 = jax.random.split(key, 3)
    ones = lambda: jnp.ones((planes,), jnp.float32)
    zeros = lambda: jnp.zeros((planes,), jnp.float32)
    p = {
        "conv1_w": 0.1 * jax.random.normal(k1, (planes, in_planes, 3, 3), jnp.float32),
        "bn1_g": ones(), "bn1_b": zeros(), "bn1_m": zeros(), "bn1_v": ones(),
        "conv2_w": 0.1 * jax.random.normal(k2, (planes, planes, 3, 3), jnp.float32),
        "bn2_g": ones(), "bn2_b": zeros(), "bn2_m": zeros(), "bn2_v": ones(),
    }
    if stride != 1 or in_planes != planes:  # expansion == 1
        p["convs_w"] = 0.1 * jax.random.normal(k3, (planes, in_planes, 1, 1), jnp.float32)
        p["bns_g"] = ones(); p["bns_b"] = zeros(); p["bns_m"] = zeros(); p["bns_v"] = ones()
    return p


def basic_block_forward(x_nchw, p, stride):
    # NCHW -> NHWC and cast to bf16 BEFORE any preprocessing pass (halves HBM traffic).
    x = jnp.transpose(x_nchw, (0, 2, 3, 1)).astype(jnp.bfloat16)
    n, h, w, cin = x.shape
    planes = p["conv1_w"].shape[0]
    cpad = _round_up(planes, _LANE)                 # lane-dense intermediate channels

    h_out = (h + 2 - 3) // stride + 1
    w_out = (w + 2 - 3) // stride + 1

    patches = _im2col_3x3(x, stride, h_out, w_out)  # (n, m, 9*cin) bf16

    s1, b1 = _fold_bn(p["bn1_g"], p["bn1_b"], p["bn1_m"], p["bn1_v"])
    s2, b2 = _fold_bn(p["bn2_g"], p["bn2_b"], p["bn2_m"], p["bn2_v"])
    w1 = _conv1_mat(p["conv1_w"], s1, cpad)                        # (9*cin, cpad)
    w2 = _conv2_taps(p["conv2_w"], s2, cpad)                       # (9, cpad, cpad)
    b1v = jnp.pad(b1, (0, cpad - planes)).reshape(1, cpad).astype(jnp.float32)
    b2v = b2.reshape(1, planes).astype(jnp.float32)

    if "convs_w" in p:   # projection shortcut (1x1 conv, stride) + bn_s
        ss, bs = _fold_bn(p["bns_g"], p["bns_b"], p["bns_m"], p["bns_v"])
        ws = (jnp.transpose(p["convs_w"][:, :, 0, 0], (1, 0)) * ss[None, :]
              ).astype(jnp.bfloat16)                               # (cin, planes)
        bsv = bs.reshape(1, planes).astype(jnp.float32)
    else:                # identity shortcut handled on the VPU inside the kernel
        ws, bsv = None, None

    out = _fused_block_call(patches, w1, b1v, w2, b2v, ws, bsv,
                            h_out=h_out, w_out=w_out, cin=cin, planes=planes,
                            cpad=cpad, out_dtype=x_nchw.dtype)
    return jnp.transpose(out, (0, 3, 1, 2))         # NHWC -> NCHW (un-padded channels)


# ---------------------------- pure-JAX reference ---------------------------- #

def _ref_forward(x, p, stride, eps=_EPS):
    def conv(x, w, s, pad):
        return jax.lax.conv_general_dilated(
            x, w, window_strides=(s, s), padding=[(pad, pad), (pad, pad)],
            dimension_numbers=("NCHW", "OIHW", "NCHW"))

    def bn(x, g, b, m, v):
        sc = g / jnp.sqrt(v + eps)
        return x * sc[None, :, None, None] + (b - m * sc)[None, :, None, None]

    out = jax.nn.relu(bn(conv(x, p["conv1_w"], stride, 1),
                         p["bn1_g"], p["bn1_b"], p["bn1_m"], p["bn1_v"]))
    out = bn(conv(out, p["conv2_w"], 1, 1),
             p["bn2_g"], p["bn2_b"], p["bn2_m"], p["bn2_v"])
    if "convs_w" in p:
        sc = bn(conv(x, p["convs_w"], stride, 0),
                p["bns_g"], p["bns_b"], p["bns_m"], p["bns_v"])
    else:
        sc = x
    return jax.nn.relu(out + sc)


# --------------------------------- main ------------------------------------ #

if __name__ == "__main__":
    key = jax.random.PRNGKey(0)
    k_p1, k_p2, k_x1, k_x2 = jax.random.split(key, 4)

    # bf16 MXU operands (f32 accumulate) vs. a pure-f32 reference -> ~1e-3 noise.
    TOL = dict(atol=3e-2, rtol=3e-2)

    # Case 1: projection shortcut (stride=2, 4 -> 8 channels).
    in_planes, planes, stride = 4, 8, 2
    params = init_basic_block(k_p1, in_planes, planes, stride)
    x = jax.random.normal(k_x1, (2, in_planes, 16, 16), jnp.float32)   # NCHW
    out = jax.block_until_ready(basic_block_forward(x, params, stride))
    ref = jax.block_until_ready(_ref_forward(x, params, stride))
    assert out.shape == ref.shape == (2, planes, 8, 8), out.shape
    assert jnp.allclose(out, ref, **TOL), float(jnp.abs(out - ref).max())

    # Case 2: identity shortcut (stride=1, 8 -> 8 channels).
    in_planes2, planes2, stride2 = 8, 8, 1
    params2 = init_basic_block(k_p2, in_planes2, planes2, stride2)
    x2 = jax.random.normal(k_x2, (2, in_planes2, 16, 16), jnp.float32)
    out2 = jax.block_until_ready(basic_block_forward(x2, params2, stride2))
    ref2 = jax.block_until_ready(_ref_forward(x2, params2, stride2))
    assert out2.shape == ref2.shape == (2, planes2, 16, 16), out2.shape
    assert jnp.allclose(out2, ref2, **TOL), float(jnp.abs(out2 - ref2).max())

    print("KERNEL_OK")
</pallas_src>

<mosaic_0001>
module attributes {stable_mosaic.version = 11 : i64} {
  func.func @_fused_block_kernel(%arg0: i32, %arg1: memref<1x64x36xbf16, #tpu.memory_space<vmem>>, %arg2: memref<36x128xbf16, #tpu.memory_space<vmem>>, %arg3: memref<1x128xf32, #tpu.memory_space<vmem>>, %arg4: memref<9x128x128xbf16, #tpu.memory_space<vmem>>, %arg5: memref<1x8xf32, #tpu.memory_space<vmem>>, %arg6: memref<4x8xbf16, #tpu.memory_space<vmem>>, %arg7: memref<1x8xf32, #tpu.memory_space<vmem>>, %arg8: memref<1x8x8x8xf32, #tpu.memory_space<vmem>>, %arg9: memref<10x16x128xbf16, #tpu.memory_space<vmem>>, %arg10: memref<64x128xf32, #tpu.memory_space<vmem>>) attributes {dimension_semantics = [#tpu.dimension_semantics<parallel>], iteration_bounds = array<i64: 2>, scalar_prefetch = 0 : i64, scratch_operands = 2 : i64, tpu.core_type = #tpu.core_type<tc>, window_params = [{transform_indices = @transform_0, window_bounds = array<i64: 1, 64, 36>}, {pipeline_mode = #tpu.pipeline_mode<synchronous>, transform_indices = @transform_1, window_bounds = array<i64: 36, 128>}, {pipeline_mode = #tpu.pipeline_mode<synchronous>, transform_indices = @transform_2, window_bounds = array<i64: 1, 128>}, {pipeline_mode = #tpu.pipeline_mode<synchronous>, transform_indices = @transform_3, window_bounds = array<i64: 9, 128, 128>}, {pipeline_mode = #tpu.pipeline_mode<synchronous>, transform_indices = @transform_4, window_bounds = array<i64: 1, 8>}, {pipeline_mode = #tpu.pipeline_mode<synchronous>, transform_indices = @transform_5, window_bounds = array<i64: 4, 8>}, {pipeline_mode = #tpu.pipeline_mode<synchronous>, transform_indices = @transform_6, window_bounds = array<i64: 1, 8>}, {transform_indices = @transform_7, window_bounds = array<i64: 1, 8, 8, 8>}]} {
    %c0 = arith.constant 0 : index
    %c0_0 = arith.constant 0 : index
    %c0_1 = arith.constant 0 : index
    %0 = vector.load %arg1[%c0, %c0_0, %c0_1] : memref<1x64x36xbf16, #tpu.memory_space<vmem>>, vector<1x64x36xbf16>
    %1 = vector.shape_cast %0 : vector<1x64x36xbf16> to vector<64x36xbf16>
    %c0_2 = arith.constant 0 : index
    %c0_3 = arith.constant 0 : index
    %2 = vector.load %arg2[%c0_2, %c0_3] : memref<36x128xbf16, #tpu.memory_space<vmem>>, vector<36x128xbf16>
    %cst = arith.constant dense<0.000000e+00> : vector<64x128xf32>
    %3 = tpu.matmul %1, %2, %cst {dimension_numbers = #tpu.dot_dimension_numbers<[1], [0], [0], [1], [0, 0, 1, 1], [], []>} : vector<64x36xbf16>, vector<36x128xbf16>, vector<64x128xf32> -> vector<64x128xf32>
    %c0_4 = arith.constant 0 : index
    %c0_5 = arith.constant 0 : index
    %4 = vector.load %arg3[%c0_4, %c0_5] : memref<1x128xf32, #tpu.memory_space<vmem>>, vector<1x128xf32>
    %5 = vector.broadcast %4 : vector<1x128xf32> to vector<64x128xf32>
    %6 = arith.addf %3, %5 : vector<64x128xf32>
    %cst_6 = arith.constant 0.000000e+00 : f32
    %7 = vector.broadcast %cst_6 : f32 to vector<64x128xf32>
    %8 = arith.maximumf %6, %7 : vector<64x128xf32>
    %cst_7 = arith.constant 0.000000e+00 : bf16
    %9 = vector.broadcast %cst_7 : bf16 to vector<1x16x128xbf16>
    %cst_8 = arith.constant 0.000000e+00 : bf16
    %10 = vector.broadcast %cst_8 : bf16 to vector<8x1x128xbf16>
    %c0_9 = arith.constant 0 : index
    %c0_10 = arith.constant 0 : index
    %c0_11 = arith.constant 0 : index
    %11 = vector.load %arg9[%c0_9, %c0_10, %c0_11] : memref<10x16x128xbf16, #tpu.memory_space<vmem>>, vector<1x16x128xbf16>
    tpu.vector_store %arg9[%c0_9, %c0_10, %c0_11], %9 {strides = array<i32>} : memref<10x16x128xbf16, #tpu.memory_space<vmem>>, vector<1x16x128xbf16>,
    %c9 = arith.constant 9 : index
    %c0_12 = arith.constant 0 : index
    %c0_13 = arith.constant 0 : index
    %12 = vector.load %arg9[%c9, %c0_12, %c0_13] : memref<10x16x128xbf16, #tpu.memory_space<vmem>>, vector<1x16x128xbf16>
    tpu.vector_store %arg9[%c9, %c0_12, %c0_13], %9 {strides = array<i32>} : memref<10x16x128xbf16, #tpu.memory_space<vmem>>, vector<1x16x128xbf16>,
    %c1 = arith.constant 1 : index
    %c0_14 = arith.constant 0 : index
    %c0_15 = arith.constant 0 : index
    %13 = vector.load %arg9[%c1, %c0_14, %c0_15] : memref<10x16x128xbf16, #tpu.memory_space<vmem>>, vector<8x1x128xbf16>
    tpu.vector_store %arg9[%c1, %c0_14, %c0_15], %10 {strides = array<i32>} : memref<10x16x128xbf16, #tpu.memory_space<vmem>>, vector<8x1x128xbf16>,
    %c1_16 = arith.constant 1 : index
    %c9_17 = arith.constant 9 : index
    %c0_18 = arith.constant 0 : index
    %14 = vector.load %arg9[%c1_16, %c9_17, %c0_18] : memref<10x16x128xbf16, #tpu.memory_space<vmem>>, vector<8x1x128xbf16>
    tpu.vector_store %arg9[%c1_16, %c9_17, %c0_18], %10 {strides = array<i32>} : memref<10x16x128xbf16, #tpu.memory_space<vmem>>, vector<8x1x128xbf16>,
    %15 = vector.shape_cast %8 : vector<64x128xf32> to vector<8x8x128xf32>
    %16 = arith.truncf %15 : vector<8x8x128xf32> to vector<8x8x128xbf16>
    %c1_19 = arith.constant 1 : index
    %c1_20 = arith.constant 1 : index
    %c0_21 = arith.constant 0 : index
    %17 = vector.load %arg9[%c1_19, %c1_20, %c0_21] : memref<10x16x128xbf16, #tpu.memory_space<vmem>>, vector<8x8x128xbf16>
    tpu.vector_store %arg9[%c1_19, %c1_20, %c0_21], %16 {strides = array<i32>} : memref<10x16x128xbf16, #tpu.memory_space<vmem>>, vector<8x8x128xbf16>,
    %c0_22 = arith.constant 0 : index
    %c0_23 = arith.constant 0 : index
    %c0_24 = arith.constant 0 : index
    %18 = vector.load %arg9[%c0_22, %c0_23, %c0_24] : memref<10x16x128xbf16, #tpu.memory_space<vmem>>, vector<8x8x128xbf16>
    %19 = vector.shape_cast %18 : vector<8x8x128xbf16> to vector<64x128xbf16>
    %c0_25 = arith.constant 0 : index
    %c0_26 = arith.constant 0 : index
    %c0_27 = arith.constant 0 : index
    %20 = vector.load %arg4[%c0_25, %c0_26, %c0_27] : memref<9x128x128xbf16, #tpu.memory_space<vmem>>, vector<1x128x128xbf16>
    %21 = vector.shape_cast %20 : vector<1x128x128xbf16> to vector<128x128xbf16>
    %cst_28 = arith.constant dense<0.000000e+00> : vector<64x128xf32>
    %22 = tpu.matmul %19, %21, %cst_28 {dimension_numbers = #tpu.dot_dimension_numbers<[1], [0], [0], [1], [0, 0, 1, 1], [], []>} : vector<64x128xbf16>, vector<128x128xbf16>, vector<64x128xf32> -> vector<64x128xf32>
    %c0_29 = arith.constant 0 : index
    %c0_30 = arith.constant 0 : index
    %23 = vector.load %arg10[%c0_29, %c0_30] : memref<64x128xf32, #tpu.memory_space<vmem>>, vector<64x128xf32>
    tpu.vector_store %arg10[%c0_29, %c0_30], %22 {strides = array<i32>} : memref<64x128xf32, #tpu.memory_space<vmem>>, vector<64x128xf32>,
    %c0_31 = arith.constant 0 : index
    %c1_32 = arith.constant 1 : index
    %c0_33 = arith.constant 0 : index
    %24 = vector.load %arg9[%c0_31, %c1_32, %c0_33] : memref<10x16x128xbf16, #tpu.memory_space<vmem>>, vector<8x8x128xbf16>
    %25 = vector.shape_cast %24 : vector<8x8x128xbf16> to vector<64x128xbf16>
    %c1_34 = arith.constant 1 : index
    %c0_35 = arith.constant 0 : index
    %c0_36 = arith.constant 0 : index
    %26 = vector.load %arg4[%c1_34, %c0_35, %c0_36] : memref<9x128x128xbf16, #tpu.memory_space<vmem>>, vector<1x128x128xbf16>
    %27 = vector.shape_cast %26 : vector<1x128x128xbf16> to vector<128x128xbf16>
    %cst_37 = arith.constant dense<0.000000e+00> : vector<64x128xf32>
    %28 = tpu.matmul %25, %27, %cst_37 {dimension_numbers = #tpu.dot_dimension_numbers<[1], [0], [0], [1], [0, 0, 1, 1], [], []>} : vector<64x128xbf16>, vector<128x128xbf16>, vector<64x128xf32> -> vector<64x128xf32>
    %c0_38 = arith.constant 0 : index
    %c0_39 = arith.constant 0 : index
    %29 = vector.load %arg10[%c0_38, %c0_39] : memref<64x128xf32, #tpu.memory_space<vmem>>, vector<64x128xf32>
    %30 = arith.addf %29, %28 : vector<64x128xf32>
    %c0_40 = arith.constant 0 : index
    %c0_41 = arith.constant 0 : index
    %31 = vector.load %arg10[%c0_40, %c0_41] : memref<64x128xf32, #tpu.memory_space<vmem>>, vector<64x128xf32>
    tpu.vector_store %arg10[%c0_40, %c0_41], %30 {strides = array<i32>} : memref<64x128xf32, #tpu.memory_space<vmem>>, vector<64x128xf32>,
    %c0_42 = arith.constant 0 : index
    %c2 = arith.constant 2 : index
    %c0_43 = arith.constant 0 : index
    %32 = vector.load %arg9[%c0_42, %c2, %c0_43] : memref<10x16x128xbf16, #tpu.memory_space<vmem>>, vector<8x8x128xbf16>
    %33 = vector.shape_cast %32 : vector<8x8x128xbf16> to vector<64x128xbf16>
    %c2_44 = arith.constant 2 : index
    %c0_45 = arith.constant 0 : index
    %c0_46 = arith.constant 0 : index
    %34 = vector.load %arg4[%c2_44, %c0_45, %c0_46] : memref<9x128x128xbf16, #tpu.memory_space<vmem>>, vector<1x128x128xbf16>
    %35 = vector.shape_cast %34 : vector<1x128x128xbf16> to vector<128x128xbf16>
    %cst_47 = arith.constant dense<0.000000e+00> : vector<64x128xf32>
    %36 = tpu.matmul %33, %35, %cst_47 {dimension_numbers = #tpu.dot_dimension_numbers<[1], [0], [0], [1], [0, 0, 1, 1], [], []>} : vector<64x128xbf16>, vector<128x128xbf16>, vector<64x128xf32> -> vector<64x128xf32>
    %c0_48 = arith.constant 0 : index
    %c0_49 = arith.constant 0 : index
    %37 = vector.load %arg10[%c0_48, %c0_49] : memref<64x128xf32, #tpu.memory_space<vmem>>, vector<64x128xf32>
    %38 = arith.addf %37, %36 : vector<64x128xf32>
    %c0_50 = arith.constant 0 : index
    %c0_51 = arith.constant 0 : index
    %39 = vector.load %arg10[%c0_50, %c0_51] : memref<64x128xf32, #tpu.memory_space<vmem>>, vector<64x128xf32>
    tpu.vector_store %arg10[%c0_50, %c0_51], %38 {strides = array<i32>} : memref<64x128xf32, #tpu.memory_space<vmem>>, vector<64x128xf32>,
    %c1_52 = arith.constant 1 : index
    %c0_53 = arith.constant 0 : index
    %c0_54 = arith.constant 0 : index
    %40 = vector.load %arg9[%c1_52, %c0_53, %c0_54] : memref<10x16x128xbf16, #tpu.memory_space<vmem>>, vector<8x8x128xbf16>
    %41 = vector.shape_cast %40 : vector<8x8x128xbf16> to vector<64x128xbf16>
    %c3 = arith.constant 3 : index
    %c0_55 = arith.constant 0 : index
    %c0_56 = arith.constant 0 : index
    %42 = vector.load %arg4[%c3, %c0_55, %c0_56] : memref<9x128x128xbf16, #tpu.memory_space<vmem>>, vector<1x128x128xbf16>
    %43 = vector.shape_cast %42 : vector<1x128x128xbf16> to vector<128x128xbf16>
    %cst_57 = arith.constant dense<0.000000e+00> : vector<64x128xf32>
    %44 = tpu.matmul %41, %43, %cst_57 {dimension_numbers = #tpu.dot_dimension_numbers<[1], [0], [0], [1], [0, 0, 1, 1], [], []>} : vector<64x128xbf16>, vector<128x128xbf16>, vector<64x128xf32> -> vector<64x128xf32>
    %c0_58 = arith.constant 0 : index
    %c0_59 = arith.constant 0 : index
    %45 = vector.load %arg10[%c0_58, %c0_59] : memref<64x128xf32, #tpu.memory_space<vmem>>, vector<64x128xf32>
    %46 = arith.addf %45, %44 : vector<64x128xf32>
    %c0_60 = arith.constant 0 : index
    %c0_61 = arith.constant 0 : index
    %47 = vector.load %arg10[%c0_60, %c0_61] : memref<64x128xf32, #tpu.memory_space<vmem>>, vector<64x128xf32>
    tpu.vector_store %arg10[%c0_60, %c0_61], %46 {strides = array<i32>} : memref<64x128xf32, #tpu.memory_space<vmem>>, vector<64x128xf32>,
    %c1_62 = arith.constant 1 : index
    %c1_63 = arith.constant 1 : index
    %c0_64 = arith.constant 0 : index
    %48 = vector.load %arg9[%c1_62, %c1_63, %c0_64] : memref<10x16x128xbf16, #tpu.memory_space<vmem>>, vector<8x8x128xbf16>
    %49 = vector.shape_cast %48 : vector<8x8x128xbf16> to vector<64x128xbf16>
    %c4 = arith.constant 4 : index
    %c0_65 = arith.constant 0 : index
    %c0_66 = arith.constant 0 : index
    %50 = vector.load %arg4[%c4, %c0_65, %c0_66] : memref<9x128x128xbf16, #tpu.memory_space<vmem>>, vector<1x128x128xbf16>
    %51 = vector.shape_cast %50 : vector<1x128x128xbf16> to vector<128x128xbf16>
    %cst_67 = arith.constant dense<0.000000e+00> : vector<64x128xf32>
    %52 = tpu.matmul %49, %51, %cst_67 {dimension_numbers = #tpu.dot_dimension_numbers<[1], [0], [0], [1], [0, 0, 1, 1], [], []>} : vector<64x128xbf16>, vector<128x128xbf16>, vector<64x128xf32> -> vector<64x128xf32>
    %c0_68 = arith.constant 0 : index
    %c0_69 = arith.constant 0 : index
    %53 = vector.load %arg10[%c0_68, %c0_69] : memref<64x128xf32, #tpu.memory_space<vmem>>, vector<64x128xf32>
    %54 = arith.addf %53, %52 : vector<64x128xf32>
    %c0_70 = arith.constant 0 : index
    %c0_71 = arith.constant 0 : index
    %55 = vector.load %arg10[%c0_70, %c0_71] : memref<64x128xf32, #tpu.memory_space<vmem>>, vector<64x128xf32>
    tpu.vector_store %arg10[%c0_70, %c0_71], %54 {strides = array<i32>} : memref<64x128xf32, #tpu.memory_space<vmem>>, vector<64x128xf32>,
    %c1_72 = arith.constant 1 : index
    %c2_73 = arith.constant 2 : index
    %c0_74 = arith.constant 0 : index
    %56 = vector.load %arg9[%c1_72, %c2_73, %c0_74] : memref<10x16x128xbf16, #tpu.memory_space<vmem>>, vector<8x8x128xbf16>
    %57 = vector.shape_cast %56 : vector<8x8x128xbf16> to vector<64x128xbf16>
    %c5 = arith.constant 5 : index
    %c0_75 = arith.constant 0 : index
    %c0_76 = arith.constant 0 : index
    %58 = vector.load %arg4[%c5, %c0_75, %c0_76] : memref<9x128x128xbf16, #tpu.memory_space<vmem>>, vector<1x128x128xbf16>
    %59 = vector.shape_cast %58 : vector<1x128x128xbf16> to vector<128x128xbf16>
    %cst_77 = arith.constant dense<0.000000e+00> : vector<64x128xf32>
    %60 = tpu.matmul %57, %59, %cst_77 {dimension_numbers = #tpu.dot_dimension_numbers<[1], [0], [0], [1], [0, 0, 1, 1], [], []>} : vector<64x128xbf16>, vector<128x128xbf16>, vector<64x128xf32> -> vector<64x128xf32>
    %c0_78 = arith.constant 0 : index
    %c0_79 = arith.constant 0 : index
    %61 = vector.load %arg10[%c0_78, %c0_79] : memref<64x128xf32, #tpu.memory_space<vmem>>, vector<64x128xf32>
    %62 = arith.addf %61, %60 : vector<64x128xf32>
    %c0_80 = arith.constant 0 : index
    %c0_81 = arith.constant 0 : index
    %63 = vector.load %arg10[%c0_80, %c0_81] : memref<64x128xf32, #tpu.memory_space<vmem>>, vector<64x128xf32>
    tpu.vector_store %arg10[%c0_80, %c0_81], %62 {strides = array<i32>} : memref<64x128xf32, #tpu.memory_space<vmem>>, vector<64x128xf32>,
    %c2_82 = arith.constant 2 : index
    %c0_83 = arith.constant 0 : index
    %c0_84 = arith.constant 0 : index
    %64 = vector.load %arg9[%c2_82, %c0_83, %c0_84] : memref<10x16x128xbf16, #tpu.memory_space<vmem>>, vector<8x8x128xbf16>
    %65 = vector.shape_cast %64 : vector<8x8x128xbf16> to vector<64x128xbf16>
    %c6 = arith.constant 6 : index
    %c0_85 = arith.constant 0 : index
    %c0_86 = arith.constant 0 : index
    %66 = vector.load %arg4[%c6, %c0_85, %c0_86] : memref<9x128x128xbf16, #tpu.memory_space<vmem>>, vector<1x128x128xbf16>
    %67 = vector.shape_cast %66 : vector<1x128x128xbf16> to vector<128x128xbf16>
    %cst_87 = arith.constant dense<0.000000e+00> : vector<64x128xf32>
    %68 = tpu.matmul %65, %67, %cst_87 {dimension_numbers = #tpu.dot_dimension_numbers<[1], [0], [0], [1], [0, 0, 1, 1], [], []>} : vector<64x128xbf16>, vector<128x128xbf16>, vector<64x128xf32> -> vector<64x128xf32>
    %c0_88 = arith.constant 0 : index
    %c0_89 = arith.constant 0 : index
    %69 = vector.load %arg10[%c0_88, %c0_89] : memref<64x128xf32, #tpu.memory_space<vmem>>, vector<64x128xf32>
    %70 = arith.addf %69, %68 : vector<64x128xf32>
    %c0_90 = arith.constant 0 : index
    %c0_91 = arith.constant 0 : index
    %71 = vector.load %arg10[%c0_90, %c0_91] : memref<64x128xf32, #tpu.memory_space<vmem>>, vector<64x128xf32>
    tpu.vector_store %arg10[%c0_90, %c0_91], %70 {strides = array<i32>} : memref<64x128xf32, #tpu.memory_space<vmem>>, vector<64x128xf32>,
    %c2_92 = arith.constant 2 : index
    %c1_93 = arith.constant 1 : index
    %c0_94 = arith.constant 0 : index
    %72 = vector.load %arg9[%c2_92, %c1_93, %c0_94] : memref<10x16x128xbf16, #tpu.memory_space<vmem>>, vector<8x8x128xbf16>
    %73 = vector.shape_cast %72 : vector<8x8x128xbf16> to vector<64x128xbf16>
    %c7 = arith.constant 7 : index
    %c0_95 = arith.constant 0 : index
    %c0_96 = arith.constant 0 : index
    %74 = vector.load %arg4[%c7, %c0_95, %c0_96] : memref<9x128x128xbf16, #tpu.memory_space<vmem>>, vector<1x128x128xbf16>
    %75 = vector.shape_cast %74 : vector<1x128x128xbf16> to vector<128x128xbf16>
    %cst_97 = arith.constant dense<0.000000e+00> : vector<64x128xf32>
    %76 = tpu.matmul %73, %75, %cst_97 {dimension_numbers = #tpu.dot_dimension_numbers<[1], [0], [0], [1], [0, 0, 1, 1], [], []>} : vector<64x128xbf16>, vector<128x128xbf16>, vector<64x128xf32> -> vector<64x128xf32>
    %c0_98 = arith.constant 0 : index
    %c0_99 = arith.constant 0 : index
    %77 = vector.load %arg10[%c0_98, %c0_99] : memref<64x128xf32, #tpu.memory_space<vmem>>, vector<64x128xf32>
    %78 = arith.addf %77, %76 : vector<64x128xf32>
    %c0_100 = arith.constant 0 : index
    %c0_101 = arith.constant 0 : index
    %79 = vector.load %arg10[%c0_100, %c0_101] : memref<64x128xf32, #tpu.memory_space<vmem>>, vector<64x128xf32>
    tpu.vector_store %arg10[%c0_100, %c0_101], %78 {strides = array<i32>} : memref<64x128xf32, #tpu.memory_space<vmem>>, vector<64x128xf32>,
    %c2_102 = arith.constant 2 : index
    %c2_103 = arith.constant 2 : index
    %c0_104 = arith.constant 0 : index
    %80 = vector.load %arg9[%c2_102, %c2_103, %c0_104] : memref<10x16x128xbf16, #tpu.memory_space<vmem>>, vector<8x8x128xbf16>
    %81 = vector.shape_cast %80 : vector<8x8x128xbf16> to vector<64x128xbf16>
    %c8 = arith.constant 8 : index
    %c0_105 = arith.constant 0 : index
    %c0_106 = arith.constant 0 : index
    %82 = vector.load %arg4[%c8, %c0_105, %c0_106] : memref<9x128x128xbf16, #tpu.memory_space<vmem>>, vector<1x128x128xbf16>
    %83 = vector.shape_cast %82 : vector<1x128x128xbf16> to vector<128x128xbf16>
    %cst_107 = arith.constant dense<0.000000e+00> : vector<64x128xf32>
    %84 = tpu.matmul %81, %83, %cst_107 {dimension_numbers = #tpu.dot_dimension_numbers<[1], [0], [0], [1], [0, 0, 1, 1], [], []>} : vector<64x128xbf16>, vector<128x128xbf16>, vector<64x128xf32> -> vector<64x128xf32>
    %c0_108 = arith.constant 0 : index
    %c0_109 = arith.constant 0 : index
    %85 = vector.load %arg10[%c0_108, %c0_109] : memref<64x128xf32, #tpu.memory_space<vmem>>, vector<64x128xf32>
    %86 = arith.addf %85, %84 : vector<64x128xf32>
    %c0_110 = arith.constant 0 : index
    %c0_111 = arith.constant 0 : index
    %87 = vector.load %arg10[%c0_110, %c0_111] : memref<64x128xf32, #tpu.memory_space<vmem>>, vector<64x128xf32>
    tpu.vector_store %arg10[%c0_110, %c0_111], %86 {strides = array<i32>} : memref<64x128xf32, #tpu.memory_space<vmem>>, vector<64x128xf32>,
    %c0_112 = arith.constant 0 : index
    %c0_113 = arith.constant 0 : index
    %88 = vector.load %arg10[%c0_112, %c0_113] : memref<64x128xf32, #tpu.memory_space<vmem>>, vector<64x128xf32>
    %89 = vector.extract_strided_slice %88 {offsets = [0, 0], sizes = [64, 8], strides = [1, 1]} : vector<64x128xf32> to vector<64x8xf32>
    %c0_114 = arith.constant 0 : index
    %c0_115 = arith.constant 0 : index
    %90 = vector.load %arg5[%c0_114, %c0_115] : memref<1x8xf32, #tpu.memory_space<vmem>>, vector<1x8xf32>
    %91 = vector.broadcast %90 : vector<1x8xf32> to vector<64x8xf32>
    %92 = arith.addf %89, %91 : vector<64x8xf32>
    %93 = vector.extract_strided_slice %1 {offsets = [0, 16], sizes = [64, 4], strides = [1, 1]} : vector<64x36xbf16> to vector<64x4xbf16>
    %c0_116 = arith.constant 0 : index
    %c0_117 = arith.constant 0 : index
    %94 = vector.load %arg6[%c0_116, %c0_117] : memref<4x8xbf16, #tpu.memory_space<vmem>>, vector<4x8xbf16>
    %cst_118 = arith.constant dense<0.000000e+00> : vector<64x8xf32>
    %95 = tpu.matmul %93, %94, %cst_118 {dimension_numbers = #tpu.dot_dimension_numbers<[1], [0], [0], [1], [0, 0, 1, 1], [], []>} : vector<64x4xbf16>, vector<4x8xbf16>, vector<64x8xf32> -> vector<64x8xf32>
    %c0_119 = arith.constant 0 : index
    %c0_120 = arith.constant 0 : index
    %96 = vector.load %arg7[%c0_119, %c0_120] : memref<1x8xf32, #tpu.memory_space<vmem>>, vector<1x8xf32>
    %97 = vector.broadcast %96 : vector<1x8xf32> to vector<64x8xf32>
    %98 = arith.addf %95, %97 : vector<64x8xf32>
    %99 = arith.addf %92, %98 : vector<64x8xf32>
    %cst_121 = arith.constant 0.000000e+00 : f32
    %100 = vector.broadcast %cst_121 : f32 to vector<64x8xf32>
    %101 = arith.maximumf %99, %100 : vector<64x8xf32>
    %102 = vector.shape_cast %101 : vector<64x8xf32> to vector<1x8x8x8xf32>
    %c0_122 = arith.constant 0 : index
    %c0_123 = arith.constant 0 : index
    %c0_124 = arith.constant 0 : index
    %c0_125 = arith.constant 0 : index
    %103 = vector.load %arg8[%c0_122, %c0_123, %c0_124, %c0_125] : memref<1x8x8x8xf32, #tpu.memory_space<vmem>>, vector<1x8x8x8xf32>
    tpu.vector_store %arg8[%c0_122, %c0_123, %c0_124, %c0_125], %102 {strides = array<i32>} : memref<1x8x8x8xf32, #tpu.memory_space<vmem>>, vector<1x8x8x8xf32>,
    return
  }
  func.func @transform_0(%arg0: i32) -> (i32, i32, i32) {
    %c0_i32 = arith.constant 0 : i32
    %c0_i32_0 = arith.constant 0 : i32
    %c0_i32_1 = arith.constant 0 : i32
    return %arg0, %c0_i32, %c0_i32_0 : i32, i32, i32
  }
  func.func @transform_1(%arg0: i32) -> (i32, i32) {
    %c0_i32 = arith.constant 0 : i32
    %c0_i32_0 = arith.constant 0 : i32
    %c0_i32_1 = arith.constant 0 : i32
    return %c0_i32, %c0_i32_0 : i32, i32
  }
  func.func @transform_2(%arg0: i32) -> (i32, i32) {
    %c0_i32 = arith.constant 0 : i32
    %c0_i32_0 = arith.constant 0 : i32
    %c0_i32_1 = arith.constant 0 : i32
    return %c0_i32, %c0_i32_0 : i32, i32
  }
  func.func @transform_3(%arg0: i32) -> (i32, i32, i32) {
    %c0_i32 = arith.constant 0 : i32
    %c0_i32_0 = arith.constant 0 : i32
    %c0_i32_1 = arith.constant 0 : i32
    %c0_i32_2 = arith.constant 0 : i32
    return %c0_i32, %c0_i32_0, %c0_i32_1 : i32, i32, i32
  }
  func.func @transform_4(%arg0: i32) -> (i32, i32) {
    %c0_i32 = arith.constant 0 : i32
    %c0_i32_0 = arith.constant 0 : i32
    %c0_i32_1 = arith.constant 0 : i32
    return %c0_i32, %c0_i32_0 : i32, i32
  }
  func.func @transform_5(%arg0: i32) -> (i32, i32) {
    %c0_i32 = arith.constant 0 : i32
    %c0_i32_0 = arith.constant 0 : i32
    %c0_i32_1 = arith.constant 0 : i32
    return %c0_i32, %c0_i32_0 : i32, i32
  }
  func.func @transform_6(%arg0: i32) -> (i32, i32) {
    %c0_i32 = arith.constant 0 : i32
    %c0_i32_0 = arith.constant 0 : i32
    %c0_i32_1 = arith.constant 0 : i32
    return %c0_i32, %c0_i32_0 : i32, i32
  }
  func.func @transform_7(%arg0: i32) -> (i32, i32, i32, i32) {
    %c0_i32 = arith.constant 0 : i32
    %c0_i32_0 = arith.constant 0 : i32
    %c0_i32_1 = arith.constant 0 : i32
    %c0_i32_2 = arith.constant 0 : i32
    return %arg0, %c0_i32, %c0_i32_0, %c0_i32_1 : i32, i32, i32, i32
  }
}

</mosaic_0001>

<llo_original>
// kernel: tpu_custom_call.1
$region0: #{tpu_custom_call.1}
  #allocation0 [shape = 'u32[]', space=smem, size = 0x4, offset = 0x4, fixed_abs, tag = 'smem constant byte address 0x4 - core index']
  #allocation1 [shape = 'u32[144,128]{1,0:T(1,128)}', space=vmem, size = 0x12000, scoped, tag = 'internal scratch']
  #allocation2 [shape = 'bf16[10,16,128]{2,1,0:T(16,128)(2,1)}', space=vmem, size = 0xa000, scoped, tag = 'scratch operand']
  #allocation3 [shape = 'f32[64,128]{1,0:T(8,128)}', space=vmem, size = 0x8000, scoped, tag = 'scratch operand']
  %s0 = inlined_call_operand.vmem [shape: bf16[2,64,36], index: 0, kind: input, shape index: {}]
  %s1 = inlined_call_operand.vmem [shape: bf16[36,128], index: 1, kind: input, shape index: {}]
  %s2 = inlined_call_operand.vmem [shape: f32[1,128], index: 2, kind: input, shape index: {}]
  %s3 = inlined_call_operand.hbm [shape: bf16[9,128,128], index: 3, kind: input, shape index: {}]
  %s4 = inlined_call_operand.vmem [shape: f32[1,8], index: 4, kind: input, shape index: {}]
  %s5 = inlined_call_operand.vmem [shape: bf16[4,8], index: 5, kind: input, shape index: {}]
  %s6 = inlined_call_operand.vmem [shape: f32[1,8], index: 6, kind: input, shape index: {}]
  %s7 = inlined_call_operand.hbm [shape: f32[2,8,8,8], index: 7, kind: output, shape index: {}]
  %s8 = sld [smem:[#allocation0]]
  $region65: #{tpu_custom_call.1} parent=0
    _
  %s10 = ssub.s32 1, %s8
  %s11 = scalar_select 0, %s10, %s8
  $region1: #{tpu_custom_call.1} parent=0
    #allocation4 [shape = 'u8[294912]{0}', space=vmem, size = 0x48000, scoped, tag = 'input window, operand 3, single buffered']
    #allocation5 [shape = 's32[2]{0}', space=sflag, size = 0x8, scoped, tag = 'scoped memory for tpu_custom_call.1']
    #allocation6 [shape = 's32[2]{0}', space=sflag, size = 0x8, scoped, tag = 'scoped memory for tpu_custom_call.1']
    #allocation7 [shape = 'u8[65536]{0}', space=vmem, size = 0x10000, scoped, tag = 'output window, operand 0']
    %12 = vsyncpa [#allocation5], 0
    %13 = vsyncpa [#allocation6], 0
    %s14 = scalar_lea.sflag [#allocation6], 1
    %15 = vsyncpa %s14, 0
    loop: start=0, step=1, limit=4
    $region2: #{tpu_custom_call.1} parent=1 // loop_pre_header
      _
    $region3: #{tpu_custom_call.1} parent=1 // loop_header
      %s17 = sphi 0, %s21
      %p18 = scmp.ge.s32.totalorder %s17, 4
      %s27 = sphi 0, %s29
      %s30 = sphi 0, %s27
      %s31 = sphi 0, %s30
      %s47 = sphi 0, %s31
      %s51 = sphi 0, %s51
      %s53 = sphi 0, %s51
      %s54 = sphi 0, %s53
      %s68 = sphi 0, %s54
      %s72 = sphi 0, %s72
      %s74 = sphi 0, %s72
      %s75 = sphi 0, %s74
      %s89 = sphi 0, %s75
      %s93 = sphi 0, %s93
      %s95 = sphi 0, %s93
      %s96 = sphi 0, %s95
      %s110 = sphi 0, %s96
      %s114 = sphi 0, %s114
      %s116 = sphi 0, %s114
      %s117 = sphi 0, %s116
      %s131 = sphi 0, %s117
      %s135 = sphi 0, %s135
      %s137 = sphi 0, %s135
      %s138 = sphi 0, %s137
      %s152 = sphi 0, %s138
      %s156 = sphi 0, %s156
      %s158 = sphi 0, %s156
      %s159 = sphi 0, %s158
      %s173 = sphi 0, %s159
      %s179 = sphi 0, %s181
      %s182 = sphi 0, %s179
      %s183 = sphi 0, %s182
      %s199 = sphi 0, %s183
    $region4: #{tpu_custom_call.1} parent=1 // loop_header_branch
      %20 = sbr.rel (%p18) target = $region8
    $region5: #{tpu_custom_call.1} parent=1 // loop_body
      %s22 = ssub.s32 %s17, 1
      %s23 = ssub.s32 %s17, 2
      %s24 = sadd.s32 %s17, 1
      %s25 = ssub.s32 %s17, %s24
      %p26 = scmp.eq.s32.totalorder %s25, 0
      %s28 = sadd.s32 %s27, 1
      %s29 = scalar_select %p26, %s27, %s28
      %p32 = pneg %p26
      %p33 = scmp.eq.s32.totalorder %s17, 1
      %p34 = por %p32, %p33
      %p35 = scmp.ne.s32.totalorder %s27, %s30
      %p36 = scmp.eq.s32.totalorder %s17, 0
      %p37 = por %p35, %p36
      %p38 = scmp.ne.s32.totalorder %s27, %s30
      %p39 = scmp.eq.s32.totalorder %s22, 1
      %p40 = por %p38, %p39
      %p41 = scmp.ne.s32.totalorder %s30, %s31
      %p42 = scmp.eq.s32.totalorder %s22, 0
      %p43 = por %p41, %p42
      %p44 = scmp.ne.s32.totalorder %s30, %s31
      %p45 = scmp.eq.s32.totalorder %s23, 1
      %p46 = por %p44, %p45
      %p48 = scmp.ne.s32.totalorder %s31, %s47
      %p49 = scmp.eq.s32.totalorder %s23, 0
      %p50 = por %p48, %p49
      %s52 = sadd.s32 %s51, 1
      %p55 = scmp.eq.s32.totalorder %s17, 1
      %p56 = scmp.ne.s32.totalorder %s51, %s53
      %p57 = scmp.eq.s32.totalorder %s17, 0
      %p58 = por %p56, %p57
      %p59 = scmp.ne.s32.totalorder %s51, %s53
      %p60 = scmp.eq.s32.totalorder %s22, 1
      %p61 = por %p59, %p60
      %p62 = scmp.ne.s32.totalorder %s53, %s54
      %p63 = scmp.eq.s32.totalorder %s22, 0
      %p64 = por %p62, %p63
      %p65 = scmp.ne.s32.totalorder %s53, %s54
      %p66 = scmp.eq.s32.totalorder %s23, 1
      %p67 = por %p65, %p66
      %p69 = scmp.ne.s32.totalorder %s54, %s68
      %p70 = scmp.eq.s32.totalorder %s23, 0
      %p71 = por %p69, %p70
      %s73 = sadd.s32 %s72, 1
      %p76 = scmp.eq.s32.totalorder %s17, 1
      %p77 = scmp.ne.s32.totalorder %s72, %s74
      %p78 = scmp.eq.s32.totalorder %s17, 0
      %p79 = por %p77, %p78
      %p80 = scmp.ne.s32.totalorder %s72, %s74
      %p81 = scmp.eq.s32.totalorder %s22, 1
      %p82 = por %p80, %p81
      %p83 = scmp.ne.s32.totalorder %s74, %s75
      %p84 = scmp.eq.s32.totalorder %s22, 0
      %p85 = por %p83, %p84
      %p86 = scmp.ne.s32.totalorder %s74, %s75
      %p87 = scmp.eq.s32.totalorder %s23, 1
      %p88 = por %p86, %p87
      %p90 = scmp.ne.s32.totalorder %s75, %s89
      %p91 = scmp.eq.s32.totalorder %s23, 0
      %p92 = por %p90, %p91
      %s94 = sadd.s32 %s93, 1
      %p97 = scmp.eq.s32.totalorder %s17, 1
      %p98 = scmp.ne.s32.totalorder %s93, %s95
      %p99 = scmp.eq.s32.totalorder %s17, 0
      %p100 = por %p98, %p99
      %p101 = scmp.ne.s32.totalorder %s93, %s95
      %p102 = scmp.eq.s32.totalorder %s22, 1
      %p103 = por %p101, %p102
      %p104 = scmp.ne.s32.totalorder %s95, %s96
      %p105 = scmp.eq.s32.totalorder %s22, 0
      %p106 = por %p104, %p105
      %p107 = scmp.ne.s32.totalorder %s95, %s96
      %p108 = scmp.eq.s32.totalorder %s23, 1
      %p109 = por %p107, %p108
      %p111 = scmp.ne.s32.totalorder %s96, %s110
      %p112 = scmp.eq.s32.totalorder %s23, 0
      %p113 = por %p111, %p112
      %s115 = sadd.s32 %s114, 1
      %p118 = scmp.eq.s32.totalorder %s17, 1
      %p119 = scmp.ne.s32.totalorder %s114, %s116
      %p120 = scmp.eq.s32.totalorder %s17, 0
      %p121 = por %p119, %p120
      %p122 = scmp.ne.s32.totalorder %s114, %s116
      %p123 = scmp.eq.s32.totalorder %s22, 1
      %p124 = por %p122, %p123
      %p125 = scmp.ne.s32.totalorder %s116, %s117
      %p126 = scmp.eq.s32.totalorder %s22, 0
      %p127 = por %p125, %p126
      %p128 = scmp.ne.s32.totalorder %s116, %s117
      %p129 = scmp.eq.s32.totalorder %s23, 1
      %p130 = por %p128, %p129
      %p132 = scmp.ne.s32.totalorder %s117, %s131
      %p133 = scmp.eq.s32.totalorder %s23, 0
      %p134 = por %p132, %p133
      %s136 = sadd.s32 %s135, 1
      %p139 = scmp.eq.s32.totalorder %s17, 1
      %p140 = scmp.ne.s32.totalorder %s135, %s137
      %p141 = scmp.eq.s32.totalorder %s17, 0
      %p142 = por %p140, %p141
      %p143 = scmp.ne.s32.totalorder %s135, %s137
      %p144 = scmp.eq.s32.totalorder %s22, 1
      %p145 = por %p143, %p144
      %p146 = scmp.ne.s32.totalorder %s137, %s138
      %p147 = scmp.eq.s32.totalorder %s22, 0
      %p148 = por %p146, %p147
      %p149 = scmp.ne.s32.totalorder %s137, %s138
      %p150 = scmp.eq.s32.totalorder %s23, 1
      %p151 = por %p149, %p150
      %p153 = scmp.ne.s32.totalorder %s138, %s152
      %p154 = scmp.eq.s32.totalorder %s23, 0
      %p155 = por %p153, %p154
      %s157 = sadd.s32 %s156, 1
      %p160 = scmp.eq.s32.totalorder %s17, 1
      %p161 = scmp.ne.s32.totalorder %s156, %s158
      %p162 = scmp.eq.s32.totalorder %s17, 0
      %p163 = por %p161, %p162
      %p164 = scmp.ne.s32.totalorder %s156, %s158
      %p165 = scmp.eq.s32.totalorder %s22, 1
      %p166 = por %p164, %p165
      %p167 = scmp.ne.s32.totalorder %s158, %s159
      %p168 = scmp.eq.s32.totalorder %s22, 0
      %p169 = por %p167, %p168
      %p170 = scmp.ne.s32.totalorder %s158, %s159
      %p171 = scmp.eq.s32.totalorder %s23, 1
      %p172 = por %p170, %p171
      %p174 = scmp.ne.s32.totalorder %s159, %s173
      %p175 = scmp.eq.s32.totalorder %s23, 0
      %p176 = por %p174, %p175
      %s177 = ssub.s32 %s17, %s24
      %p178 = scmp.eq.s32.totalorder %s177, 0
      %s180 = sadd.s32 %s179, 1
      %s181 = scalar_select %p178, %s179, %s180
      %p184 = pneg %p178
      %p185 = scmp.eq.s32.totalorder %s17, 1
      %p186 = por %p184, %p185
      %p187 = scmp.ne.s32.totalorder %s179, %s182
      %p188 = scmp.eq.s32.totalorder %s17, 0
      %p189 = por %p187, %p188
      %p190 = scmp.ne.s32.totalorder %s179, %s182
      %p191 = scmp.eq.s32.totalorder %s22, 1
      %p192 = por %p190, %p191
      %p193 = scmp.ne.s32.totalorder %s182, %s183
      %p194 = scmp.eq.s32.totalorder %s22, 0
      %p195 = por %p193, %p194
      %p196 = scmp.ne.s32.totalorder %s182, %s183
      %p197 = scmp.eq.s32.totalorder %s23, 1
      %p198 = por %p196, %p197
      %p200 = scmp.ne.s32.totalorder %s183, %s199
      %p201 = scmp.eq.s32.totalorder %s23, 0
      %p202 = por %p200, %p201
      %p203 = scmp.le.s32.totalorder 1, %s17
      %p204 = scmp.lt.s32.totalorder %s17, 3
      %p205 = pnand %p203, %p204
      %p206 = pneg %p205
      // Predicated region
      $region9: #{tpu_custom_call.1} parent=5 // pred_check
        _
      $region10: #{tpu_custom_call.1} parent=5 // pred_check_branch
        %208 = sbr.rel (%p205) target = $region12
      $region11: #{tpu_custom_call.1} parent=5 // pred_region
        %s209 = ssub.s32 %s17, 1
        // Predicated region
        $region13: #{tpu_custom_call.1} parent=11 // pred_check
          %p210 = pneg %p64
        $region14: #{tpu_custom_call.1} parent=11 // pred_check_branch
          %212 = sbr.rel (%p210) target = $region16
        $region15: #{tpu_custom_call.1} parent=11 // pred_region
          _
        $region16: #{tpu_custom_call.1} parent=11 // pred_fallthru
          _
        // Predicated region
        $region17: #{tpu_custom_call.1} parent=11 // pred_check
          %p213 = pneg %p85
        $region18: #{tpu_custom_call.1} parent=11 // pred_check_branch
          %215 = sbr.rel (%p213) target = $region20
        $region19: #{tpu_custom_call.1} parent=11 // pred_region
          _
        $region20: #{tpu_custom_call.1} parent=11 // pred_fallthru
          _
        // Predicated region
        $region21: #{tpu_custom_call.1} parent=11 // pred_check
          %p216 = pneg %p106
        $region22: #{tpu_custom_call.1} parent=11 // pred_check_branch
          %218 = sbr.rel (%p216) target = $region24
        $region23: #{tpu_custom_call.1} parent=11 // pred_region
          %s220 = ssub.s32 9216, 9216
          %221 = vsyncadd [#allocation5], %s220
          %s222 = sshll.u32 [#allocation4], 4
          %s223 = int_to_ptr.vmem [resolvable:$true] %s222
          %228 = dma.hbm_to_vmem [thread:$0]  %s3, 9216, %s223, [#allocation5], 64, 64, 4
        $region24: #{tpu_custom_call.1} parent=11 // pred_fallthru
          _
        // Predicated region
        $region25: #{tpu_custom_call.1} parent=11 // pred_check
          %p229 = pneg %p127
        $region26: #{tpu_custom_call.1} parent=11 // pred_check_branch
          %231 = sbr.rel (%p229) target = $region28
        $region27: #{tpu_custom_call.1} parent=11 // pred_region
          _
        $region28: #{tpu_custom_call.1} parent=11 // pred_fallthru
          _
        // Predicated region
        $region29: #{tpu_custom_call.1} parent=11 // pred_check
          %p232 = pneg %p148
        $region30: #{tpu_custom_call.1} parent=11 // pred_check_branch
          %234 = sbr.rel (%p232) target = $region32
        $region31: #{tpu_custom_call.1} parent=11 // pred_region
          _
        $region32: #{tpu_custom_call.1} parent=11 // pred_fallthru
          _
        // Predicated region
        $region33: #{tpu_custom_call.1} parent=11 // pred_check
          %p235 = pneg %p169
        $region34: #{tpu_custom_call.1} parent=11 // pred_check_branch
          %237 = sbr.rel (%p235) target = $region36
        $region35: #{tpu_custom_call.1} parent=11 // pred_region
          _
        $region36: #{tpu_custom_call.1} parent=11 // pred_fallthru
          _
      $region12: #{tpu_custom_call.1} parent=5 // pred_fallthru
        _
      %p238 = scmp.lt.s32.totalorder %s17, 2
      // Predicated region
      $region37: #{tpu_custom_call.1} parent=5 // pred_check
        %p239 = pneg %p238
      $region38: #{tpu_custom_call.1} parent=5 // pred_check_branch
        %241 = sbr.rel (%p239) target = $region40
      $region39: #{tpu_custom_call.1} parent=5 // pred_region
        // Predicated region
        $region41: #{tpu_custom_call.1} parent=39 // pred_check
          %p242 = pneg %p37
        $region42: #{tpu_custom_call.1} parent=39 // pred_check_branch
          %244 = sbr.rel (%p242) target = $region44
        $region43: #{tpu_custom_call.1} parent=39 // pred_region
          %p245 = scmp.lt.s32.totalorder %s17, 1
          %s246 = scalar_select %p245, %s17, 1
          %s247 = smul.addr %s246, 8
          %s248 = smul.addr %s247, 4
          %s249 = scalar_lea.vmem %s0, %s248
        $region44: #{tpu_custom_call.1} parent=39 // pred_fallthru
          _
      $region40: #{tpu_custom_call.1} parent=5 // pred_fallthru
        _
      %p250 = scmp.le.s32.totalorder 1, %s17
      %p251 = scmp.lt.s32.totalorder %s17, 3
      %p252 = pnand %p250, %p251
      %p253 = pneg %p252
      // Predicated region
      $region45: #{tpu_custom_call.1} parent=5 // pred_check
        _
      $region46: #{tpu_custom_call.1} parent=5 // pred_check_branch
        %255 = sbr.rel (%p252) target = $region48
      $region47: #{tpu_custom_call.1} parent=5 // pred_region
        %s256 = ssub.s32 %s17, 1
        // Predicated region
        $region49: #{tpu_custom_call.1} parent=47 // pred_check
          %p257 = pneg %p106
        $region50: #{tpu_custom_call.1} parent=47 // pred_check_branch
          %259 = sbr.rel (%p257) target = $region52
        $region51: #{tpu_custom_call.1} parent=47 // pred_region
          %260 = dma.done [#allocation5], 9216
        $region52: #{tpu_custom_call.1} parent=47 // pred_fallthru
          _
        %p261 = scmp.lt.s32.totalorder %s22, 1
        %s262 = scalar_select %p261, %s22, 1
        %s263 = smul.addr %s262, 8
        %s264 = smul.addr %s263, 4
        %s265 = scalar_lea.vmem %s0, %s264
        %p266 = pneg %p43
        %p267 = pneg %p40
        %p268 = pneg %p64
        %p269 = pneg %p61
        %p270 = pneg %p85
        %p271 = pneg %p82
        %p272 = pneg %p106
        %p273 = pneg %p103
        %p274 = pneg %p127
        %p275 = pneg %p124
        %p276 = pneg %p148
        %p277 = pneg %p145
        %p278 = pneg %p169
        %p279 = pneg %p166
        %p280 = pneg %p195
        %p281 = pneg %p192
        %s282 = sand.u32 %s182, 1
        %s283 = scalar_lea.sflag [#allocation6], %s282
        %s284 = sand.u32 %s182, 1
        %s285 = smul.addr %s284, 64
        %s286 = scalar_lea.vmem [#allocation7], %s285
        %p287 = scmp.lt.s32.totalorder %s22, 1
        %s288 = scalar_select %p287, %s22, 1
        %s289 = smul.addr %s288, 8
        %s290 = smul.addr %s289, 4
        %s291 = scalar_lea.vmem %s0, %s290
        %v293 = vld [vmem:[%s291] sm:$0xf]
        %v294 = vld [vmem:[%s291 + $0x4] sm:$0xf]
        %v295 = vld [vmem:[%s291 + $0x8] sm:$0xf]
        %v296 = vld [vmem:[%s291 + $0xc] sm:$0xf]
        %v297 = vld [vmem:[%s291 + $0x10] sm:$0xf]
        %v298 = vld [vmem:[%s291 + $0x14] sm:$0xf]
        %v299 = vld [vmem:[%s291 + $0x18] sm:$0xf]
        %v300 = vld [vmem:[%s291 + $0x1c] sm:$0xf]
        %v301 = vld [vmem:[%s1] sm:$0xf]
        %v302 = vld [vmem:[%s1 + $0x4] sm:$0xf]
        %v303 = vld [vmem:[%s1 + $0x8] sm:$0xf]
        %v304 = vld [vmem:[%s1 + $0xc] sm:$0xf]
        %v305 = vld [vmem:[%s1 + $0x10] sm:$0x3]
        %v306 = vld [vmem:[%s2] sm:$0x1]
        %v308 = vlaneseq
        %v309 = vshrl.u32 %v308, 7
        %v310 = vsub.s32 0, %v309
        %v311 = vrot.slane %v306, %v310
        %v321 = vunpack.c.l.b16 %v293
        %v322 = vunpack.c.l.b16 %v294
        %v323 = vunpack.c.l.b16 %v295
        %v324 = vunpack.c.l.b16 %v296
        %v325 = vunpack.c.l.b16 %v297
        %v326 = vunpack.c.l.b16 %v298
        %v327 = vunpack.c.l.b16 %v299
        %v328 = vunpack.c.l.b16 %v300
        %v329 = vpack.c.b16 %v322, %v321
        %v330 = vpack.c.b16 %v324, %v323
        %v331 = vpack.c.b16 %v326, %v325
        %v332 = vpack.c.b16 %v328, %v327
        %v338 = vunpack.c.l.b16 %v301
        %v339 = vunpack.c.l.b16 %v302
        %v340 = vunpack.c.l.b16 %v303
        %v341 = vunpack.c.l.b16 %v304
        %v342 = vunpack.c.l.b16 %v305
        %v343 = vpack.c.b16 %v339, %v338
        %v344 = vpack.c.b16 %v341, %v340
        %v345 = vpack.c.b16 %v342, %v342
        %vm348 = vcmask 293888
        %v350 = vsel %vm348, %v329, 0
        %v353 = vsel %vm348, %v330, 0
        %v356 = vsel %vm348, %v331, 0
        %v359 = vsel %vm348, %v332, 0
        %vm361 = vcmask 1041408
        %v363 = vsel %vm361, %v345, 0
        %365 = vmatprep.subr.bf16.mxu0 0
        %366 = vmatpush1.bf16.msra.mxu0 %v343
        %367 = vmatprep.subr.bf16.mxu0 0
        %368 = vmatpush1.bf16.msra.mxu0 %v344
        %369 = vmatprep.subr.bf16.mxu0 0
        %370 = vmatpush1.bf16.msra.mxu0 %v363
        %371 = vmatprep.subr.bf16.mxu0 0
        %372 = vmatpush1.bf16.msra.mxu0 0
        %373 = vmatprep.subr.bf16.mxu0 0
        %374 = vmatpush1.bf16.msra.mxu0 0
        %375 = vmatprep.subr.bf16.mxu0 0
        %376 = vmatpush1.bf16.msra.mxu0 0
        %377 = vmatprep.subr.bf16.mxu0 0
        %378 = vmatpush1.bf16.msra.mxu0 0
        %379 = vmatprep.subr.bf16.mxu0 0
        %380 = vmatpush1.bf16.msra.mxu0 0
        %381 = vmatprep.subr.bf16.mxu0 0
        %382 = vmatpush1.bf16.msra.mxu0 0
        %383 = vmatprep.subr.bf16.mxu0 0
        %384 = vmatpush1.bf16.msra.mxu0 0
        %385 = vmatprep.subr.bf16.mxu0 0
        %386 = vmatpush1.bf16.msra.mxu0 0
        %387 = vmatprep.subr.bf16.mxu0 0
        %388 = vmatpush1.bf16.msra.mxu0 0
        %389 = vmatprep.subr.bf16.mxu0 0
        %390 = vmatpush1.bf16.msra.mxu0 0
        %391 = vmatprep.subr.bf16.mxu0 0
        %392 = vmatpush1.bf16.msra.mxu0 0
        %393 = vmatprep.subr.bf16.mxu0 0
        %394 = vmatpush1.bf16.msra.mxu0 0
        %395 = vmatprep.subr.bf16.mxu0 0
        %396 = vmatpush1.bf16.msra.mxu0 0
        %397 = vmatprep.mubr.bf16.mxu0 0
        %398 = vmatmul.mubr.bf16.gmra.mrb[0].mxu0 %v350
        %v399 = vpop.f32.mrb[0].mxu0
        %v400 = vadd.f32 %v311, %v399
        %v401 = vpop.f32.mrb[0].mxu0
        %v402 = vpop.f32.mrb[0].mxu0
        %v403 = vadd.f32 %v311, %v402
        %v404 = vpop.f32.mrb[0].mxu0
        %405 = vmatprep.mubr.bf16.mxu0 0
        %406 = vmatmul.mubr.bf16.gmra.mrb[0].mxu0 %v353
        %v407 = vpop.f32.mrb[0].mxu0
        %v408 = vadd.f32 %v311, %v407
        %v409 = vpop.f32.mrb[0].mxu0
        %v410 = vpop.f32.mrb[0].mxu0
        %v411 = vadd.f32 %v311, %v410
        %v412 = vpop.f32.mrb[0].mxu0
        %413 = vmatprep.mubr.bf16.mxu0 0
        %414 = vmatmul.mubr.bf16.gmra.mrb[0].mxu0 %v356
        %v415 = vpop.f32.mrb[0].mxu0
        %v416 = vadd.f32 %v311, %v415
        %v417 = vpop.f32.mrb[0].mxu0
        %v418 = vpop.f32.mrb[0].mxu0
        %v419 = vadd.f32 %v311, %v418
        %v420 = vpop.f32.mrb[0].mxu0
        %421 = vmatprep.mubr.bf16.mxu0 0
        %422 = vmatmul.mubr.bf16.gmra.mrb[0].mxu0 %v359
        %v423 = vpop.f32.mrb[0].mxu0
        %v424 = vadd.f32 %v311, %v423
        %v425 = vpop.f32.mrb[0].mxu0
        %v426 = vpop.f32.mrb[0].mxu0
        %v427 = vadd.f32 %v311, %v426
        %v428 = vpop.f32.mrb[0].mxu0
        %429 = vdwg.mxu0
        %v430 = vmax.f32 %v400, 0.0
        %v431 = vmax.f32 %v403, 0.0
        %v432 = vmax.f32 %v408, 0.0
        %v433 = vmax.f32 %v411, 0.0
        %v434 = vmax.f32 %v416, 0.0
        %v435 = vmax.f32 %v419, 0.0
        %v436 = vmax.f32 %v424, 0.0
        %v437 = vmax.f32 %v427, 0.0
        %438 = vst [vmem:[#allocation2] sm:$0xff] 0
        %s439 = scalar_lea.vmem [#allocation2], 72
        %440 = vst [vmem:[%s439] sm:$0xff] 0
        %s441 = scalar_lea.vmem [#allocation2], 8
        %vm442 = vcmask 1040384
        %vm443 = vsmask.f32 256
        %vm444 = vmand %vm442, %vm443
        %v445 = vld [vmem:[%s441] sm:$0x1]
        %v446 = vsel %vm444, 0, %v445
        %447 = vst [vmem:[%s441] sm:$0x1] %v446
        %v448 = vld [vmem:[%s441 + $0x8] sm:$0x1]
        %v449 = vsel %vm444, 0, %v448
        %450 = vst [vmem:[%s441 + $0x8] sm:$0x1] %v449
        %v451 = vld [vmem:[%s441 + $0x10] sm:$0x1]
        %v452 = vsel %vm444, 0, %v451
        %453 = vst [vmem:[%s441 + $0x10] sm:$0x1] %v452
        %v454 = vld [vmem:[%s441 + $0x18] sm:$0x1]
        %v455 = vsel %vm444, 0, %v454
        %456 = vst [vmem:[%s441 + $0x18] sm:$0x1] %v455
        %v457 = vld [vmem:[%s441 + $0x20] sm:$0x1]
        %v458 = vsel %vm444, 0, %v457
        %459 = vst [vmem:[%s441 + $0x20] sm:$0x1] %v458
        %v460 = vld [vmem:[%s441 + $0x28] sm:$0x1]
        %v461 = vsel %vm444, 0, %v460
        %462 = vst [vmem:[%s441 + $0x28] sm:$0x1] %v461
        %v463 = vld [vmem:[%s441 + $0x30] sm:$0x1]
        %v464 = vsel %vm444, 0, %v463
        %465 = vst [vmem:[%s441 + $0x30] sm:$0x1] %v464
        %v466 = vld [vmem:[%s441 + $0x38] sm:$0x1]
        %v467 = vsel %vm444, 0, %v466
        %468 = vst [vmem:[%s441 + $0x38] sm:$0x1] %v467
        %vm469 = vcmask 1044484
        %vm470 = vsmask.f32 7954
        %vm471 = vmand %vm469, %vm470
        %v472 = vld [vmem:[%s441] sm:$0x10]
        %v473 = vsel %vm471, 0, %v472
        %474 = vst [vmem:[%s441] sm:$0x10] %v473
        %v475 = vld [vmem:[%s441 + $0x8] sm:$0x10]
        %v476 = vsel %vm471, 0, %v475
        %477 = vst [vmem:[%s441 + $0x8] sm:$0x10] %v476
        %v478 = vld [vmem:[%s441 + $0x10] sm:$0x10]
        %v479 = vsel %vm471, 0, %v478
        %480 = vst [vmem:[%s441 + $0x10] sm:$0x10] %v479
        %v481 = vld [vmem:[%s441 + $0x18] sm:$0x10]
        %v482 = vsel %vm471, 0, %v481
        %483 = vst [vmem:[%s441 + $0x18] sm:$0x10] %v482
        %v484 = vld [vmem:[%s441 + $0x20] sm:$0x10]
        %v485 = vsel %vm471, 0, %v484
        %486 = vst [vmem:[%s441 + $0x20] sm:$0x10] %v485
        %v487 = vld [vmem:[%s441 + $0x28] sm:$0x10]
        %v488 = vsel %vm471, 0, %v487
        %489 = vst [vmem:[%s441 + $0x28] sm:$0x10] %v488
        %v490 = vld [vmem:[%s441 + $0x30] sm:$0x10]
        %v491 = vsel %vm471, 0, %v490
        %492 = vst [vmem:[%s441 + $0x30] sm:$0x10] %v491
        %v493 = vld [vmem:[%s441 + $0x38] sm:$0x10]
        %v494 = vsel %vm471, 0, %v493
        %495 = vst [vmem:[%s441 + $0x38] sm:$0x10] %v494
        %v496 = vpack.c.bf16 %v430, %v430
        %v497 = vpack.c.bf16 %v431, %v431
        %v498 = vpack.c.bf16 %v432, %v432
        %v499 = vpack.c.bf16 %v433, %v433
        %v500 = vpack.c.bf16 %v434, %v434
        %v501 = vpack.c.bf16 %v435, %v435
        %v502 = vpack.c.bf16 %v436, %v436
        %v503 = vpack.c.bf16 %v437, %v437
        %v505 = vshrl.u32 %v496, 16
        %v507 = vrot.slane %v505, 7
        %v508 = vshll.u32 %v496, 16
        %v510 = vor.u32 %v507, %v508
        %v512 = vshrl.u32 %v497, 16
        %v514 = vrot.slane %v512, 7
        %v515 = vshll.u32 %v497, 16
        %v517 = vor.u32 %v514, %v515
        %v519 = vshrl.u32 %v498, 16
        %v521 = vrot.slane %v519, 7
        %v522 = vshll.u32 %v498, 16
        %v524 = vor.u32 %v521, %v522
        %v526 = vshrl.u32 %v499, 16
        %v528 = vrot.slane %v526, 7
        %v529 = vshll.u32 %v499, 16
        %v531 = vor.u32 %v528, %v529
        %v533 = vshrl.u32 %v500, 16
        %v535 = vrot.slane %v533, 7
        %v536 = vshll.u32 %v500, 16
        %v538 = vor.u32 %v535, %v536
        %v540 = vshrl.u32 %v501, 16
        %v542 = vrot.slane %v540, 7
        %v543 = vshll.u32 %v501, 16
        %v545 = vor.u32 %v542, %v543
        %v547 = vshrl.u32 %v502, 16
        %v549 = vrot.slane %v547, 7
        %v550 = vshll.u32 %v502, 16
        %v552 = vor.u32 %v549, %v550
        %v554 = vshrl.u32 %v503, 16
        %v556 = vrot.slane %v554, 7
        %v557 = vshll.u32 %v503, 16
        %v559 = vor.u32 %v556, %v557
        %vm568 = vcmask 1044480
        %vm569 = vsmask.f32 4354
        %vm570 = vmand %vm568, %vm569
        %v571 = vld [vmem:[%s441] sm:$0x1f]
        %v572 = vsel %vm570, %v510, %v571
        %573 = vst [vmem:[%s441] sm:$0x1f] %v572
        %v574 = vld [vmem:[%s441 + $0x8] sm:$0x1f]
        %v575 = vsel %vm570, %v517, %v574
        %576 = vst [vmem:[%s441 + $0x8] sm:$0x1f] %v575
        %v577 = vld [vmem:[%s441 + $0x10] sm:$0x1f]
        %v578 = vsel %vm570, %v524, %v577
        %579 = vst [vmem:[%s441 + $0x10] sm:$0x1f] %v578
        %v580 = vld [vmem:[%s441 + $0x18] sm:$0x1f]
        %v581 = vsel %vm570, %v531, %v580
        %582 = vst [vmem:[%s441 + $0x18] sm:$0x1f] %v581
        %v583 = vld [vmem:[%s441 + $0x20] sm:$0x1f]
        %v584 = vsel %vm570, %v538, %v583
        %585 = vst [vmem:[%s441 + $0x20] sm:$0x1f] %v584
        %v586 = vld [vmem:[%s441 + $0x28] sm:$0x1f]
        %v587 = vsel %vm570, %v545, %v586
        %588 = vst [vmem:[%s441 + $0x28] sm:$0x1f] %v587
        %v589 = vld [vmem:[%s441 + $0x30] sm:$0x1f]
        %v590 = vsel %vm570, %v552, %v589
        %591 = vst [vmem:[%s441 + $0x30] sm:$0x1f] %v590
        %v592 = vld [vmem:[%s441 + $0x38] sm:$0x1f]
        %v593 = vsel %vm570, %v559, %v592
        %594 = vst [vmem:[%s441 + $0x38] sm:$0x1f] %v593
        %v595 = vld [vmem:[#allocation2] sm:$0xf]
        %v596 = vld [vmem:[#allocation2 + $0x8] sm:$0xf]
        %v597 = vld [vmem:[#allocation2 + $0x10] sm:$0xf]
        %v598 = vld [vmem:[#allocation2 + $0x18] sm:$0xf]
        %v599 = vld [vmem:[#allocation2 + $0x20] sm:$0xf]
        %v600 = vld [vmem:[#allocation2 + $0x28] sm:$0xf]
        %v601 = vld [vmem:[#allocation2 + $0x30] sm:$0xf]
        %v602 = vld [vmem:[#allocation2 + $0x38] sm:$0xf]
        %v603 = vld [vmem:[#allocation4] sm:$0xf]
        %v604 = vld [vmem:[#allocation4 + $0x4] sm:$0xf]
        %v605 = vld [vmem:[#allocation4 + $0x8] sm:$0xf]
        %v606 = vld [vmem:[#allocation4 + $0xc] sm:$0xf]
        %v607 = vld [vmem:[#allocation4 + $0x10] sm:$0xf]
        %v608 = vld [vmem:[#allocation4 + $0x14] sm:$0xf]
        %v609 = vld [vmem:[#allocation4 + $0x18] sm:$0xf]
        %v610 = vld [vmem:[#allocation4 + $0x1c] sm:$0xf]
        %v611 = vld [vmem:[#allocation4 + $0x20] sm:$0xf]
        %v612 = vld [vmem:[#allocation4 + $0x24] sm:$0xf]
        %v613 = vld [vmem:[#allocation4 + $0x28] sm:$0xf]
        %v614 = vld [vmem:[#allocation4 + $0x2c] sm:$0xf]
        %v615 = vld [vmem:[#allocation4 + $0x30] sm:$0xf]
        %v616 = vld [vmem:[#allocation4 + $0x34] sm:$0xf]
        %v617 = vld [vmem:[#allocation4 + $0x38] sm:$0xf]
        %v618 = vld [vmem:[#allocation4 + $0x3c] sm:$0xf]
        %v627 = vunpack.c.l.b16 %v595
        %v628 = vunpack.c.l.b16 %v596
        %v629 = vunpack.c.l.b16 %v597
        %v630 = vunpack.c.l.b16 %v598
        %v631 = vunpack.c.l.b16 %v599
        %v632 = vunpack.c.l.b16 %v600
        %v633 = vunpack.c.l.b16 %v601
        %v634 = vunpack.c.l.b16 %v602
        %v635 = vpack.c.b16 %v628, %v627
        %v636 = vpack.c.b16 %v630, %v629
        %v637 = vpack.c.b16 %v632, %v631
        %v638 = vpack.c.b16 %v634, %v633
        %v659 = vunpack.c.l.b16 %v603
        %v660 = vunpack.c.l.b16 %v604
        %v661 = vunpack.c.l.b16 %v605
        %v662 = vunpack.c.l.b16 %v606
        %v663 = vunpack.c.l.b16 %v607
        %v664 = vunpack.c.l.b16 %v608
        %v665 = vunpack.c.l.b16 %v609
        %v666 = vunpack.c.l.b16 %v610
        %v667 = vunpack.c.l.b16 %v611
        %v668 = vunpack.c.l.b16 %v612
        %v669 = vunpack.c.l.b16 %v613
        %v670 = vunpack.c.l.b16 %v614
        %v671 = vunpack.c.l.b16 %v615
        %v672 = vunpack.c.l.b16 %v616
        %v673 = vunpack.c.l.b16 %v617
        %v674 = vunpack.c.l.b16 %v618
        %v675 = vpack.c.b16 %v660, %v659
        %v676 = vpack.c.b16 %v662, %v661
        %v677 = vpack.c.b16 %v664, %v663
        %v678 = vpack.c.b16 %v666, %v665
        %v679 = vpack.c.b16 %v668, %v667
        %v680 = vpack.c.b16 %v670, %v669
        %v681 = vpack.c.b16 %v672, %v671
        %v682 = vpack.c.b16 %v674, %v673
        %691 = vmatprep.subr.bf16.mxu0 0
        %692 = vmatpush1.bf16.msra.mxu0 %v675
        %693 = vmatprep.subr.bf16.mxu0 0
        %694 = vmatpush1.bf16.msra.mxu0 %v676
        %695 = vmatprep.subr.bf16.mxu0 0
        %696 = vmatpush1.bf16.msra.mxu0 %v677
        %697 = vmatprep.subr.bf16.mxu0 0
        %698 = vmatpush1.bf16.msra.mxu0 %v678
        %699 = vmatprep.subr.bf16.mxu0 0
        %700 = vmatpush1.bf16.msra.mxu0 %v679
        %701 = vmatprep.subr.bf16.mxu0 0
        %702 = vmatpush1.bf16.msra.mxu0 %v680
        %703 = vmatprep.subr.bf16.mxu0 0
        %704 = vmatpush1.bf16.msra.mxu0 %v681
        %705 = vmatprep.subr.bf16.mxu0 0
        %706 = vmatpush1.bf16.msra.mxu0 %v682
        %707 = vmatprep.subr.bf16.mxu0 0
        %708 = vmatpush1.bf16.msra.mxu0 0
        %709 = vmatprep.subr.bf16.mxu0 0
        %710 = vmatpush1.bf16.msra.mxu0 0
        %711 = vmatprep.subr.bf16.mxu0 0
        %712 = vmatpush1.bf16.msra.mxu0 0
        %713 = vmatprep.subr.bf16.mxu0 0
        %714 = vmatpush1.bf16.msra.mxu0 0
        %715 = vmatprep.subr.bf16.mxu0 0
        %716 = vmatpush1.bf16.msra.mxu0 0
        %717 = vmatprep.subr.bf16.mxu0 0
        %718 = vmatpush1.bf16.msra.mxu0 0
        %719 = vmatprep.subr.bf16.mxu0 0
        %720 = vmatpush1.bf16.msra.mxu0 0
        %721 = vmatprep.subr.bf16.mxu0 0
        %722 = vmatpush1.bf16.msra.mxu0 0
        %723 = vmatprep.mubr.bf16.mxu0 0
        %724 = vmatmul.mubr.bf16.gmra.mrb[0].mxu0 %v635
        %v725 = vpop.f32.mrb[0].mxu0
        %v726 = vadd.f32 0.0, %v725
        %v727 = vpop.f32.mrb[0].mxu0
        %v728 = vpop.f32.mrb[0].mxu0
        %v729 = vadd.f32 0.0, %v728
        %v730 = vpop.f32.mrb[0].mxu0
        %731 = vmatprep.mubr.bf16.mxu0 0
        %732 = vmatmul.mubr.bf16.gmra.mrb[0].mxu0 %v636
        %v733 = vpop.f32.mrb[0].mxu0
        %v734 = vadd.f32 0.0, %v733
        %v735 = vpop.f32.mrb[0].mxu0
        %v736 = vpop.f32.mrb[0].mxu0
        %v737 = vadd.f32 0.0, %v736
        %v738 = vpop.f32.mrb[0].mxu0
        %739 = vmatprep.mubr.bf16.mxu0 0
        %740 = vmatmul.mubr.bf16.gmra.mrb[0].mxu0 %v637
        %v741 = vpop.f32.mrb[0].mxu0
        %v742 = vadd.f32 0.0, %v741
        %v743 = vpop.f32.mrb[0].mxu0
        %v744 = vpop.f32.mrb[0].mxu0
        %v745 = vadd.f32 0.0, %v744
        %v746 = vpop.f32.mrb[0].mxu0
        %747 = vmatprep.mubr.bf16.mxu0 0
        %748 = vmatmul.mubr.bf16.gmra.mrb[0].mxu0 %v638
        %v749 = vpop.f32.mrb[0].mxu0
        %v750 = vadd.f32 0.0, %v749
        %v751 = vpop.f32.mrb[0].mxu0
        %v752 = vpop.f32.mrb[0].mxu0
        %v753 = vadd.f32 0.0, %v752
        %v754 = vpop.f32.mrb[0].mxu0
        %755 = vdwg.mxu0
        %756 = vst [vmem:[#allocation3] sm:$0xff] %v726
        %757 = vst [vmem:[#allocation3 + $0x8] sm:$0xff] %v729
        %758 = vst [vmem:[#allocation3 + $0x10] sm:$0xff] %v734
        %759 = vst [vmem:[#allocation3 + $0x18] sm:$0xff] %v737
        %760 = vst [vmem:[#allocation3 + $0x20] sm:$0xff] %v742
        %761 = vst [vmem:[#allocation3 + $0x28] sm:$0xff] %v745
        %762 = vst [vmem:[#allocation3 + $0x30] sm:$0xff] %v750
        %763 = vst [vmem:[#allocation3 + $0x38] sm:$0xff] %v753
        %v764 = vld [vmem:[#allocation2] sm:$0x1f]
        %v765 = vld [vmem:[#allocation2 + $0x8] sm:$0x1f]
        %v766 = vld [vmem:[#allocation2 + $0x10] sm:$0x1f]
        %v767 = vld [vmem:[#allocation2 + $0x18] sm:$0x1f]
        %v768 = vld [vmem:[#allocation2 + $0x20] sm:$0x1f]
        %v769 = vld [vmem:[#allocation2 + $0x28] sm:$0x1f]
        %v770 = vld [vmem:[#allocation2 + $0x30] sm:$0x1f]
        %v771 = vld [vmem:[#allocation2 + $0x38] sm:$0x1f]
        %v780 = vunpack.c.l.b16 %v764
        %v781 = vunpack.c.h.b16 %v764
        %v782 = vunpack.c.l.b16 %v765
        %v783 = vunpack.c.h.b16 %v765
        %v784 = vunpack.c.l.b16 %v766
        %v785 = vunpack.c.h.b16 %v766
        %v786 = vunpack.c.l.b16 %v767
        %v787 = vunpack.c.h.b16 %v767
        %v788 = vunpack.c.l.b16 %v768
        %v789 = vunpack.c.h.b16 %v768
        %v790 = vunpack.c.l.b16 %v769
        %v791 = vunpack.c.h.b16 %v769
        %v792 = vunpack.c.l.b16 %v770
        %v793 = vunpack.c.h.b16 %v770
        %v794 = vunpack.c.l.b16 %v771
        %v795 = vunpack.c.h.b16 %v771
        %v796 = vpack.c.b16 %v780, %v780
        %v797 = vpack.c.b16 %v781, %v781
        %v798 = vpack.c.b16 %v782, %v782
        %v799 = vpack.c.b16 %v783, %v783
        %v800 = vpack.c.b16 %v784, %v784
        %v801 = vpack.c.b16 %v785, %v785
        %v802 = vpack.c.b16 %v786, %v786
        %v803 = vpack.c.b16 %v787, %v787
        %v804 = vpack.c.b16 %v788, %v788
        %v805 = vpack.c.b16 %v789, %v789
        %v806 = vpack.c.b16 %v790, %v790
        %v807 = vpack.c.b16 %v791, %v791
        %v808 = vpack.c.b16 %v792, %v792
        %v809 = vpack.c.b16 %v793, %v793
        %v810 = vpack.c.b16 %v794, %v794
        %v811 = vpack.c.b16 %v795, %v795
        %vm812 = vsmask.f32 3328
        %vm813 = vsmask.f32 7440
        %vm814 = vmor %vm812, %vm813
        %v816 = vshrl.u32 %v796, 16
        %v818 = vrot.slane %v816, 4
        %v819 = vshll.u32 %v796, 16
        %v821 = vrot.slane %v819, 5
        %v822 = vor.u32 %v818, %v821
        %v823 = vrot.slane %v822, 4
        %v825 = vshll.u32 %v797, 16
        %v827 = vrot.slane %v825, 5
        %v828 = vsel %vm814, %v823, %v827
        %v830 = vshrl.u32 %v798, 16
        %v832 = vrot.slane %v830, 4
        %v833 = vshll.u32 %v798, 16
        %v835 = vrot.slane %v833, 5
        %v836 = vor.u32 %v832, %v835
        %v837 = vrot.slane %v836, 4
        %v839 = vshll.u32 %v799, 16
        %v841 = vrot.slane %v839, 5
        %v842 = vsel %vm814, %v837, %v841
        %v844 = vshrl.u32 %v800, 16
        %v846 = vrot.slane %v844, 4
        %v847 = vshll.u32 %v800, 16
        %v849 = vrot.slane %v847, 5
        %v850 = vor.u32 %v846, %v849
        %v851 = vrot.slane %v850, 4
        %v853 = vshll.u32 %v801, 16
        %v855 = vrot.slane %v853, 5
        %v856 = vsel %vm814, %v851, %v855
        %v858 = vshrl.u32 %v802, 16
        %v860 = vrot.slane %v858, 4
        %v861 = vshll.u32 %v802, 16
        %v863 = vrot.slane %v861, 5
        %v864 = vor.u32 %v860, %v863
        %v865 = vrot.slane %v864, 4
        %v867 = vshll.u32 %v803, 16
        %v869 = vrot.slane %v867, 5
        %v870 = vsel %vm814, %v865, %v869
        %v872 = vshrl.u32 %v804, 16
        %v874 = vrot.slane %v872, 4
        %v875 = vshll.u32 %v804, 16
        %v877 = vrot.slane %v875, 5
        %v878 = vor.u32 %v874, %v877
        %v879 = vrot.slane %v878, 4
        %v881 = vshll.u32 %v805, 16
        %v883 = vrot.slane %v881, 5
        %v884 = vsel %vm814, %v879, %v883
        %v886 = vshrl.u32 %v806, 16
        %v888 = vrot.slane %v886, 4
        %v889 = vshll.u32 %v806, 16
        %v891 = vrot.slane %v889, 5
        %v892 = vor.u32 %v888, %v891
        %v893 = vrot.slane %v892, 4
        %v895 = vshll.u32 %v807, 16
        %v897 = vrot.slane %v895, 5
        %v898 = vsel %vm814, %v893, %v897
        %v900 = vshrl.u32 %v808, 16
        %v902 = vrot.slane %v900, 4
        %v903 = vshll.u32 %v808, 16
        %v905 = vrot.slane %v903, 5
        %v906 = vor.u32 %v902, %v905
        %v907 = vrot.slane %v906, 4
        %v909 = vshll.u32 %v809, 16
        %v911 = vrot.slane %v909, 5
        %v912 = vsel %vm814, %v907, %v911
        %v914 = vshrl.u32 %v810, 16
        %v916 = vrot.slane %v914, 4
        %v917 = vshll.u32 %v810, 16
        %v919 = vrot.slane %v917, 5
        %v920 = vor.u32 %v916, %v919
        %v921 = vrot.slane %v920, 4
        %v923 = vshll.u32 %v811, 16
        %v925 = vrot.slane %v923, 5
        %v926 = vsel %vm814, %v921, %v925
        %s927 = scalar_lea.vmem [#allocation4], 64
        %v928 = vld [vmem:[%s927] sm:$0xf]
        %v929 = vld [vmem:[%s927 + $0x4] sm:$0xf]
        %v930 = vld [vmem:[%s927 + $0x8] sm:$0xf]
        %v931 = vld [vmem:[%s927 + $0xc] sm:$0xf]
        %v932 = vld [vmem:[%s927 + $0x10] sm:$0xf]
        %v933 = vld [vmem:[%s927 + $0x14] sm:$0xf]
        %v934 = vld [vmem:[%s927 + $0x18] sm:$0xf]
        %v935 = vld [vmem:[%s927 + $0x1c] sm:$0xf]
        %v936 = vld [vmem:[%s927 + $0x20] sm:$0xf]
        %v937 = vld [vmem:[%s927 + $0x24] sm:$0xf]
        %v938 = vld [vmem:[%s927 + $0x28] sm:$0xf]
        %v939 = vld [vmem:[%s927 + $0x2c] sm:$0xf]
        %v940 = vld [vmem:[%s927 + $0x30] sm:$0xf]
        %v941 = vld [vmem:[%s927 + $0x34] sm:$0xf]
        %v942 = vld [vmem:[%s927 + $0x38] sm:$0xf]
        %v943 = vld [vmem:[%s927 + $0x3c] sm:$0xf]
        %v944 = vunpack.c.l.b16 %v828
        %v945 = vunpack.c.l.b16 %v842
        %v946 = vunpack.c.l.b16 %v856
        %v947 = vunpack.c.l.b16 %v870
        %v948 = vunpack.c.l.b16 %v884
        %v949 = vunpack.c.l.b16 %v898
        %v950 = vunpack.c.l.b16 %v912
        %v951 = vunpack.c.l.b16 %v926
        %v952 = vpack.c.b16 %v945, %v944
        %v953 = vpack.c.b16 %v947, %v946
        %v954 = vpack.c.b16 %v949, %v948
        %v955 = vpack.c.b16 %v951, %v950
        %v976 = vunpack.c.l.b16 %v928
        %v977 = vunpack.c.l.b16 %v929
        %v978 = vunpack.c.l.b16 %v930
        %v979 = vunpack.c.l.b16 %v931
        %v980 = vunpack.c.l.b16 %v932
        %v981 = vunpack.c.l.b16 %v933
        %v982 = vunpack.c.l.b16 %v934
        %v983 = vunpack.c.l.b16 %v935
        %v984 = vunpack.c.l.b16 %v936
        %v985 = vunpack.c.l.b16 %v937
        %v986 = vunpack.c.l.b16 %v938
        %v987 = vunpack.c.l.b16 %v939
        %v988 = vunpack.c.l.b16 %v940
        %v989 = vunpack.c.l.b16 %v941
        %v990 = vunpack.c.l.b16 %v942
        %v991 = vunpack.c.l.b16 %v943
        %v992 = vpack.c.b16 %v977, %v976
        %v993 = vpack.c.b16 %v979, %v978
        %v994 = vpack.c.b16 %v981, %v980
        %v995 = vpack.c.b16 %v983, %v982
        %v996 = vpack.c.b16 %v985, %v984
        %v997 = vpack.c.b16 %v987, %v986
        %v998 = vpack.c.b16 %v989, %v988
        %v999 = vpack.c.b16 %v991, %v990
        %1008 = vmatprep.subr.bf16.mxu0 0
        %1009 = vmatpush1.bf16.msra.mxu0 %v992
        %1010 = vmatprep.subr.bf16.mxu0 0
        %1011 = vmatpush1.bf16.msra.mxu0 %v993
        %1012 = vmatprep.subr.bf16.mxu0 0
        %1013 = vmatpush1.bf16.msra.mxu0 %v994
        %1014 = vmatprep.subr.bf16.mxu0 0
        %1015 = vmatpush1.bf16.msra.mxu0 %v995
        %1016 = vmatprep.subr.bf16.mxu0 0
        %1017 = vmatpush1.bf16.msra.mxu0 %v996
        %1018 = vmatprep.subr.bf16.mxu0 0
        %1019 = vmatpush1.bf16.msra.mxu0 %v997
        %1020 = vmatprep.subr.bf16.mxu0 0
        %1021 = vmatpush1.bf16.msra.mxu0 %v998
        %1022 = vmatprep.subr.bf16.mxu0 0
        %1023 = vmatpush1.bf16.msra.mxu0 %v999
        %1024 = vmatprep.subr.bf16.mxu0 0
        %1025 = vmatpush1.bf16.msra.mxu0 0
        %1026 = vmatprep.subr.bf16.mxu0 0
        %1027 = vmatpush1.bf16.msra.mxu0 0
        %1028 = vmatprep.subr.bf16.mxu0 0
        %1029 = vmatpush1.bf16.msra.mxu0 0
        %1030 = vmatprep.subr.bf16.mxu0 0
        %1031 = vmatpush1.bf16.msra.mxu0 0
        %1032 = vmatprep.subr.bf16.mxu0 0
        %1033 = vmatpush1.bf16.msra.mxu0 0
        %1034 = vmatprep.subr.bf16.mxu0 0
        %1035 = vmatpush1.bf16.msra.mxu0 0
        %1036 = vmatprep.subr.bf16.mxu0 0
        %1037 = vmatpush1.bf16.msra.mxu0 0
        %1038 = vmatprep.subr.bf16.mxu0 0
        %1039 = vmatpush1.bf16.msra.mxu0 0
        %1040 = vmatprep.mubr.bf16.mxu0 0
        %1041 = vmatmul.mubr.bf16.gmra.mrb[0].mxu0 %v952
        %v1042 = vpop.f32.mrb[0].mxu0
        %v1043 = vadd.f32 0.0, %v1042
        %v1044 = vpop.f32.mrb[0].mxu0
        %v1045 = vpop.f32.mrb[0].mxu0
        %v1046 = vadd.f32 0.0, %v1045
        %v1047 = vpop.f32.mrb[0].mxu0
        %1048 = vmatprep.mubr.bf16.mxu0 0
        %1049 = vmatmul.mubr.bf16.gmra.mrb[0].mxu0 %v953
        %v1050 = vpop.f32.mrb[0].mxu0
        %v1051 = vadd.f32 0.0, %v1050
        %v1052 = vpop.f32.mrb[0].mxu0
        %v1053 = vpop.f32.mrb[0].mxu0
        %v1054 = vadd.f32 0.0, %v1053
        %v1055 = vpop.f32.mrb[0].mxu0
        %1056 = vmatprep.mubr.bf16.mxu0 0
        %1057 = vmatmul.mubr.bf16.gmra.mrb[0].mxu0 %v954
        %v1058 = vpop.f32.mrb[0].mxu0
        %v1059 = vadd.f32 0.0, %v1058
        %v1060 = vpop.f32.mrb[0].mxu0
        %v1061 = vpop.f32.mrb[0].mxu0
        %v1062 = vadd.f32 0.0, %v1061
        %v1063 = vpop.f32.mrb[0].mxu0
        %1064 = vmatprep.mubr.bf16.mxu0 0
        %1065 = vmatmul.mubr.bf16.gmra.mrb[0].mxu0 %v955
        %v1066 = vpop.f32.mrb[0].mxu0
        %v1067 = vadd.f32 0.0, %v1066
        %v1068 = vpop.f32.mrb[0].mxu0
        %v1069 = vpop.f32.mrb[0].mxu0
        %v1070 = vadd.f32 0.0, %v1069
        %v1071 = vpop.f32.mrb[0].mxu0
        %1072 = vdwg.mxu0
        %v1073 = vld [vmem:[#allocation3] sm:$0xff]
        %v1074 = vld [vmem:[#allocation3 + $0x8] sm:$0xff]
        %v1075 = vld [vmem:[#allocation3 + $0x10] sm:$0xff]
        %v1076 = vld [vmem:[#allocation3 + $0x18] sm:$0xff]
        %v1077 = vld [vmem:[#allocation3 + $0x20] sm:$0xff]
        %v1078 = vld [vmem:[#allocation3 + $0x28] sm:$0xff]
        %v1079 = vld [vmem:[#allocation3 + $0x30] sm:$0xff]
        %v1080 = vld [vmem:[#allocation3 + $0x38] sm:$0xff]
        %v1081 = vadd.f32 %v1073, %v1043
        %v1082 = vadd.f32 %v1074, %v1046
        %v1083 = vadd.f32 %v1075, %v1051
        %v1084 = vadd.f32 %v1076, %v1054
        %v1085 = vadd.f32 %v1077, %v1059
        %v1086 = vadd.f32 %v1078, %v1062
        %v1087 = vadd.f32 %v1079, %v1067
        %v1088 = vadd.f32 %v1080, %v1070
        %1089 = vst [vmem:[#allocation3] sm:$0xff] %v1081
        %1090 = vst [vmem:[#allocation3 + $0x8] sm:$0xff] %v1082
        %1091 = vst [vmem:[#allocation3 + $0x10] sm:$0xff] %v1083
        %1092 = vst [vmem:[#allocation3 + $0x18] sm:$0xff] %v1084
        %1093 = vst [vmem:[#allocation3 + $0x20] sm:$0xff] %v1085
        %1094 = vst [vmem:[#allocation3 + $0x28] sm:$0xff] %v1086
        %1095 = vst [vmem:[#allocation3 + $0x30] sm:$0xff] %v1087
        %1096 = vst [vmem:[#allocation3 + $0x38] sm:$0xff] %v1088
        %v1097 = vld [vmem:[#allocation2] sm:$0x1e]
        %v1098 = vld [vmem:[#allocation2 + $0x8] sm:$0x1e]
        %v1099 = vld [vmem:[#allocation2 + $0x10] sm:$0x1e]
        %v1100 = vld [vmem:[#allocation2 + $0x18] sm:$0x1e]
        %v1101 = vld [vmem:[#allocation2 + $0x20] sm:$0x1e]
        %v1102 = vld [vmem:[#allocation2 + $0x28] sm:$0x1e]
        %v1103 = vld [vmem:[#allocation2 + $0x30] sm:$0x1e]
        %v1104 = vld [vmem:[#allocation2 + $0x38] sm:$0x1e]
        %v1113 = vunpack.c.l.b16 %v1097
        %v1114 = vunpack.c.h.b16 %v1097
        %v1115 = vunpack.c.l.b16 %v1098
        %v1116 = vunpack.c.h.b16 %v1098
        %v1117 = vunpack.c.l.b16 %v1099
        %v1118 = vunpack.c.h.b16 %v1099
        %v1119 = vunpack.c.l.b16 %v1100
        %v1120 = vunpack.c.h.b16 %v1100
        %v1121 = vunpack.c.l.b16 %v1101
        %v1122 = vunpack.c.h.b16 %v1101
        %v1123 = vunpack.c.l.b16 %v1102
        %v1124 = vunpack.c.h.b16 %v1102
        %v1125 = vunpack.c.l.b16 %v1103
        %v1126 = vunpack.c.h.b16 %v1103
        %v1127 = vunpack.c.l.b16 %v1104
        %v1128 = vunpack.c.h.b16 %v1104
        %v1129 = vpack.c.b16 %v1113, %v1113
        %v1130 = vpack.c.b16 %v1114, %v1114
        %v1131 = vpack.c.b16 %v1115, %v1115
        %v1132 = vpack.c.b16 %v1116, %v1116
        %v1133 = vpack.c.b16 %v1117, %v1117
        %v1134 = vpack.c.b16 %v1118, %v1118
        %v1135 = vpack.c.b16 %v1119, %v1119
        %v1136 = vpack.c.b16 %v1120, %v1120
        %v1137 = vpack.c.b16 %v1121, %v1121
        %v1138 = vpack.c.b16 %v1122, %v1122
        %v1139 = vpack.c.b16 %v1123, %v1123
        %v1140 = vpack.c.b16 %v1124, %v1124
        %v1141 = vpack.c.b16 %v1125, %v1125
        %v1142 = vpack.c.b16 %v1126, %v1126
        %v1143 = vpack.c.b16 %v1127, %v1127
        %v1144 = vpack.c.b16 %v1128, %v1128
        %vm1145 = vcmask 1042432
        %vm1146 = vcmask 1046532
        %vm1147 = vmor %vm1145, %vm1146
        %v1148 = vrot.slane %v1129, 5
        %v1149 = vrot.slane %v1148, 4
        %v1150 = vrot.slane %v1130, 5
        %v1151 = vsel %vm1147, %v1149, %v1150
        %v1152 = vrot.slane %v1131, 5
        %v1153 = vrot.slane %v1152, 4
        %v1154 = vrot.slane %v1132, 5
        %v1155 = vsel %vm1147, %v1153, %v1154
        %v1156 = vrot.slane %v1133, 5
        %v1157 = vrot.slane %v1156, 4
        %v1158 = vrot.slane %v1134, 5
        %v1159 = vsel %vm1147, %v1157, %v1158
        %v1160 = vrot.slane %v1135, 5
        %v1161 = vrot.slane %v1160, 4
        %v1162 = vrot.slane %v1136, 5
        %v1163 = vsel %vm1147, %v1161, %v1162
        %v1164 = vrot.slane %v1137, 5
        %v1165 = vrot.slane %v1164, 4
        %v1166 = vrot.slane %v1138, 5
        %v1167 = vsel %vm1147, %v1165, %v1166
        %v1168 = vrot.slane %v1139, 5
        %v1169 = vrot.slane %v1168, 4
        %v1170 = vrot.slane %v1140, 5
        %v1171 = vsel %vm1147, %v1169, %v1170
        %v1172 = vrot.slane %v1141, 5
        %v1173 = vrot.slane %v1172, 4
        %v1174 = vrot.slane %v1142, 5
        %v1175 = vsel %vm1147, %v1173, %v1174
        %v1176 = vrot.slane %v1143, 5
        %v1177 = vrot.slane %v1176, 4
        %v1178 = vrot.slane %v1144, 5
        %v1179 = vsel %vm1147, %v1177, %v1178
        %s1180 = scalar_lea.vmem [#allocation4], 128
        %v1181 = vld [vmem:[%s1180] sm:$0xf]
        %v1182 = vld [vmem:[%s1180 + $0x4] sm:$0xf]
        %v1183 = vld [vmem:[%s1180 + $0x8] sm:$0xf]
        %v1184 = vld [vmem:[%s1180 + $0xc] sm:$0xf]
        %v1185 = vld [vmem:[%s1180 + $0x10] sm:$0xf]
        %v1186 = vld [vmem:[%s1180 + $0x14] sm:$0xf]
        %v1187 = vld [vmem:[%s1180 + $0x18] sm:$0xf]
        %v1188 = vld [vmem:[%s1180 + $0x1c] sm:$0xf]
        %v1189 = vld [vmem:[%s1180 + $0x20] sm:$0xf]
        %v1190 = vld [vmem:[%s1180 + $0x24] sm:$0xf]
        %v1191 = vld [vmem:[%s1180 + $0x28] sm:$0xf]
        %v1192 = vld [vmem:[%s1180 + $0x2c] sm:$0xf]
        %v1193 = vld [vmem:[%s1180 + $0x30] sm:$0xf]
        %v1194 = vld [vmem:[%s1180 + $0x34] sm:$0xf]
        %v1195 = vld [vmem:[%s1180 + $0x38] sm:$0xf]
        %v1196 = vld [vmem:[%s1180 + $0x3c] sm:$0xf]
        %v1197 = vunpack.c.l.b16 %v1151
        %v1198 = vunpack.c.l.b16 %v1155
        %v1199 = vunpack.c.l.b16 %v1159
        %v1200 = vunpack.c.l.b16 %v1163
        %v1201 = vunpack.c.l.b16 %v1167
        %v1202 = vunpack.c.l.b16 %v1171
        %v1203 = vunpack.c.l.b16 %v1175
        %v1204 = vunpack.c.l.b16 %v1179
        %v1205 = vpack.c.b16 %v1198, %v1197
        %v1206 = vpack.c.b16 %v1200, %v1199
        %v1207 = vpack.c.b16 %v1202, %v1201
        %v1208 = vpack.c.b16 %v1204, %v1203
        %v1229 = vunpack.c.l.b16 %v1181
        %v1230 = vunpack.c.l.b16 %v1182
        %v1231 = vunpack.c.l.b16 %v1183
        %v1232 = vunpack.c.l.b16 %v1184
        %v1233 = vunpack.c.l.b16 %v1185
        %v1234 = vunpack.c.l.b16 %v1186
        %v1235 = vunpack.c.l.b16 %v1187
        %v1236 = vunpack.c.l.b16 %v1188
        %v1237 = vunpack.c.l.b16 %v1189
        %v1238 = vunpack.c.l.b16 %v1190
        %v1239 = vunpack.c.l.b16 %v1191
        %v1240 = vunpack.c.l.b16 %v1192
        %v1241 = vunpack.c.l.b16 %v1193
        %v1242 = vunpack.c.l.b16 %v1194
        %v1243 = vunpack.c.l.b16 %v1195
        %v1244 = vunpack.c.l.b16 %v1196
        %v1245 = vpack.c.b16 %v1230, %v1229
        %v1246 = vpack.c.b16 %v1232, %v1231
        %v1247 = vpack.c.b16 %v1234, %v1233
        %v1248 = vpack.c.b16 %v1236, %v1235
        %v1249 = vpack.c.b16 %v1238, %v1237
        %v1250 = vpack.c.b16 %v1240, %v1239
        %v1251 = vpack.c.b16 %v1242, %v1241
        %v1252 = vpack.c.b16 %v1244, %v1243
        %1261 = vmatprep.subr.bf16.mxu0 0
        %1262 = vmatpush1.bf16.msra.mxu0 %v1245
        %1263 = vmatprep.subr.bf16.mxu0 0
        %1264 = vmatpush1.bf16.msra.mxu0 %v1246
        %1265 = vmatprep.subr.bf16.mxu0 0
        %1266 = vmatpush1.bf16.msra.mxu0 %v1247
        %1267 = vmatprep.subr.bf16.mxu0 0
        %1268 = vmatpush1.bf16.msra.mxu0 %v1248
        %1269 = vmatprep.subr.bf16.mxu0 0
        %1270 = vmatpush1.bf16.msra.mxu0 %v1249
        %1271 = vmatprep.subr.bf16.mxu0 0
        %1272 = vmatpush1.bf16.msra.mxu0 %v1250
        %1273 = vmatprep.subr.bf16.mxu0 0
        %1274 = vmatpush1.bf16.msra.mxu0 %v1251
        %1275 = vmatprep.subr.bf16.mxu0 0
        %1276 = vmatpush1.bf16.msra.mxu0 %v1252
        %1277 = vmatprep.subr.bf16.mxu0 0
        %1278 = vmatpush1.bf16.msra.mxu0 0
        %1279 = vmatprep.subr.bf16.mxu0 0
        %1280 = vmatpush1.bf16.msra.mxu0 0
        %1281 = vmatprep.subr.bf16.mxu0 0
        %1282 = vmatpush1.bf16.msra.mxu0 0
        %1283 = vmatprep.subr.bf16.mxu0 0
        %1284 = vmatpush1.bf16.msra.mxu0 0
        %1285 = vmatprep.subr.bf16.mxu0 0
        %1286 = vmatpush1.bf16.msra.mxu0 0
        %1287 = vmatprep.subr.bf16.mxu0 0
        %1288 = vmatpush1.bf16.msra.mxu0 0
        %1289 = vmatprep.subr.bf16.mxu0 0
        %1290 = vmatpush1.bf16.msra.mxu0 0
        %1291 = vmatprep.subr.bf16.mxu0 0
        %1292 = vmatpush1.bf16.msra.mxu0 0
        %1293 = vmatprep.mubr.bf16.mxu0 0
        %1294 = vmatmul.mubr.bf16.gmra.mrb[0].mxu0 %v1205
        %v1295 = vpop.f32.mrb[0].mxu0
        %v1296 = vadd.f32 0.0, %v1295
        %v1297 = vpop.f32.mrb[0].mxu0
        %v1298 = vpop.f32.mrb[0].mxu0
        %v1299 = vadd.f32 0.0, %v1298
        %v1300 = vpop.f32.mrb[0].mxu0
        %1301 = vmatprep.mubr.bf16.mxu0 0
        %1302 = vmatmul.mubr.bf16.gmra.mrb[0].mxu0 %v1206
        %v1303 = vpop.f32.mrb[0].mxu0
        %v1304 = vadd.f32 0.0, %v1303
        %v1305 = vpop.f32.mrb[0].mxu0
        %v1306 = vpop.f32.mrb[0].mxu0
        %v1307 = vadd.f32 0.0, %v1306
        %v1308 = vpop.f32.mrb[0].mxu0
        %1309 = vmatprep.mubr.bf16.mxu0 0
        %1310 = vmatmul.mubr.bf16.gmra.mrb[0].mxu0 %v1207
        %v1311 = vpop.f32.mrb[0].mxu0
        %v1312 = vadd.f32 0.0, %v1311
        %v1313 = vpop.f32.mrb[0].mxu0
        %v1314 = vpop.f32.mrb[0].mxu0
        %v1315 = vadd.f32 0.0, %v1314
        %v1316 = vpop.f32.mrb[0].mxu0
        %1317 = vmatprep.mubr.bf16.mxu0 0
        %1318 = vmatmul.mubr.bf16.gmra.mrb[0].mxu0 %v1208
        %v1319 = vpop.f32.mrb[0].mxu0
        %v1320 = vadd.f32 0.0, %v1319
        %v1321 = vpop.f32.mrb[0].mxu0
        %v1322 = vpop.f32.mrb[0].mxu0
        %v1323 = vadd.f32 0.0, %v1322
        %v1324 = vpop.f32.mrb[0].mxu0
        %1325 = vdwg.mxu0
        %v1326 = vld [vmem:[#allocation3] sm:$0xff]
        %v1327 = vld [vmem:[#allocation3 + $0x8] sm:$0xff]
        %v1328 = vld [vmem:[#allocation3 + $0x10] sm:$0xff]
        %v1329 = vld [vmem:[#allocation3 + $0x18] sm:$0xff]
        %v1330 = vld [vmem:[#allocation3 + $0x20] sm:$0xff]
        %v1331 = vld [vmem:[#allocation3 + $0x28] sm:$0xff]
        %v1332 = vld [vmem:[#allocation3 + $0x30] sm:$0xff]
        %v1333 = vld [vmem:[#allocation3 + $0x38] sm:$0xff]
        %v1334 = vadd.f32 %v1326, %v1296
        %v1335 = vadd.f32 %v1327, %v1299
        %v1336 = vadd.f32 %v1328, %v1304
        %v1337 = vadd.f32 %v1329, %v1307
        %v1338 = vadd.f32 %v1330, %v1312
        %v1339 = vadd.f32 %v1331, %v1315
        %v1340 = vadd.f32 %v1332, %v1320
        %v1341 = vadd.f32 %v1333, %v1323
        %1342 = vst [vmem:[#allocation3] sm:$0xff] %v1334
        %1343 = vst [vmem:[#allocation3 + $0x8] sm:$0xff] %v1335
        %1344 = vst [vmem:[#allocation3 + $0x10] sm:$0xff] %v1336
        %1345 = vst [vmem:[#allocation3 + $0x18] sm:$0xff] %v1337
        %1346 = vst [vmem:[#allocation3 + $0x20] sm:$0xff] %v1338
        %1347 = vst [vmem:[#allocation3 + $0x28] sm:$0xff] %v1339
        %1348 = vst [vmem:[#allocation3 + $0x30] sm:$0xff] %v1340
        %1349 = vst [vmem:[#allocation3 + $0x38] sm:$0xff] %v1341
        %v1350 = vld [vmem:[%s441] sm:$0xf]
        %v1351 = vld [vmem:[%s441 + $0x8] sm:$0xf]
        %v1352 = vld [vmem:[%s441 + $0x10] sm:$0xf]
        %v1353 = vld [vmem:[%s441 + $0x18] sm:$0xf]
        %v1354 = vld [vmem:[%s441 + $0x20] sm:$0xf]
        %v1355 = vld [vmem:[%s441 + $0x28] sm:$0xf]
        %v1356 = vld [vmem:[%s441 + $0x30] sm:$0xf]
        %v1357 = vld [vmem:[%s441 + $0x38] sm:$0xf]
        %s1358 = scalar_lea.vmem [#allocation4], 192
        %v1359 = vld [vmem:[%s1358] sm:$0xf]
        %v1360 = vld [vmem:[%s1358 + $0x4] sm:$0xf]
        %v1361 = vld [vmem:[%s1358 + $0x8] sm:$0xf]
        %v1362 = vld [vmem:[%s1358 + $0xc] sm:$0xf]
        %v1363 = vld [vmem:[%s1358 + $0x10] sm:$0xf]
        %v1364 = vld [vmem:[%s1358 + $0x14] sm:$0xf]
        %v1365 = vld [vmem:[%s1358 + $0x18] sm:$0xf]
        %v1366 = vld [vmem:[%s1358 + $0x1c] sm:$0xf]
        %v1367 = vld [vmem:[%s1358 + $0x20] sm:$0xf]
        %v1368 = vld [vmem:[%s1358 + $0x24] sm:$0xf]
        %v1369 = vld [vmem:[%s1358 + $0x28] sm:$0xf]
        %v1370 = vld [vmem:[%s1358 + $0x2c] sm:$0xf]
        %v1371 = vld [vmem:[%s1358 + $0x30] sm:$0xf]
        %v1372 = vld [vmem:[%s1358 + $0x34] sm:$0xf]
        %v1373 = vld [vmem:[%s1358 + $0x38] sm:$0xf]
        %v1374 = vld [vmem:[%s1358 + $0x3c] sm:$0xf]
        %v1383 = vunpack.c.l.b16 %v1350
        %v1384 = vunpack.c.l.b16 %v1351
        %v1385 = vunpack.c.l.b16 %v1352
        %v1386 = vunpack.c.l.b16 %v1353
        %v1387 = vunpack.c.l.b16 %v1354
        %v1388 = vunpack.c.l.b16 %v1355
        %v1389 = vunpack.c.l.b16 %v1356
        %v1390 = vunpack.c.l.b16 %v1357
        %v1391 = vpack.c.b16 %v1384, %v1383
        %v1392 = vpack.c.b16 %v1386, %v1385
        %v1393 = vpack.c.b16 %v1388, %v1387
        %v1394 = vpack.c.b16 %v1390, %v1389
        %v1415 = vunpack.c.l.b16 %v1359
        %v1416 = vunpack.c.l.b16 %v1360
        %v1417 = vunpack.c.l.b16 %v1361
        %v1418 = vunpack.c.l.b16 %v1362
        %v1419 = vunpack.c.l.b16 %v1363
        %v1420 = vunpack.c.l.b16 %v1364
        %v1421 = vunpack.c.l.b16 %v1365
        %v1422 = vunpack.c.l.b16 %v1366
        %v1423 = vunpack.c.l.b16 %v1367
        %v1424 = vunpack.c.l.b16 %v1368
        %v1425 = vunpack.c.l.b16 %v1369
        %v1426 = vunpack.c.l.b16 %v1370
        %v1427 = vunpack.c.l.b16 %v1371
        %v1428 = vunpack.c.l.b16 %v1372
        %v1429 = vunpack.c.l.b16 %v1373
        %v1430 = vunpack.c.l.b16 %v1374
        %v1431 = vpack.c.b16 %v1416, %v1415
        %v1432 = vpack.c.b16 %v1418, %v1417
        %v1433 = vpack.c.b16 %v1420, %v1419
        %v1434 = vpack.c.b16 %v1422, %v1421
        %v1435 = vpack.c.b16 %v1424, %v1423
        %v1436 = vpack.c.b16 %v1426, %v1425
        %v1437 = vpack.c.b16 %v1428, %v1427
        %v1438 = vpack.c.b16 %v1430, %v1429
        %1447 = vmatprep.subr.bf16.mxu0 0
        %1448 = vmatpush1.bf16.msra.mxu0 %v1431
        %1449 = vmatprep.subr.bf16.mxu0 0
        %1450 = vmatpush1.bf16.msra.mxu0 %v1432
        %1451 = vmatprep.subr.bf16.mxu0 0
        %1452 = vmatpush1.bf16.msra.mxu0 %v1433
        %1453 = vmatprep.subr.bf16.mxu0 0
        %1454 = vmatpush1.bf16.msra.mxu0 %v1434
        %1455 = vmatprep.subr.bf16.mxu0 0
        %1456 = vmatpush1.bf16.msra.mxu0 %v1435
        %1457 = vmatprep.subr.bf16.mxu0 0
        %1458 = vmatpush1.bf16.msra.mxu0 %v1436
        %1459 = vmatprep.subr.bf16.mxu0 0
        %1460 = vmatpush1.bf16.msra.mxu0 %v1437
        %1461 = vmatprep.subr.bf16.mxu0 0
        %1462 = vmatpush1.bf16.msra.mxu0 %v1438
        %1463 = vmatprep.subr.bf16.mxu0 0
        %1464 = vmatpush1.bf16.msra.mxu0 0
        %1465 = vmatprep.subr.bf16.mxu0 0
        %1466 = vmatpush1.bf16.msra.mxu0 0
        %1467 = vmatprep.subr.bf16.mxu0 0
        %1468 = vmatpush1.bf16.msra.mxu0 0
        %1469 = vmatprep.subr.bf16.mxu0 0
        %1470 = vmatpush1.bf16.msra.mxu0 0
        %1471 = vmatprep.subr.bf16.mxu0 0
        %1472 = vmatpush1.bf16.msra.mxu0 0
        %1473 = vmatprep.subr.bf16.mxu0 0
        %1474 = vmatpush1.bf16.msra.mxu0 0
        %1475 = vmatprep.subr.bf16.mxu0 0
        %1476 = vmatpush1.bf16.msra.mxu0 0
        %1477 = vmatprep.subr.bf16.mxu0 0
        %1478 = vmatpush1.bf16.msra.mxu0 0
        %1479 = vmatprep.mubr.bf16.mxu0 0
        %1480 = vmatmul.mubr.bf16.gmra.mrb[0].mxu0 %v1391
        %v1481 = vpop.f32.mrb[0].mxu0
        %v1482 = vadd.f32 0.0, %v1481
        %v1483 = vpop.f32.mrb[0].mxu0
        %v1484 = vpop.f32.mrb[0].mxu0
        %v1485 = vadd.f32 0.0, %v1484
        %v1486 = vpop.f32.mrb[0].mxu0
        %1487 = vmatprep.mubr.bf16.mxu0 0
        %1488 = vmatmul.mubr.bf16.gmra.mrb[0].mxu0 %v1392
        %v1489 = vpop.f32.mrb[0].mxu0
        %v1490 = vadd.f32 0.0, %v1489
        %v1491 = vpop.f32.mrb[0].mxu0
        %v1492 = vpop.f32.mrb[0].mxu0
        %v1493 = vadd.f32 0.0, %v1492
        %v1494 = vpop.f32.mrb[0].mxu0
        %1495 = vmatprep.mubr.bf16.mxu0 0
        %1496 = vmatmul.mubr.bf16.gmra.mrb[0].mxu0 %v1393
        %v1497 = vpop.f32.mrb[0].mxu0
        %v1498 = vadd.f32 0.0, %v1497
        %v1499 = vpop.f32.mrb[0].mxu0
        %v1500 = vpop.f32.mrb[0].mxu0
        %v1501 = vadd.f32 0.0, %v1500
        %v1502 = vpop.f32.mrb[0].mxu0
        %1503 = vmatprep.mubr.bf16.mxu0 0
        %1504 = vmatmul.mubr.bf16.gmra.mrb[0].mxu0 %v1394
        %v1505 = vpop.f32.mrb[0].mxu0
        %v1506 = vadd.f32 0.0, %v1505
        %v1507 = vpop.f32.mrb[0].mxu0
        %v1508 = vpop.f32.mrb[0].mxu0
        %v1509 = vadd.f32 0.0, %v1508
        %v1510 = vpop.f32.mrb[0].mxu0
        %1511 = vdwg.mxu0
        %v1512 = vld [vmem:[#allocation3] sm:$0xff]
        %v1513 = vld [vmem:[#allocation3 + $0x8] sm:$0xff]
        %v1514 = vld [vmem:[#allocation3 + $0x10] sm:$0xff]
        %v1515 = vld [vmem:[#allocation3 + $0x18] sm:$0xff]
        %v1516 = vld [vmem:[#allocation3 + $0x20] sm:$0xff]
        %v1517 = vld [vmem:[#allocation3 + $0x28] sm:$0xff]
        %v1518 = vld [vmem:[#allocation3 + $0x30] sm:$0xff]
        %v1519 = vld [vmem:[#allocation3 + $0x38] sm:$0xff]
        %v1520 = vadd.f32 %v1512, %v1482
        %v1521 = vadd.f32 %v1513, %v1485
        %v1522 = vadd.f32 %v1514, %v1490
        %v1523 = vadd.f32 %v1515, %v1493
        %v1524 = vadd.f32 %v1516, %v1498
        %v1525 = vadd.f32 %v1517, %v1501
        %v1526 = vadd.f32 %v1518, %v1506
        %v1527 = vadd.f32 %v1519, %v1509
        %1528 = vst [vmem:[#allocation3] sm:$0xff] %v1520
        %1529 = vst [vmem:[#allocation3 + $0x8] sm:$0xff] %v1521
        %1530 = vst [vmem:[#allocation3 + $0x10] sm:$0xff] %v1522
        %1531 = vst [vmem:[#allocation3 + $0x18] sm:$0xff] %v1523
        %1532 = vst [vmem:[#allocation3 + $0x20] sm:$0xff] %v1524
        %1533 = vst [vmem:[#allocation3 + $0x28] sm:$0xff] %v1525
        %1534 = vst [vmem:[#allocation3 + $0x30] sm:$0xff] %v1526
        %1535 = vst [vmem:[#allocation3 + $0x38] sm:$0xff] %v1527
        %v1536 = vld [vmem:[%s441] sm:$0x1f]
        %v1537 = vld [vmem:[%s441 + $0x8] sm:$0x1f]
        %v1538 = vld [vmem:[%s441 + $0x10] sm:$0x1f]
        %v1539 = vld [vmem:[%s441 + $0x18] sm:$0x1f]
        %v1540 = vld [vmem:[%s441 + $0x20] sm:$0x1f]
        %v1541 = vld [vmem:[%s441 + $0x28] sm:$0x1f]
        %v1542 = vld [vmem:[%s441 + $0x30] sm:$0x1f]
        %v1543 = vld [vmem:[%s441 + $0x38] sm:$0x1f]
        %v1552 = vunpack.c.l.b16 %v1536
        %v1553 = vunpack.c.h.b16 %v1536
        %v1554 = vunpack.c.l.b16 %v1537
        %v1555 = vunpack.c.h.b16 %v1537
        %v1556 = vunpack.c.l.b16 %v1538
        %v1557 = vunpack.c.h.b16 %v1538
        %v1558 = vunpack.c.l.b16 %v1539
        %v1559 = vunpack.c.h.b16 %v1539
        %v1560 = vunpack.c.l.b16 %v1540
        %v1561 = vunpack.c.h.b16 %v1540
        %v1562 = vunpack.c.l.b16 %v1541
        %v1563 = vunpack.c.h.b16 %v1541
        %v1564 = vunpack.c.l.b16 %v1542
        %v1565 = vunpack.c.h.b16 %v1542
        %v1566 = vunpack.c.l.b16 %v1543
        %v1567 = vunpack.c.h.b16 %v1543
        %v1568 = vpack.c.b16 %v1552, %v1552
        %v1569 = vpack.c.b16 %v1553, %v1553
        %v1570 = vpack.c.b16 %v1554, %v1554
        %v1571 = vpack.c.b16 %v1555, %v1555
        %v1572 = vpack.c.b16 %v1556, %v1556
        %v1573 = vpack.c.b16 %v1557, %v1557
        %v1574 = vpack.c.b16 %v1558, %v1558
        %v1575 = vpack.c.b16 %v1559, %v1559
        %v1576 = vpack.c.b16 %v1560, %v1560
        %v1577 = vpack.c.b16 %v1561, %v1561
        %v1578 = vpack.c.b16 %v1562, %v1562
        %v1579 = vpack.c.b16 %v1563, %v1563
        %v1580 = vpack.c.b16 %v1564, %v1564
        %v1581 = vpack.c.b16 %v1565, %v1565
        %v1582 = vpack.c.b16 %v1566, %v1566
        %v1583 = vpack.c.b16 %v1567, %v1567
        %v1585 = vshrl.u32 %v1568, 16
        %v1587 = vrot.slane %v1585, 4
        %v1588 = vshll.u32 %v1568, 16
        %v1590 = vrot.slane %v1588, 5
        %v1591 = vor.u32 %v1587, %v1590
        %v1592 = vrot.slane %v1591, 4
        %v1594 = vshll.u32 %v1569, 16
        %v1596 = vrot.slane %v1594, 5
        %v1597 = vsel %vm814, %v1592, %v1596
        %v1599 = vshrl.u32 %v1570, 16
        %v1601 = vrot.slane %v1599, 4
        %v1602 = vshll.u32 %v1570, 16
        %v1604 = vrot.slane %v1602, 5
        %v1605 = vor.u32 %v1601, %v1604
        %v1606 = vrot.slane %v1605, 4
        %v1608 = vshll.u32 %v1571, 16
        %v1610 = vrot.slane %v1608, 5
        %v1611 = vsel %vm814, %v1606, %v1610
        %v1613 = vshrl.u32 %v1572, 16
        %v1615 = vrot.slane %v1613, 4
        %v1616 = vshll.u32 %v1572, 16
        %v1618 = vrot.slane %v1616, 5
        %v1619 = vor.u32 %v1615, %v1618
        %v1620 = vrot.slane %v1619, 4
        %v1622 = vshll.u32 %v1573, 16
        %v1624 = vrot.slane %v1622, 5
        %v1625 = vsel %vm814, %v1620, %v1624
        %v1627 = vshrl.u32 %v1574, 16
        %v1629 = vrot.slane %v1627, 4
        %v1630 = vshll.u32 %v1574, 16
        %v1632 = vrot.slane %v1630, 5
        %v1633 = vor.u32 %v1629, %v1632
        %v1634 = vrot.slane %v1633, 4
        %v1636 = vshll.u32 %v1575, 16
        %v1638 = vrot.slane %v1636, 5
        %v1639 = vsel %vm814, %v1634, %v1638
        %v1641 = vshrl.u32 %v1576, 16
        %v1643 = vrot.slane %v1641, 4
        %v1644 = vshll.u32 %v1576, 16
        %v1646 = vrot.slane %v1644, 5
        %v1647 = vor.u32 %v1643, %v1646
        %v1648 = vrot.slane %v1647, 4
        %v1650 = vshll.u32 %v1577, 16
        %v1652 = vrot.slane %v1650, 5
        %v1653 = vsel %vm814, %v1648, %v1652
        %v1655 = vshrl.u32 %v1578, 16
        %v1657 = vrot.slane %v1655, 4
        %v1658 = vshll.u32 %v1578, 16
        %v1660 = vrot.slane %v1658, 5
        %v1661 = vor.u32 %v1657, %v1660
        %v1662 = vrot.slane %v1661, 4
        %v1664 = vshll.u32 %v1579, 16
        %v1666 = vrot.slane %v1664, 5
        %v1667 = vsel %vm814, %v1662, %v1666
        %v1669 = vshrl.u32 %v1580, 16
        %v1671 = vrot.slane %v1669, 4
        %v1672 = vshll.u32 %v1580, 16
        %v1674 = vrot.slane %v1672, 5
        %v1675 = vor.u32 %v1671, %v1674
        %v1676 = vrot.slane %v1675, 4
        %v1678 = vshll.u32 %v1581, 16
        %v1680 = vrot.slane %v1678, 5
        %v1681 = vsel %vm814, %v1676, %v1680
        %v1683 = vshrl.u32 %v1582, 16
        %v1685 = vrot.slane %v1683, 4
        %v1686 = vshll.u32 %v1582, 16
        %v1688 = vrot.slane %v1686, 5
        %v1689 = vor.u32 %v1685, %v1688
        %v1690 = vrot.slane %v1689, 4
        %v1692 = vshll.u32 %v1583, 16
        %v1694 = vrot.slane %v1692, 5
        %v1695 = vsel %vm814, %v1690, %v1694
        %s1696 = scalar_lea.vmem [#allocation4], 256
        %v1697 = vld [vmem:[%s1696] sm:$0xf]
        %v1698 = vld [vmem:[%s1696 + $0x4] sm:$0xf]
        %v1699 = vld [vmem:[%s1696 + $0x8] sm:$0xf]
        %v1700 = vld [vmem:[%s1696 + $0xc] sm:$0xf]
        %v1701 = vld [vmem:[%s1696 + $0x10] sm:$0xf]
        %v1702 = vld [vmem:[%s1696 + $0x14] sm:$0xf]
        %v1703 = vld [vmem:[%s1696 + $0x18] sm:$0xf]
        %v1704 = vld [vmem:[%s1696 + $0x1c] sm:$0xf]
        %v1705 = vld [vmem:[%s1696 + $0x20] sm:$0xf]
        %v1706 = vld [vmem:[%s1696 + $0x24] sm:$0xf]
        %v1707 = vld [vmem:[%s1696 + $0x28] sm:$0xf]
        %v1708 = vld [vmem:[%s1696 + $0x2c] sm:$0xf]
        %v1709 = vld [vmem:[%s1696 + $0x30] sm:$0xf]
        %v1710 = vld [vmem:[%s1696 + $0x34] sm:$0xf]
        %v1711 = vld [vmem:[%s1696 + $0x38] sm:$0xf]
        %v1712 = vld [vmem:[%s1696 + $0x3c] sm:$0xf]
        %v1713 = vunpack.c.l.b16 %v1597
        %v1714 = vunpack.c.l.b16 %v1611
        %v1715 = vunpack.c.l.b16 %v1625
        %v1716 = vunpack.c.l.b16 %v1639
        %v1717 = vunpack.c.l.b16 %v1653
        %v1718 = vunpack.c.l.b16 %v1667
        %v1719 = vunpack.c.l.b16 %v1681
        %v1720 = vunpack.c.l.b16 %v1695
        %v1721 = vpack.c.b16 %v1714, %v1713
        %v1722 = vpack.c.b16 %v1716, %v1715
        %v1723 = vpack.c.b16 %v1718, %v1717
        %v1724 = vpack.c.b16 %v1720, %v1719
        %v1745 = vunpack.c.l.b16 %v1697
        %v1746 = vunpack.c.l.b16 %v1698
        %v1747 = vunpack.c.l.b16 %v1699
        %v1748 = vunpack.c.l.b16 %v1700
        %v1749 = vunpack.c.l.b16 %v1701
        %v1750 = vunpack.c.l.b16 %v1702
        %v1751 = vunpack.c.l.b16 %v1703
        %v1752 = vunpack.c.l.b16 %v1704
        %v1753 = vunpack.c.l.b16 %v1705
        %v1754 = vunpack.c.l.b16 %v1706
        %v1755 = vunpack.c.l.b16 %v1707
        %v1756 = vunpack.c.l.b16 %v1708
        %v1757 = vunpack.c.l.b16 %v1709
        %v1758 = vunpack.c.l.b16 %v1710
        %v1759 = vunpack.c.l.b16 %v1711
        %v1760 = vunpack.c.l.b16 %v1712
        %v1761 = vpack.c.b16 %v1746, %v1745
        %v1762 = vpack.c.b16 %v1748, %v1747
        %v1763 = vpack.c.b16 %v1750, %v1749
        %v1764 = vpack.c.b16 %v1752, %v1751
        %v1765 = vpack.c.b16 %v1754, %v1753
        %v1766 = vpack.c.b16 %v1756, %v1755
        %v1767 = vpack.c.b16 %v1758, %v1757
        %v1768 = vpack.c.b16 %v1760, %v1759
        %1777 = vmatprep.subr.bf16.mxu0 0
        %1778 = vmatpush1.bf16.msra.mxu0 %v1761
        %1779 = vmatprep.subr.bf16.mxu0 0
        %1780 = vmatpush1.bf16.msra.mxu0 %v1762
        %1781 = vmatprep.subr.bf16.mxu0 0
        %1782 = vmatpush1.bf16.msra.mxu0 %v1763
        %1783 = vmatprep.subr.bf16.mxu0 0
        %1784 = vmatpush1.bf16.msra.mxu0 %v1764
        %1785 = vmatprep.subr.bf16.mxu0 0
        %1786 = vmatpush1.bf16.msra.mxu0 %v1765
        %1787 = vmatprep.subr.bf16.mxu0 0
        %1788 = vmatpush1.bf16.msra.mxu0 %v1766
        %1789 = vmatprep.subr.bf16.mxu0 0
        %1790 = vmatpush1.bf16.msra.mxu0 %v1767
        %1791 = vmatprep.subr.bf16.mxu0 0
        %1792 = vmatpush1.bf16.msra.mxu0 %v1768
        %1793 = vmatprep.subr.bf16.mxu0 0
        %1794 = vmatpush1.bf16.msra.mxu0 0
        %1795 = vmatprep.subr.bf16.mxu0 0
        %1796 = vmatpush1.bf16.msra.mxu0 0
        %1797 = vmatprep.subr.bf16.mxu0 0
        %1798 = vmatpush1.bf16.msra.mxu0 0
        %1799 = vmatprep.subr.bf16.mxu0 0
        %1800 = vmatpush1.bf16.msra.mxu0 0
        %1801 = vmatprep.subr.bf16.mxu0 0
        %1802 = vmatpush1.bf16.msra.mxu0 0
        %1803 = vmatprep.subr.bf16.mxu0 0
        %1804 = vmatpush1.bf16.msra.mxu0 0
        %1805 = vmatprep.subr.bf16.mxu0 0
        %1806 = vmatpush1.bf16.msra.mxu0 0
        %1807 = vmatprep.subr.bf16.mxu0 0
        %1808 = vmatpush1.bf16.msra.mxu0 0
        %1809 = vmatprep.mubr.bf16.mxu0 0
        %1810 = vmatmul.mubr.bf16.gmra.mrb[0].mxu0 %v1721
        %v1811 = vpop.f32.mrb[0].mxu0
        %v1812 = vadd.f32 0.0, %v1811
        %v1813 = vpop.f32.mrb[0].mxu0
        %v1814 = vpop.f32.mrb[0].mxu0
        %v1815 = vadd.f32 0.0, %v1814
        %v1816 = vpop.f32.mrb[0].mxu0
        %1817 = vmatprep.mubr.bf16.mxu0 0
        %1818 = vmatmul.mubr.bf16.gmra.mrb[0].mxu0 %v1722
        %v1819 = vpop.f32.mrb[0].mxu0
        %v1820 = vadd.f32 0.0, %v1819
        %v1821 = vpop.f32.mrb[0].mxu0
        %v1822 = vpop.f32.mrb[0].mxu0
        %v1823 = vadd.f32 0.0, %v1822
        %v1824 = vpop.f32.mrb[0].mxu0
        %1825 = vmatprep.mubr.bf16.mxu0 0
        %1826 = vmatmul.mubr.bf16.gmra.mrb[0].mxu0 %v1723
        %v1827 = vpop.f32.mrb[0].mxu0
        %v1828 = vadd.f32 0.0, %v1827
        %v1829 = vpop.f32.mrb[0].mxu0
        %v1830 = vpop.f32.mrb[0].mxu0
        %v1831 = vadd.f32 0.0, %v1830
        %v1832 = vpop.f32.mrb[0].mxu0
        %1833 = vmatprep.mubr.bf16.mxu0 0
        %1834 = vmatmul.mubr.bf16.gmra.mrb[0].mxu0 %v1724
        %v1835 = vpop.f32.mrb[0].mxu0
        %v1836 = vadd.f32 0.0, %v1835
        %v1837 = vpop.f32.mrb[0].mxu0
        %v1838 = vpop.f32.mrb[0].mxu0
        %v1839 = vadd.f32 0.0, %v1838
        %v1840 = vpop.f32.mrb[0].mxu0
        %1841 = vdwg.mxu0
        %v1842 = vld [vmem:[#allocation3] sm:$0xff]
        %v1843 = vld [vmem:[#allocation3 + $0x8] sm:$0xff]
        %v1844 = vld [vmem:[#allocation3 + $0x10] sm:$0xff]
        %v1845 = vld [vmem:[#allocation3 + $0x18] sm:$0xff]
        %v1846 = vld [vmem:[#allocation3 + $0x20] sm:$0xff]
        %v1847 = vld [vmem:[#allocation3 + $0x28] sm:$0xff]
        %v1848 = vld [vmem:[#allocation3 + $0x30] sm:$0xff]
        %v1849 = vld [vmem:[#allocation3 + $0x38] sm:$0xff]
        %v1850 = vadd.f32 %v1842, %v1812
        %v1851 = vadd.f32 %v1843, %v1815
        %v1852 = vadd.f32 %v1844, %v1820
        %v1853 = vadd.f32 %v1845, %v1823
        %v1854 = vadd.f32 %v1846, %v1828
        %v1855 = vadd.f32 %v1847, %v1831
        %v1856 = vadd.f32 %v1848, %v1836
        %v1857 = vadd.f32 %v1849, %v1839
        %1858 = vst [vmem:[#allocation3] sm:$0xff] %v1850
        %1859 = vst [vmem:[#allocation3 + $0x8] sm:$0xff] %v1851
        %1860 = vst [vmem:[#allocation3 + $0x10] sm:$0xff] %v1852
        %1861 = vst [vmem:[#allocation3 + $0x18] sm:$0xff] %v1853
        %1862 = vst [vmem:[#allocation3 + $0x20] sm:$0xff] %v1854
        %1863 = vst [vmem:[#allocation3 + $0x28] sm:$0xff] %v1855
        %1864 = vst [vmem:[#allocation3 + $0x30] sm:$0xff] %v1856
        %1865 = vst [vmem:[#allocation3 + $0x38] sm:$0xff] %v1857
        %v1866 = vld [vmem:[%s441] sm:$0x1e]
        %v1867 = vld [vmem:[%s441 + $0x8] sm:$0x1e]
        %v1868 = vld [vmem:[%s441 + $0x10] sm:$0x1e]
        %v1869 = vld [vmem:[%s441 + $0x18] sm:$0x1e]
        %v1870 = vld [vmem:[%s441 + $0x20] sm:$0x1e]
        %v1871 = vld [vmem:[%s441 + $0x28] sm:$0x1e]
        %v1872 = vld [vmem:[%s441 + $0x30] sm:$0x1e]
        %v1873 = vld [vmem:[%s441 + $0x38] sm:$0x1e]
        %v1882 = vunpack.c.l.b16 %v1866
        %v1883 = vunpack.c.h.b16 %v1866
        %v1884 = vunpack.c.l.b16 %v1867
        %v1885 = vunpack.c.h.b16 %v1867
        %v1886 = vunpack.c.l.b16 %v1868
        %v1887 = vunpack.c.h.b16 %v1868
        %v1888 = vunpack.c.l.b16 %v1869
        %v1889 = vunpack.c.h.b16 %v1869
        %v1890 = vunpack.c.l.b16 %v1870
        %v1891 = vunpack.c.h.b16 %v1870
        %v1892 = vunpack.c.l.b16 %v1871
        %v1893 = vunpack.c.h.b16 %v1871
        %v1894 = vunpack.c.l.b16 %v1872
        %v1895 = vunpack.c.h.b16 %v1872
        %v1896 = vunpack.c.l.b16 %v1873
        %v1897 = vunpack.c.h.b16 %v1873
        %v1898 = vpack.c.b16 %v1882, %v1882
        %v1899 = vpack.c.b16 %v1883, %v1883
        %v1900 = vpack.c.b16 %v1884, %v1884
        %v1901 = vpack.c.b16 %v1885, %v1885
        %v1902 = vpack.c.b16 %v1886, %v1886
        %v1903 = vpack.c.b16 %v1887, %v1887
        %v1904 = vpack.c.b16 %v1888, %v1888
        %v1905 = vpack.c.b16 %v1889, %v1889
        %v1906 = vpack.c.b16 %v1890, %v1890
        %v1907 = vpack.c.b16 %v1891, %v1891
        %v1908 = vpack.c.b16 %v1892, %v1892
        %v1909 = vpack.c.b16 %v1893, %v1893
        %v1910 = vpack.c.b16 %v1894, %v1894
        %v1911 = vpack.c.b16 %v1895, %v1895
        %v1912 = vpack.c.b16 %v1896, %v1896
        %v1913 = vpack.c.b16 %v1897, %v1897
        %v1914 = vrot.slane %v1898, 5
        %v1915 = vrot.slane %v1914, 4
        %v1916 = vrot.slane %v1899, 5
        %v1917 = vsel %vm1147, %v1915, %v1916
        %v1918 = vrot.slane %v1900, 5
        %v1919 = vrot.slane %v1918, 4
        %v1920 = vrot.slane %v1901, 5
        %v1921 = vsel %vm1147, %v1919, %v1920
        %v1922 = vrot.slane %v1902, 5
        %v1923 = vrot.slane %v1922, 4
        %v1924 = vrot.slane %v1903, 5
        %v1925 = vsel %vm1147, %v1923, %v1924
        %v1926 = vrot.slane %v1904, 5
        %v1927 = vrot.slane %v1926, 4
        %v1928 = vrot.slane %v1905, 5
        %v1929 = vsel %vm1147, %v1927, %v1928
        %v1930 = vrot.slane %v1906, 5
        %v1931 = vrot.slane %v1930, 4
        %v1932 = vrot.slane %v1907, 5
        %v1933 = vsel %vm1147, %v1931, %v1932
        %v1934 = vrot.slane %v1908, 5
        %v1935 = vrot.slane %v1934, 4
        %v1936 = vrot.slane %v1909, 5
        %v1937 = vsel %vm1147, %v1935, %v1936
        %v1938 = vrot.slane %v1910, 5
        %v1939 = vrot.slane %v1938, 4
        %v1940 = vrot.slane %v1911, 5
        %v1941 = vsel %vm1147, %v1939, %v1940
        %v1942 = vrot.slane %v1912, 5
        %v1943 = vrot.slane %v1942, 4
        %v1944 = vrot.slane %v1913, 5
        %v1945 = vsel %vm1147, %v1943, %v1944
        %s1946 = scalar_lea.vmem [#allocation4], 320
        %v1947 = vld [vmem:[%s1946] sm:$0xf]
        %v1948 = vld [vmem:[%s1946 + $0x4] sm:$0xf]
        %v1949 = vld [vmem:[%s1946 + $0x8] sm:$0xf]
        %v1950 = vld [vmem:[%s1946 + $0xc] sm:$0xf]
        %v1951 = vld [vmem:[%s1946 + $0x10] sm:$0xf]
        %v1952 = vld [vmem:[%s1946 + $0x14] sm:$0xf]
        %v1953 = vld [vmem:[%s1946 + $0x18] sm:$0xf]
        %v1954 = vld [vmem:[%s1946 + $0x1c] sm:$0xf]
        %v1955 = vld [vmem:[%s1946 + $0x20] sm:$0xf]
        %v1956 = vld [vmem:[%s1946 + $0x24] sm:$0xf]
        %v1957 = vld [vmem:[%s1946 + $0x28] sm:$0xf]
        %v1958 = vld [vmem:[%s1946 + $0x2c] sm:$0xf]
        %v1959 = vld [vmem:[%s1946 + $0x30] sm:$0xf]
        %v1960 = vld [vmem:[%s1946 + $0x34] sm:$0xf]
        %v1961 = vld [vmem:[%s1946 + $0x38] sm:$0xf]
        %v1962 = vld [vmem:[%s1946 + $0x3c] sm:$0xf]
        %v1963 = vunpack.c.l.b16 %v1917
        %v1964 = vunpack.c.l.b16 %v1921
        %v1965 = vunpack.c.l.b16 %v1925
        %v1966 = vunpack.c.l.b16 %v1929
        %v1967 = vunpack.c.l.b16 %v1933
        %v1968 = vunpack.c.l.b16 %v1937
        %v1969 = vunpack.c.l.b16 %v1941
        %v1970 = vunpack.c.l.b16 %v1945
        %v1971 = vpack.c.b16 %v1964, %v1963
        %v1972 = vpack.c.b16 %v1966, %v1965
        %v1973 = vpack.c.b16 %v1968, %v1967
        %v1974 = vpack.c.b16 %v1970, %v1969
        %v1995 = vunpack.c.l.b16 %v1947
        %v1996 = vunpack.c.l.b16 %v1948
        %v1997 = vunpack.c.l.b16 %v1949
        %v1998 = vunpack.c.l.b16 %v1950
        %v1999 = vunpack.c.l.b16 %v1951
        %v2000 = vunpack.c.l.b16 %v1952
        %v2001 = vunpack.c.l.b16 %v1953
        %v2002 = vunpack.c.l.b16 %v1954
        %v2003 = vunpack.c.l.b16 %v1955
        %v2004 = vunpack.c.l.b16 %v1956
        %v2005 = vunpack.c.l.b16 %v1957
        %v2006 = vunpack.c.l.b16 %v1958
        %v2007 = vunpack.c.l.b16 %v1959
        %v2008 = vunpack.c.l.b16 %v1960
        %v2009 = vunpack.c.l.b16 %v1961
        %v2010 = vunpack.c.l.b16 %v1962
        %v2011 = vpack.c.b16 %v1996, %v1995
        %v2012 = vpack.c.b16 %v1998, %v1997
        %v2013 = vpack.c.b16 %v2000, %v1999
        %v2014 = vpack.c.b16 %v2002, %v2001
        %v2015 = vpack.c.b16 %v2004, %v2003
        %v2016 = vpack.c.b16 %v2006, %v2005
        %v2017 = vpack.c.b16 %v2008, %v2007
        %v2018 = vpack.c.b16 %v2010, %v2009
        %2027 = vmatprep.subr.bf16.mxu0 0
        %2028 = vmatpush1.bf16.msra.mxu0 %v2011
        %2029 = vmatprep.subr.bf16.mxu0 0
        %2030 = vmatpush1.bf16.msra.mxu0 %v2012
        %2031 = vmatprep.subr.bf16.mxu0 0
        %2032 = vmatpush1.bf16.msra.mxu0 %v2013
        %2033 = vmatprep.subr.bf16.mxu0 0
        %2034 = vmatpush1.bf16.msra.mxu0 %v2014
        %2035 = vmatprep.subr.bf16.mxu0 0
        %2036 = vmatpush1.bf16.msra.mxu0 %v2015
        %2037 = vmatprep.subr.bf16.mxu0 0
        %2038 = vmatpush1.bf16.msra.mxu0 %v2016
        %2039 = vmatprep.subr.bf16.mxu0 0
        %2040 = vmatpush1.bf16.msra.mxu0 %v2017
        %2041 = vmatprep.subr.bf16.mxu0 0
        %2042 = vmatpush1.bf16.msra.mxu0 %v2018
        %2043 = vmatprep.subr.bf16.mxu0 0
        %2044 = vmatpush1.bf16.msra.mxu0 0
        %2045 = vmatprep.subr.bf16.mxu0 0
        %2046 = vmatpush1.bf16.msra.mxu0 0
        %2047 = vmatprep.subr.bf16.mxu0 0
        %2048 = vmatpush1.bf16.msra.mxu0 0
        %2049 = vmatprep.subr.bf16.mxu0 0
        %2050 = vmatpush1.bf16.msra.mxu0 0
        %2051 = vmatprep.subr.bf16.mxu0 0
        %2052 = vmatpush1.bf16.msra.mxu0 0
        %2053 = vmatprep.subr.bf16.mxu0 0
        %2054 = vmatpush1.bf16.msra.mxu0 0
        %2055 = vmatprep.subr.bf16.mxu0 0
        %2056 = vmatpush1.bf16.msra.mxu0 0
        %2057 = vmatprep.subr.bf16.mxu0 0
        %2058 = vmatpush1.bf16.msra.mxu0 0
        %2059 = vmatprep.mubr.bf16.mxu0 0
        %2060 = vmatmul.mubr.bf16.gmra.mrb[0].mxu0 %v1971
        %v2061 = vpop.f32.mrb[0].mxu0
        %v2062 = vadd.f32 0.0, %v2061
        %v2063 = vpop.f32.mrb[0].mxu0
        %v2064 = vpop.f32.mrb[0].mxu0
        %v2065 = vadd.f32 0.0, %v2064
        %v2066 = vpop.f32.mrb[0].mxu0
        %2067 = vmatprep.mubr.bf16.mxu0 0
        %2068 = vmatmul.mubr.bf16.gmra.mrb[0].mxu0 %v1972
        %v2069 = vpop.f32.mrb[0].mxu0
        %v2070 = vadd.f32 0.0, %v2069
        %v2071 = vpop.f32.mrb[0].mxu0
        %v2072 = vpop.f32.mrb[0].mxu0
        %v2073 = vadd.f32 0.0, %v2072
        %v2074 = vpop.f32.mrb[0].mxu0
        %2075 = vmatprep.mubr.bf16.mxu0 0
        %2076 = vmatmul.mubr.bf16.gmra.mrb[0].mxu0 %v1973
        %v2077 = vpop.f32.mrb[0].mxu0
        %v2078 = vadd.f32 0.0, %v2077
        %v2079 = vpop.f32.mrb[0].mxu0
        %v2080 = vpop.f32.mrb[0].mxu0
        %v2081 = vadd.f32 0.0, %v2080
        %v2082 = vpop.f32.mrb[0].mxu0
        %2083 = vmatprep.mubr.bf16.mxu0 0
        %2084 = vmatmul.mubr.bf16.gmra.mrb[0].mxu0 %v1974
        %v2085 = vpop.f32.mrb[0].mxu0
        %v2086 = vadd.f32 0.0, %v2085
        %v2087 = vpop.f32.mrb[0].mxu0
        %v2088 = vpop.f32.mrb[0].mxu0
        %v2089 = vadd.f32 0.0, %v2088
        %v2090 = vpop.f32.mrb[0].mxu0
        %2091 = vdwg.mxu0
        %v2092 = vld [vmem:[#allocation3] sm:$0xff]
        %v2093 = vld [vmem:[#allocation3 + $0x8] sm:$0xff]
        %v2094 = vld [vmem:[#allocation3 + $0x10] sm:$0xff]
        %v2095 = vld [vmem:[#allocation3 + $0x18] sm:$0xff]
        %v2096 = vld [vmem:[#allocation3 + $0x20] sm:$0xff]
        %v2097 = vld [vmem:[#allocation3 + $0x28] sm:$0xff]
        %v2098 = vld [vmem:[#allocation3 + $0x30] sm:$0xff]
        %v2099 = vld [vmem:[#allocation3 + $0x38] sm:$0xff]
        %v2100 = vadd.f32 %v2092, %v2062
        %v2101 = vadd.f32 %v2093, %v2065
        %v2102 = vadd.f32 %v2094, %v2070
        %v2103 = vadd.f32 %v2095, %v2073
        %v2104 = vadd.f32 %v2096, %v2078
        %v2105 = vadd.f32 %v2097, %v2081
        %v2106 = vadd.f32 %v2098, %v2086
        %v2107 = vadd.f32 %v2099, %v2089
        %2108 = vst [vmem:[#allocation3] sm:$0xff] %v2100
        %2109 = vst [vmem:[#allocation3 + $0x8] sm:$0xff] %v2101
        %2110 = vst [vmem:[#allocation3 + $0x10] sm:$0xff] %v2102
        %2111 = vst [vmem:[#allocation3 + $0x18] sm:$0xff] %v2103
        %2112 = vst [vmem:[#allocation3 + $0x20] sm:$0xff] %v2104
        %2113 = vst [vmem:[#allocation3 + $0x28] sm:$0xff] %v2105
        %2114 = vst [vmem:[#allocation3 + $0x30] sm:$0xff] %v2106
        %2115 = vst [vmem:[#allocation3 + $0x38] sm:$0xff] %v2107
        %s2116 = scalar_lea.vmem [#allocation2], 16
        %v2117 = vld [vmem:[%s2116] sm:$0xf]
        %v2118 = vld [vmem:[%s2116 + $0x8] sm:$0xf]
        %v2119 = vld [vmem:[%s2116 + $0x10] sm:$0xf]
        %v2120 = vld [vmem:[%s2116 + $0x18] sm:$0xf]
        %v2121 = vld [vmem:[%s2116 + $0x20] sm:$0xf]
        %v2122 = vld [vmem:[%s2116 + $0x28] sm:$0xf]
        %v2123 = vld [vmem:[%s2116 + $0x30] sm:$0xf]
        %v2124 = vld [vmem:[%s2116 + $0x38] sm:$0xf]
        %s2125 = scalar_lea.vmem [#allocation4], 384
        %v2126 = vld [vmem:[%s2125] sm:$0xf]
        %v2127 = vld [vmem:[%s2125 + $0x4] sm:$0xf]
        %v2128 = vld [vmem:[%s2125 + $0x8] sm:$0xf]
        %v2129 = vld [vmem:[%s2125 + $0xc] sm:$0xf]
        %v2130 = vld [vmem:[%s2125 + $0x10] sm:$0xf]
        %v2131 = vld [vmem:[%s2125 + $0x14] sm:$0xf]
        %v2132 = vld [vmem:[%s2125 + $0x18] sm:$0xf]
        %v2133 = vld [vmem:[%s2125 + $0x1c] sm:$0xf]
        %v2134 = vld [vmem:[%s2125 + $0x20] sm:$0xf]
        %v2135 = vld [vmem:[%s2125 + $0x24] sm:$0xf]
        %v2136 = vld [vmem:[%s2125 + $0x28] sm:$0xf]
        %v2137 = vld [vmem:[%s2125 + $0x2c] sm:$0xf]
        %v2138 = vld [vmem:[%s2125 + $0x30] sm:$0xf]
        %v2139 = vld [vmem:[%s2125 + $0x34] sm:$0xf]
        %v2140 = vld [vmem:[%s2125 + $0x38] sm:$0xf]
        %v2141 = vld [vmem:[%s2125 + $0x3c] sm:$0xf]
        %v2150 = vunpack.c.l.b16 %v2117
        %v2151 = vunpack.c.l.b16 %v2118
        %v2152 = vunpack.c.l.b16 %v2119
        %v2153 = vunpack.c.l.b16 %v2120
        %v2154 = vunpack.c.l.b16 %v2121
        %v2155 = vunpack.c.l.b16 %v2122
        %v2156 = vunpack.c.l.b16 %v2123
        %v2157 = vunpack.c.l.b16 %v2124
        %v2158 = vpack.c.b16 %v2151, %v2150
        %v2159 = vpack.c.b16 %v2153, %v2152
        %v2160 = vpack.c.b16 %v2155, %v2154
        %v2161 = vpack.c.b16 %v2157, %v2156
        %v2182 = vunpack.c.l.b16 %v2126
        %v2183 = vunpack.c.l.b16 %v2127
        %v2184 = vunpack.c.l.b16 %v2128
        %v2185 = vunpack.c.l.b16 %v2129
        %v2186 = vunpack.c.l.b16 %v2130
        %v2187 = vunpack.c.l.b16 %v2131
        %v2188 = vunpack.c.l.b16 %v2132
        %v2189 = vunpack.c.l.b16 %v2133
        %v2190 = vunpack.c.l.b16 %v2134
        %v2191 = vunpack.c.l.b16 %v2135
        %v2192 = vunpack.c.l.b16 %v2136
        %v2193 = vunpack.c.l.b16 %v2137
        %v2194 = vunpack.c.l.b16 %v2138
        %v2195 = vunpack.c.l.b16 %v2139
        %v2196 = vunpack.c.l.b16 %v2140
        %v2197 = vunpack.c.l.b16 %v2141
        %v2198 = vpack.c.b16 %v2183, %v2182
        %v2199 = vpack.c.b16 %v2185, %v2184
        %v2200 = vpack.c.b16 %v2187, %v2186
        %v2201 = vpack.c.b16 %v2189, %v2188
        %v2202 = vpack.c.b16 %v2191, %v2190
        %v2203 = vpack.c.b16 %v2193, %v2192
        %v2204 = vpack.c.b16 %v2195, %v2194
        %v2205 = vpack.c.b16 %v2197, %v2196
        %2214 = vmatprep.subr.bf16.mxu0 0
        %2215 = vmatpush1.bf16.msra.mxu0 %v2198
        %2216 = vmatprep.subr.bf16.mxu0 0
        %2217 = vmatpush1.bf16.msra.mxu0 %v2199
        %2218 = vmatprep.subr.bf16.mxu0 0
        %2219 = vmatpush1.bf16.msra.mxu0 %v2200
        %2220 = vmatprep.subr.bf16.mxu0 0
        %2221 = vmatpush1.bf16.msra.mxu0 %v2201
        %2222 = vmatprep.subr.bf16.mxu0 0
        %2223 = vmatpush1.bf16.msra.mxu0 %v2202
        %2224 = vmatprep.subr.bf16.mxu0 0
        %2225 = vmatpush1.bf16.msra.mxu0 %v2203
        %2226 = vmatprep.subr.bf16.mxu0 0
        %2227 = vmatpush1.bf16.msra.mxu0 %v2204
        %2228 = vmatprep.subr.bf16.mxu0 0
        %2229 = vmatpush1.bf16.msra.mxu0 %v2205
        %2230 = vmatprep.subr.bf16.mxu0 0
        %2231 = vmatpush1.bf16.msra.mxu0 0
        %2232 = vmatprep.subr.bf16.mxu0 0
        %2233 = vmatpush1.bf16.msra.mxu0 0
        %2234 = vmatprep.subr.bf16.mxu0 0
        %2235 = vmatpush1.bf16.msra.mxu0 0
        %2236 = vmatprep.subr.bf16.mxu0 0
        %2237 = vmatpush1.bf16.msra.mxu0 0
        %2238 = vmatprep.subr.bf16.mxu0 0
        %2239 = vmatpush1.bf16.msra.mxu0 0
        %2240 = vmatprep.subr.bf16.mxu0 0
        %2241 = vmatpush1.bf16.msra.mxu0 0
        %2242 = vmatprep.subr.bf16.mxu0 0
        %2243 = vmatpush1.bf16.msra.mxu0 0
        %2244 = vmatprep.subr.bf16.mxu0 0
        %2245 = vmatpush1.bf16.msra.mxu0 0
        %2246 = vmatprep.mubr.bf16.mxu0 0
        %2247 = vmatmul.mubr.bf16.gmra.mrb[0].mxu0 %v2158
        %v2248 = vpop.f32.mrb[0].mxu0
        %v2249 = vadd.f32 0.0, %v2248
        %v2250 = vpop.f32.mrb[0].mxu0
        %v2251 = vpop.f32.mrb[0].mxu0
        %v2252 = vadd.f32 0.0, %v2251
        %v2253 = vpop.f32.mrb[0].mxu0
        %2254 = vmatprep.mubr.bf16.mxu0 0
        %2255 = vmatmul.mubr.bf16.gmra.mrb[0].mxu0 %v2159
        %v2256 = vpop.f32.mrb[0].mxu0
        %v2257 = vadd.f32 0.0, %v2256
        %v2258 = vpop.f32.mrb[0].mxu0
        %v2259 = vpop.f32.mrb[0].mxu0
        %v2260 = vadd.f32 0.0, %v2259
        %v2261 = vpop.f32.mrb[0].mxu0
        %2262 = vmatprep.mubr.bf16.mxu0 0
        %2263 = vmatmul.mubr.bf16.gmra.mrb[0].mxu0 %v2160
        %v2264 = vpop.f32.mrb[0].mxu0
        %v2265 = vadd.f32 0.0, %v2264
        %v2266 = vpop.f32.mrb[0].mxu0
        %v2267 = vpop.f32.mrb[0].mxu0
        %v2268 = vadd.f32 0.0, %v2267
        %v2269 = vpop.f32.mrb[0].mxu0
        %2270 = vmatprep.mubr.bf16.mxu0 0
        %2271 = vmatmul.mubr.bf16.gmra.mrb[0].mxu0 %v2161
        %v2272 = vpop.f32.mrb[0].mxu0
        %v2273 = vadd.f32 0.0, %v2272
        %v2274 = vpop.f32.mrb[0].mxu0
        %v2275 = vpop.f32.mrb[0].mxu0
        %v2276 = vadd.f32 0.0, %v2275
        %v2277 = vpop.f32.mrb[0].mxu0
        %2278 = vdwg.mxu0
        %v2279 = vld [vmem:[#allocation3] sm:$0xff]
        %v2280 = vld [vmem:[#allocation3 + $0x8] sm:$0xff]
        %v2281 = vld [vmem:[#allocation3 + $0x10] sm:$0xff]
        %v2282 = vld [vmem:[#allocation3 + $0x18] sm:$0xff]
        %v2283 = vld [vmem:[#allocation3 + $0x20] sm:$0xff]
        %v2284 = vld [vmem:[#allocation3 + $0x28] sm:$0xff]
        %v2285 = vld [vmem:[#allocation3 + $0x30] sm:$0xff]
        %v2286 = vld [vmem:[#allocation3 + $0x38] sm:$0xff]
        %v2287 = vadd.f32 %v2279, %v2249
        %v2288 = vadd.f32 %v2280, %v2252
        %v2289 = vadd.f32 %v2281, %v2257
        %v2290 = vadd.f32 %v2282, %v2260
        %v2291 = vadd.f32 %v2283, %v2265
        %v2292 = vadd.f32 %v2284, %v2268
        %v2293 = vadd.f32 %v2285, %v2273
        %v2294 = vadd.f32 %v2286, %v2276
        %2295 = vst [vmem:[#allocation3] sm:$0xff] %v2287
        %2296 = vst [vmem:[#allocation3 + $0x8] sm:$0xff] %v2288
        %2297 = vst [vmem:[#allocation3 + $0x10] sm:$0xff] %v2289
        %2298 = vst [vmem:[#allocation3 + $0x18] sm:$0xff] %v2290
        %2299 = vst [vmem:[#allocation3 + $0x20] sm:$0xff] %v2291
        %2300 = vst [vmem:[#allocation3 + $0x28] sm:$0xff] %v2292
        %2301 = vst [vmem:[#allocation3 + $0x30] sm:$0xff] %v2293
        %2302 = vst [vmem:[#allocation3 + $0x38] sm:$0xff] %v2294
        %v2303 = vld [vmem:[%s2116] sm:$0x1f]
        %v2304 = vld [vmem:[%s2116 + $0x8] sm:$0x1f]
        %v2305 = vld [vmem:[%s2116 + $0x10] sm:$0x1f]
        %v2306 = vld [vmem:[%s2116 + $0x18] sm:$0x1f]
        %v2307 = vld [vmem:[%s2116 + $0x20] sm:$0x1f]
        %v2308 = vld [vmem:[%s2116 + $0x28] sm:$0x1f]
        %v2309 = vld [vmem:[%s2116 + $0x30] sm:$0x1f]
        %v2310 = vld [vmem:[%s2116 + $0x38] sm:$0x1f]
        %v2319 = vunpack.c.l.b16 %v2303
        %v2320 = vunpack.c.h.b16 %v2303
        %v2321 = vunpack.c.l.b16 %v2304
        %v2322 = vunpack.c.h.b16 %v2304
        %v2323 = vunpack.c.l.b16 %v2305
        %v2324 = vunpack.c.h.b16 %v2305
        %v2325 = vunpack.c.l.b16 %v2306
        %v2326 = vunpack.c.h.b16 %v2306
        %v2327 = vunpack.c.l.b16 %v2307
        %v2328 = vunpack.c.h.b16 %v2307
        %v2329 = vunpack.c.l.b16 %v2308
        %v2330 = vunpack.c.h.b16 %v2308
        %v2331 = vunpack.c.l.b16 %v2309
        %v2332 = vunpack.c.h.b16 %v2309
        %v2333 = vunpack.c.l.b16 %v2310
        %v2334 = vunpack.c.h.b16 %v2310
        %v2335 = vpack.c.b16 %v2319, %v2319
        %v2336 = vpack.c.b16 %v2320, %v2320
        %v2337 = vpack.c.b16 %v2321, %v2321
        %v2338 = vpack.c.b16 %v2322, %v2322
        %v2339 = vpack.c.b16 %v2323, %v2323
        %v2340 = vpack.c.b16 %v2324, %v2324
        %v2341 = vpack.c.b16 %v2325, %v2325
        %v2342 = vpack.c.b16 %v2326, %v2326
        %v2343 = vpack.c.b16 %v2327, %v2327
        %v2344 = vpack.c.b16 %v2328, %v2328
        %v2345 = vpack.c.b16 %v2329, %v2329
        %v2346 = vpack.c.b16 %v2330, %v2330
        %v2347 = vpack.c.b16 %v2331, %v2331
        %v2348 = vpack.c.b16 %v2332, %v2332
        %v2349 = vpack.c.b16 %v2333, %v2333
        %v2350 = vpack.c.b16 %v2334, %v2334
        %v2352 = vshrl.u32 %v2335, 16
        %v2354 = vrot.slane %v2352, 4
        %v2355 = vshll.u32 %v2335, 16
        %v2357 = vrot.slane %v2355, 5
        %v2358 = vor.u32 %v2354, %v2357
        %v2359 = vrot.slane %v2358, 4
        %v2361 = vshll.u32 %v2336, 16
        %v2363 = vrot.slane %v2361, 5
        %v2364 = vsel %vm814, %v2359, %v2363
        %v2366 = vshrl.u32 %v2337, 16
        %v2368 = vrot.slane %v2366, 4
        %v2369 = vshll.u32 %v2337, 16
        %v2371 = vrot.slane %v2369, 5
        %v2372 = vor.u32 %v2368, %v2371
        %v2373 = vrot.slane %v2372, 4
        %v2375 = vshll.u32 %v2338, 16
        %v2377 = vrot.slane %v2375, 5
        %v2378 = vsel %vm814, %v2373, %v2377
        %v2380 = vshrl.u32 %v2339, 16
        %v2382 = vrot.slane %v2380, 4
        %v2383 = vshll.u32 %v2339, 16
        %v2385 = vrot.slane %v2383, 5
        %v2386 = vor.u32 %v2382, %v2385
        %v2387 = vrot.slane %v2386, 4
        %v2389 = vshll.u32 %v2340, 16
        %v2391 = vrot.slane %v2389, 5
        %v2392 = vsel %vm814, %v2387, %v2391
        %v2394 = vshrl.u32 %v2341, 16
        %v2396 = vrot.slane %v2394, 4
        %v2397 = vshll.u32 %v2341, 16
        %v2399 = vrot.slane %v2397, 5
        %v2400 = vor.u32 %v2396, %v2399
        %v2401 = vrot.slane %v2400, 4
        %v2403 = vshll.u32 %v2342, 16
        %v2405 = vrot.slane %v2403, 5
        %v2406 = vsel %vm814, %v2401, %v2405
        %v2408 = vshrl.u32 %v2343, 16
        %v2410 = vrot.slane %v2408, 4
        %v2411 = vshll.u32 %v2343, 16
        %v2413 = vrot.slane %v2411, 5
        %v2414 = vor.u32 %v2410, %v2413
        %v2415 = vrot.slane %v2414, 4
        %v2417 = vshll.u32 %v2344, 16
        %v2419 = vrot.slane %v2417, 5
        %v2420 = vsel %vm814, %v2415, %v2419
        %v2422 = vshrl.u32 %v2345, 16
        %v2424 = vrot.slane %v2422, 4
        %v2425 = vshll.u32 %v2345, 16
        %v2427 = vrot.slane %v2425, 5
        %v2428 = vor.u32 %v2424, %v2427
        %v2429 = vrot.slane %v2428, 4
        %v2431 = vshll.u32 %v2346, 16
        %v2433 = vrot.slane %v2431, 5
        %v2434 = vsel %vm814, %v2429, %v2433
        %v2436 = vshrl.u32 %v2347, 16
        %v2438 = vrot.slane %v2436, 4
        %v2439 = vshll.u32 %v2347, 16
        %v2441 = vrot.slane %v2439, 5
        %v2442 = vor.u32 %v2438, %v2441
        %v2443 = vrot.slane %v2442, 4
        %v2445 = vshll.u32 %v2348, 16
        %v2447 = vrot.slane %v2445, 5
        %v2448 = vsel %vm814, %v2443, %v2447
        %v2450 = vshrl.u32 %v2349, 16
        %v2452 = vrot.slane %v2450, 4
        %v2453 = vshll.u32 %v2349, 16
        %v2455 = vrot.slane %v2453, 5
        %v2456 = vor.u32 %v2452, %v2455
        %v2457 = vrot.slane %v2456, 4
        %v2459 = vshll.u32 %v2350, 16
        %v2461 = vrot.slane %v2459, 5
        %v2462 = vsel %vm814, %v2457, %v2461
        %s2463 = scalar_lea.vmem [#allocation4], 448
        %v2464 = vld [vmem:[%s2463] sm:$0xf]
        %v2465 = vld [vmem:[%s2463 + $0x4] sm:$0xf]
        %v2466 = vld [vmem:[%s2463 + $0x8] sm:$0xf]
        %v2467 = vld [vmem:[%s2463 + $0xc] sm:$0xf]
        %v2468 = vld [vmem:[%s2463 + $0x10] sm:$0xf]
        %v2469 = vld [vmem:[%s2463 + $0x14] sm:$0xf]
        %v2470 = vld [vmem:[%s2463 + $0x18] sm:$0xf]
        %v2471 = vld [vmem:[%s2463 + $0x1c] sm:$0xf]
        %v2472 = vld [vmem:[%s2463 + $0x20] sm:$0xf]
        %v2473 = vld [vmem:[%s2463 + $0x24] sm:$0xf]
        %v2474 = vld [vmem:[%s2463 + $0x28] sm:$0xf]
        %v2475 = vld [vmem:[%s2463 + $0x2c] sm:$0xf]
        %v2476 = vld [vmem:[%s2463 + $0x30] sm:$0xf]
        %v2477 = vld [vmem:[%s2463 + $0x34] sm:$0xf]
        %v2478 = vld [vmem:[%s2463 + $0x38] sm:$0xf]
        %v2479 = vld [vmem:[%s2463 + $0x3c] sm:$0xf]
        %v2480 = vunpack.c.l.b16 %v2364
        %v2481 = vunpack.c.l.b16 %v2378
        %v2482 = vunpack.c.l.b16 %v2392
        %v2483 = vunpack.c.l.b16 %v2406
        %v2484 = vunpack.c.l.b16 %v2420
        %v2485 = vunpack.c.l.b16 %v2434
        %v2486 = vunpack.c.l.b16 %v2448
        %v2487 = vunpack.c.l.b16 %v2462
        %v2488 = vpack.c.b16 %v2481, %v2480
        %v2489 = vpack.c.b16 %v2483, %v2482
        %v2490 = vpack.c.b16 %v2485, %v2484
        %v2491 = vpack.c.b16 %v2487, %v2486
        %v2512 = vunpack.c.l.b16 %v2464
        %v2513 = vunpack.c.l.b16 %v2465
        %v2514 = vunpack.c.l.b16 %v2466
        %v2515 = vunpack.c.l.b16 %v2467
        %v2516 = vunpack.c.l.b16 %v2468
        %v2517 = vunpack.c.l.b16 %v2469
        %v2518 = vunpack.c.l.b16 %v2470
        %v2519 = vunpack.c.l.b16 %v2471
        %v2520 = vunpack.c.l.b16 %v2472
        %v2521 = vunpack.c.l.b16 %v2473
        %v2522 = vunpack.c.l.b16 %v2474
        %v2523 = vunpack.c.l.b16 %v2475
        %v2524 = vunpack.c.l.b16 %v2476
        %v2525 = vunpack.c.l.b16 %v2477
        %v2526 = vunpack.c.l.b16 %v2478
        %v2527 = vunpack.c.l.b16 %v2479
        %v2528 = vpack.c.b16 %v2513, %v2512
        %v2529 = vpack.c.b16 %v2515, %v2514
        %v2530 = vpack.c.b16 %v2517, %v2516
        %v2531 = vpack.c.b16 %v2519, %v2518
        %v2532 = vpack.c.b16 %v2521, %v2520
        %v2533 = vpack.c.b16 %v2523, %v2522
        %v2534 = vpack.c.b16 %v2525, %v2524
        %v2535 = vpack.c.b16 %v2527, %v2526
        %2544 = vmatprep.subr.bf16.mxu0 0
        %2545 = vmatpush1.bf16.msra.mxu0 %v2528
        %2546 = vmatprep.subr.bf16.mxu0 0
        %2547 = vmatpush1.bf16.msra.mxu0 %v2529
        %2548 = vmatprep.subr.bf16.mxu0 0
        %2549 = vmatpush1.bf16.msra.mxu0 %v2530
        %2550 = vmatprep.subr.bf16.mxu0 0
        %2551 = vmatpush1.bf16.msra.mxu0 %v2531
        %2552 = vmatprep.subr.bf16.mxu0 0
        %2553 = vmatpush1.bf16.msra.mxu0 %v2532
        %2554 = vmatprep.subr.bf16.mxu0 0
        %2555 = vmatpush1.bf16.msra.mxu0 %v2533
        %2556 = vmatprep.subr.bf16.mxu0 0
        %2557 = vmatpush1.bf16.msra.mxu0 %v2534
        %2558 = vmatprep.subr.bf16.mxu0 0
        %2559 = vmatpush1.bf16.msra.mxu0 %v2535
        %2560 = vmatprep.subr.bf16.mxu0 0
        %2561 = vmatpush1.bf16.msra.mxu0 0
        %2562 = vmatprep.subr.bf16.mxu0 0
        %2563 = vmatpush1.bf16.msra.mxu0 0
        %2564 = vmatprep.subr.bf16.mxu0 0
        %2565 = vmatpush1.bf16.msra.mxu0 0
        %2566 = vmatprep.subr.bf16.mxu0 0
        %2567 = vmatpush1.bf16.msra.mxu0 0
        %2568 = vmatprep.subr.bf16.mxu0 0
        %2569 = vmatpush1.bf16.msra.mxu0 0
        %2570 = vmatprep.subr.bf16.mxu0 0
        %2571 = vmatpush1.bf16.msra.mxu0 0
        %2572 = vmatprep.subr.bf16.mxu0 0
        %2573 = vmatpush1.bf16.msra.mxu0 0
        %2574 = vmatprep.subr.bf16.mxu0 0
        %2575 = vmatpush1.bf16.msra.mxu0 0
        %2576 = vmatprep.mubr.bf16.mxu0 0
        %2577 = vmatmul.mubr.bf16.gmra.mrb[0].mxu0 %v2488
        %v2578 = vpop.f32.mrb[0].mxu0
        %v2579 = vadd.f32 0.0, %v2578
        %v2580 = vpop.f32.mrb[0].mxu0
        %v2581 = vpop.f32.mrb[0].mxu0
        %v2582 = vadd.f32 0.0, %v2581
        %v2583 = vpop.f32.mrb[0].mxu0
        %2584 = vmatprep.mubr.bf16.mxu0 0
        %2585 = vmatmul.mubr.bf16.gmra.mrb[0].mxu0 %v2489
        %v2586 = vpop.f32.mrb[0].mxu0
        %v2587 = vadd.f32 0.0, %v2586
        %v2588 = vpop.f32.mrb[0].mxu0
        %v2589 = vpop.f32.mrb[0].mxu0
        %v2590 = vadd.f32 0.0, %v2589
        %v2591 = vpop.f32.mrb[0].mxu0
        %2592 = vmatprep.mubr.bf16.mxu0 0
        %2593 = vmatmul.mubr.bf16.gmra.mrb[0].mxu0 %v2490
        %v2594 = vpop.f32.mrb[0].mxu0
        %v2595 = vadd.f32 0.0, %v2594
        %v2596 = vpop.f32.mrb[0].mxu0
        %v2597 = vpop.f32.mrb[0].mxu0
        %v2598 = vadd.f32 0.0, %v2597
        %v2599 = vpop.f32.mrb[0].mxu0
        %2600 = vmatprep.mubr.bf16.mxu0 0
        %2601 = vmatmul.mubr.bf16.gmra.mrb[0].mxu0 %v2491
        %v2602 = vpop.f32.mrb[0].mxu0
        %v2603 = vadd.f32 0.0, %v2602
        %v2604 = vpop.f32.mrb[0].mxu0
        %v2605 = vpop.f32.mrb[0].mxu0
        %v2606 = vadd.f32 0.0, %v2605
        %v2607 = vpop.f32.mrb[0].mxu0
        %2608 = vdwg.mxu0
        %v2609 = vld [vmem:[#allocation3] sm:$0xff]
        %v2610 = vld [vmem:[#allocation3 + $0x8] sm:$0xff]
        %v2611 = vld [vmem:[#allocation3 + $0x10] sm:$0xff]
        %v2612 = vld [vmem:[#allocation3 + $0x18] sm:$0xff]
        %v2613 = vld [vmem:[#allocation3 + $0x20] sm:$0xff]
        %v2614 = vld [vmem:[#allocation3 + $0x28] sm:$0xff]
        %v2615 = vld [vmem:[#allocation3 + $0x30] sm:$0xff]
        %v2616 = vld [vmem:[#allocation3 + $0x38] sm:$0xff]
        %v2617 = vadd.f32 %v2609, %v2579
        %v2618 = vadd.f32 %v2610, %v2582
        %v2619 = vadd.f32 %v2611, %v2587
        %v2620 = vadd.f32 %v2612, %v2590
        %v2621 = vadd.f32 %v2613, %v2595
        %v2622 = vadd.f32 %v2614, %v2598
        %v2623 = vadd.f32 %v2615, %v2603
        %v2624 = vadd.f32 %v2616, %v2606
        %2625 = vst [vmem:[#allocation3] sm:$0xff] %v2617
        %2626 = vst [vmem:[#allocation3 + $0x8] sm:$0xff] %v2618
        %2627 = vst [vmem:[#allocation3 + $0x10] sm:$0xff] %v2619
        %2628 = vst [vmem:[#allocation3 + $0x18] sm:$0xff] %v2620
        %2629 = vst [vmem:[#allocation3 + $0x20] sm:$0xff] %v2621
        %2630 = vst [vmem:[#allocation3 + $0x28] sm:$0xff] %v2622
        %2631 = vst [vmem:[#allocation3 + $0x30] sm:$0xff] %v2623
        %2632 = vst [vmem:[#allocation3 + $0x38] sm:$0xff] %v2624
        %v2633 = vld [vmem:[%s2116] sm:$0x1e]
        %v2634 = vld [vmem:[%s2116 + $0x8] sm:$0x1e]
        %v2635 = vld [vmem:[%s2116 + $0x10] sm:$0x1e]
        %v2636 = vld [vmem:[%s2116 + $0x18] sm:$0x1e]
        %v2637 = vld [vmem:[%s2116 + $0x20] sm:$0x1e]
        %v2638 = vld [vmem:[%s2116 + $0x28] sm:$0x1e]
        %v2639 = vld [vmem:[%s2116 + $0x30] sm:$0x1e]
        %v2640 = vld [vmem:[%s2116 + $0x38] sm:$0x1e]
        %v2649 = vunpack.c.l.b16 %v2633
        %v2650 = vunpack.c.h.b16 %v2633
        %v2651 = vunpack.c.l.b16 %v2634
        %v2652 = vunpack.c.h.b16 %v2634
        %v2653 = vunpack.c.l.b16 %v2635
        %v2654 = vunpack.c.h.b16 %v2635
        %v2655 = vunpack.c.l.b16 %v2636
        %v2656 = vunpack.c.h.b16 %v2636
        %v2657 = vunpack.c.l.b16 %v2637
        %v2658 = vunpack.c.h.b16 %v2637
        %v2659 = vunpack.c.l.b16 %v2638
        %v2660 = vunpack.c.h.b16 %v2638
        %v2661 = vunpack.c.l.b16 %v2639
        %v2662 = vunpack.c.h.b16 %v2639
        %v2663 = vunpack.c.l.b16 %v2640
        %v2664 = vunpack.c.h.b16 %v2640
        %v2665 = vpack.c.b16 %v2649, %v2649
        %v2666 = vpack.c.b16 %v2650, %v2650
        %v2667 = vpack.c.b16 %v2651, %v2651
        %v2668 = vpack.c.b16 %v2652, %v2652
        %v2669 = vpack.c.b16 %v2653, %v2653
        %v2670 = vpack.c.b16 %v2654, %v2654
        %v2671 = vpack.c.b16 %v2655, %v2655
        %v2672 = vpack.c.b16 %v2656, %v2656
        %v2673 = vpack.c.b16 %v2657, %v2657
        %v2674 = vpack.c.b16 %v2658, %v2658
        %v2675 = vpack.c.b16 %v2659, %v2659
        %v2676 = vpack.c.b16 %v2660, %v2660
        %v2677 = vpack.c.b16 %v2661, %v2661
        %v2678 = vpack.c.b16 %v2662, %v2662
        %v2679 = vpack.c.b16 %v2663, %v2663
        %v2680 = vpack.c.b16 %v2664, %v2664
        %v2681 = vrot.slane %v2665, 5
        %v2682 = vrot.slane %v2681, 4
        %v2683 = vrot.slane %v2666, 5
        %v2684 = vsel %vm1147, %v2682, %v2683
        %v2685 = vrot.slane %v2667, 5
        %v2686 = vrot.slane %v2685, 4
        %v2687 = vrot.slane %v2668, 5
        %v2688 = vsel %vm1147, %v2686, %v2687
        %v2689 = vrot.slane %v2669, 5
        %v2690 = vrot.slane %v2689, 4
        %v2691 = vrot.slane %v2670, 5
        %v2692 = vsel %vm1147, %v2690, %v2691
        %v2693 = vrot.slane %v2671, 5
        %v2694 = vrot.slane %v2693, 4
        %v2695 = vrot.slane %v2672, 5
        %v2696 = vsel %vm1147, %v2694, %v2695
        %v2697 = vrot.slane %v2673, 5
        %v2698 = vrot.slane %v2697, 4
        %v2699 = vrot.slane %v2674, 5
        %v2700 = vsel %vm1147, %v2698, %v2699
        %v2701 = vrot.slane %v2675, 5
        %v2702 = vrot.slane %v2701, 4
        %v2703 = vrot.slane %v2676, 5
        %v2704 = vsel %vm1147, %v2702, %v2703
        %v2705 = vrot.slane %v2677, 5
        %v2706 = vrot.slane %v2705, 4
        %v2707 = vrot.slane %v2678, 5
        %v2708 = vsel %vm1147, %v2706, %v2707
        %v2709 = vrot.slane %v2679, 5
        %v2710 = vrot.slane %v2709, 4
        %v2711 = vrot.slane %v2680, 5
        %v2712 = vsel %vm1147, %v2710, %v2711
        %s2713 = scalar_lea.vmem [#allocation4], 512
        %v2714 = vld [vmem:[%s2713] sm:$0xf]
        %v2715 = vld [vmem:[%s2713 + $0x4] sm:$0xf]
        %v2716 = vld [vmem:[%s2713 + $0x8] sm:$0xf]
        %v2717 = vld [vmem:[%s2713 + $0xc] sm:$0xf]
        %v2718 = vld [vmem:[%s2713 + $0x10] sm:$0xf]
        %v2719 = vld [vmem:[%s2713 + $0x14] sm:$0xf]
        %v2720 = vld [vmem:[%s2713 + $0x18] sm:$0xf]
        %v2721 = vld [vmem:[%s2713 + $0x1c] sm:$0xf]
        %v2722 = vld [vmem:[%s2713 + $0x20] sm:$0xf]
        %v2723 = vld [vmem:[%s2713 + $0x24] sm:$0xf]
        %v2724 = vld [vmem:[%s2713 + $0x28] sm:$0xf]
        %v2725 = vld [vmem:[%s2713 + $0x2c] sm:$0xf]
        %v2726 = vld [vmem:[%s2713 + $0x30] sm:$0xf]
        %v2727 = vld [vmem:[%s2713 + $0x34] sm:$0xf]
        %v2728 = vld [vmem:[%s2713 + $0x38] sm:$0xf]
        %v2729 = vld [vmem:[%s2713 + $0x3c] sm:$0xf]
        %v2730 = vunpack.c.l.b16 %v2684
        %v2731 = vunpack.c.l.b16 %v2688
        %v2732 = vunpack.c.l.b16 %v2692
        %v2733 = vunpack.c.l.b16 %v2696
        %v2734 = vunpack.c.l.b16 %v2700
        %v2735 = vunpack.c.l.b16 %v2704
        %v2736 = vunpack.c.l.b16 %v2708
        %v2737 = vunpack.c.l.b16 %v2712
        %v2738 = vpack.c.b16 %v2731, %v2730
        %v2739 = vpack.c.b16 %v2733, %v2732
        %v2740 = vpack.c.b16 %v2735, %v2734
        %v2741 = vpack.c.b16 %v2737, %v2736
        %v2762 = vunpack.c.l.b16 %v2714
        %v2763 = vunpack.c.l.b16 %v2715
        %v2764 = vunpack.c.l.b16 %v2716
        %v2765 = vunpack.c.l.b16 %v2717
        %v2766 = vunpack.c.l.b16 %v2718
        %v2767 = vunpack.c.l.b16 %v2719
        %v2768 = vunpack.c.l.b16 %v2720
        %v2769 = vunpack.c.l.b16 %v2721
        %v2770 = vunpack.c.l.b16 %v2722
        %v2771 = vunpack.c.l.b16 %v2723
        %v2772 = vunpack.c.l.b16 %v2724
        %v2773 = vunpack.c.l.b16 %v2725
        %v2774 = vunpack.c.l.b16 %v2726
        %v2775 = vunpack.c.l.b16 %v2727
        %v2776 = vunpack.c.l.b16 %v2728
        %v2777 = vunpack.c.l.b16 %v2729
        %v2778 = vpack.c.b16 %v2763, %v2762
        %v2779 = vpack.c.b16 %v2765, %v2764
        %v2780 = vpack.c.b16 %v2767, %v2766
        %v2781 = vpack.c.b16 %v2769, %v2768
        %v2782 = vpack.c.b16 %v2771, %v2770
        %v2783 = vpack.c.b16 %v2773, %v2772
        %v2784 = vpack.c.b16 %v2775, %v2774
        %v2785 = vpack.c.b16 %v2777, %v2776
        %2794 = vmatprep.subr.bf16.mxu0 0
        %2795 = vmatpush1.bf16.msra.mxu0 %v2778
        %2796 = vmatprep.subr.bf16.mxu0 0
        %2797 = vmatpush1.bf16.msra.mxu0 %v2779
        %2798 = vmatprep.subr.bf16.mxu0 0
        %2799 = vmatpush1.bf16.msra.mxu0 %v2780
        %2800 = vmatprep.subr.bf16.mxu0 0
        %2801 = vmatpush1.bf16.msra.mxu0 %v2781
        %2802 = vmatprep.subr.bf16.mxu0 0
        %2803 = vmatpush1.bf16.msra.mxu0 %v2782
        %2804 = vmatprep.subr.bf16.mxu0 0
        %2805 = vmatpush1.bf16.msra.mxu0 %v2783
        %2806 = vmatprep.subr.bf16.mxu0 0
        %2807 = vmatpush1.bf16.msra.mxu0 %v2784
        %2808 = vmatprep.subr.bf16.mxu0 0
        %2809 = vmatpush1.bf16.msra.mxu0 %v2785
        %2810 = vmatprep.subr.bf16.mxu0 0
        %2811 = vmatpush1.bf16.msra.mxu0 0
        %2812 = vmatprep.subr.bf16.mxu0 0
        %2813 = vmatpush1.bf16.msra.mxu0 0
        %2814 = vmatprep.subr.bf16.mxu0 0
        %2815 = vmatpush1.bf16.msra.mxu0 0
        %2816 = vmatprep.subr.bf16.mxu0 0
        %2817 = vmatpush1.bf16.msra.mxu0 0
        %2818 = vmatprep.subr.bf16.mxu0 0
        %2819 = vmatpush1.bf16.msra.mxu0 0
        %2820 = vmatprep.subr.bf16.mxu0 0
        %2821 = vmatpush1.bf16.msra.mxu0 0
        %2822 = vmatprep.subr.bf16.mxu0 0
        %2823 = vmatpush1.bf16.msra.mxu0 0
        %2824 = vmatprep.subr.bf16.mxu0 0
        %2825 = vmatpush1.bf16.msra.mxu0 0
        %2826 = vmatprep.mubr.bf16.mxu0 0
        %2827 = vmatmul.mubr.bf16.gmra.mrb[0].mxu0 %v2738
        %v2828 = vpop.f32.mrb[0].mxu0
        %v2829 = vadd.f32 0.0, %v2828
        %v2830 = vpop.f32.mrb[0].mxu0
        %v2831 = vpop.f32.mrb[0].mxu0
        %v2832 = vadd.f32 0.0, %v2831
        %v2833 = vpop.f32.mrb[0].mxu0
        %2834 = vmatprep.mubr.bf16.mxu0 0
        %2835 = vmatmul.mubr.bf16.gmra.mrb[0].mxu0 %v2739
        %v2836 = vpop.f32.mrb[0].mxu0
        %v2837 = vadd.f32 0.0, %v2836
        %v2838 = vpop.f32.mrb[0].mxu0
        %v2839 = vpop.f32.mrb[0].mxu0
        %v2840 = vadd.f32 0.0, %v2839
        %v2841 = vpop.f32.mrb[0].mxu0
        %2842 = vmatprep.mubr.bf16.mxu0 0
        %2843 = vmatmul.mubr.bf16.gmra.mrb[0].mxu0 %v2740
        %v2844 = vpop.f32.mrb[0].mxu0
        %v2845 = vadd.f32 0.0, %v2844
        %v2846 = vpop.f32.mrb[0].mxu0
        %v2847 = vpop.f32.mrb[0].mxu0
        %v2848 = vadd.f32 0.0, %v2847
        %v2849 = vpop.f32.mrb[0].mxu0
        %2850 = vmatprep.mubr.bf16.mxu0 0
        %2851 = vmatmul.mubr.bf16.gmra.mrb[0].mxu0 %v2741
        %v2852 = vpop.f32.mrb[0].mxu0
        %v2853 = vadd.f32 0.0, %v2852
        %v2854 = vpop.f32.mrb[0].mxu0
        %v2855 = vpop.f32.mrb[0].mxu0
        %v2856 = vadd.f32 0.0, %v2855
        %v2857 = vpop.f32.mrb[0].mxu0
        %2858 = vdwg.mxu0
        %v2859 = vld [vmem:[#allocation3] sm:$0xff]
        %v2860 = vld [vmem:[#allocation3 + $0x8] sm:$0xff]
        %v2861 = vld [vmem:[#allocation3 + $0x10] sm:$0xff]
        %v2862 = vld [vmem:[#allocation3 + $0x18] sm:$0xff]
        %v2863 = vld [vmem:[#allocation3 + $0x20] sm:$0xff]
        %v2864 = vld [vmem:[#allocation3 + $0x28] sm:$0xff]
        %v2865 = vld [vmem:[#allocation3 + $0x30] sm:$0xff]
        %v2866 = vld [vmem:[#allocation3 + $0x38] sm:$0xff]
        %v2867 = vadd.f32 %v2859, %v2829
        %v2868 = vadd.f32 %v2860, %v2832
        %v2869 = vadd.f32 %v2861, %v2837
        %v2870 = vadd.f32 %v2862, %v2840
        %v2871 = vadd.f32 %v2863, %v2845
        %v2872 = vadd.f32 %v2864, %v2848
        %v2873 = vadd.f32 %v2865, %v2853
        %v2874 = vadd.f32 %v2866, %v2856
        %2875 = vst [vmem:[#allocation3] sm:$0xff] %v2867
        %2876 = vst [vmem:[#allocation3 + $0x8] sm:$0xff] %v2868
        %2877 = vst [vmem:[#allocation3 + $0x10] sm:$0xff] %v2869
        %2878 = vst [vmem:[#allocation3 + $0x18] sm:$0xff] %v2870
        %2879 = vst [vmem:[#allocation3 + $0x20] sm:$0xff] %v2871
        %2880 = vst [vmem:[#allocation3 + $0x28] sm:$0xff] %v2872
        %2881 = vst [vmem:[#allocation3 + $0x30] sm:$0xff] %v2873
        %2882 = vst [vmem:[#allocation3 + $0x38] sm:$0xff] %v2874
        %v2883 = vld [vmem:[#allocation3] sm:$0xff]
        %v2884 = vld [vmem:[#allocation3 + $0x8] sm:$0xff]
        %v2885 = vld [vmem:[#allocation3 + $0x10] sm:$0xff]
        %v2886 = vld [vmem:[#allocation3 + $0x18] sm:$0xff]
        %v2887 = vld [vmem:[#allocation3 + $0x20] sm:$0xff]
        %v2888 = vld [vmem:[#allocation3 + $0x28] sm:$0xff]
        %v2889 = vld [vmem:[#allocation3 + $0x30] sm:$0xff]
        %v2890 = vld [vmem:[#allocation3 + $0x38] sm:$0xff]
        %v2891 = vld [vmem:[%s4] sm:$0x1]
        %v2893 = vlaneseq
        %v2894 = vshrl.u32 %v2893, 7
        %v2895 = vsub.s32 0, %v2894
        %v2896 = vrot.slane %v2891, %v2895
        %v2898 = vadd.f32 %v2883, %v2896
        %v2899 = vadd.f32 %v2884, %v2896
        %v2900 = vadd.f32 %v2885, %v2896
        %v2901 = vadd.f32 %v2886, %v2896
        %v2902 = vadd.f32 %v2887, %v2896
        %v2903 = vadd.f32 %v2888, %v2896
        %v2904 = vadd.f32 %v2889, %v2896
        %v2905 = vadd.f32 %v2890, %v2896
        %v2906 = vld [vmem:[%s5] sm:$0x3]
        %v2907 = vld [vmem:[%s6] sm:$0x1]
        %v2909 = vlaneseq
        %v2910 = vshrl.u32 %v2909, 7
        %v2911 = vsub.s32 0, %v2910
        %v2912 = vrot.slane %v2907, %v2911
        %2914 = vrot.lane.b32.xlu0 %v329, 112
        %v2915 = vpop.permute.xlu0 %2914
        %2916 = vrot.lane.b32.xlu0 %v330, 112
        %v2917 = vpop.permute.xlu0 %2916
        %2918 = vrot.lane.b32.xlu0 %v331, 112
        %v2919 = vpop.permute.xlu0 %2918
        %2920 = vrot.lane.b32.xlu0 %v332, 112
        %v2921 = vpop.permute.xlu0 %2920
        %vm2922 = vcmask 31744
        %v2924 = vsel %vm2922, %v2915, 0
        %v2927 = vsel %vm2922, %v2917, 0
        %v2930 = vsel %vm2922, %v2919, 0
        %v2933 = vsel %vm2922, %v2921, 0
        %v2936 = vsel %vm361, %v2906, 0
        %2938 = vmatprep.subr.bf16.mxu0 0
        %2939 = vmatpush1.bf16.msra.mxu0 %v2936
        %2940 = vmatprep.subr.bf16.mxu0 0
        %2941 = vmatpush1.bf16.msra.mxu0 0
        %2942 = vmatprep.subr.bf16.mxu0 0
        %2943 = vmatpush1.bf16.msra.mxu0 0
        %2944 = vmatprep.subr.bf16.mxu0 0
        %2945 = vmatpush1.bf16.msra.mxu0 0
        %2946 = vmatprep.subr.bf16.mxu0 0
        %2947 = vmatpush1.bf16.msra.mxu0 0
        %2948 = vmatprep.subr.bf16.mxu0 0
        %2949 = vmatpush1.bf16.msra.mxu0 0
        %2950 = vmatprep.subr.bf16.mxu0 0
        %2951 = vmatpush1.bf16.msra.mxu0 0
        %2952 = vmatprep.subr.bf16.mxu0 0
        %2953 = vmatpush1.bf16.msra.mxu0 0
        %2954 = vmatprep.subr.bf16.mxu0 0
        %2955 = vmatpush1.bf16.msra.mxu0 0
        %2956 = vmatprep.subr.bf16.mxu0 0
        %2957 = vmatpush1.bf16.msra.mxu0 0
        %2958 = vmatprep.subr.bf16.mxu0 0
        %2959 = vmatpush1.bf16.msra.mxu0 0
        %2960 = vmatprep.subr.bf16.mxu0 0
        %2961 = vmatpush1.bf16.msra.mxu0 0
        %2962 = vmatprep.subr.bf16.mxu0 0
        %2963 = vmatpush1.bf16.msra.mxu0 0
        %2964 = vmatprep.subr.bf16.mxu0 0
        %2965 = vmatpush1.bf16.msra.mxu0 0
        %2966 = vmatprep.subr.bf16.mxu0 0
        %2967 = vmatpush1.bf16.msra.mxu0 0
        %2968 = vmatprep.subr.bf16.mxu0 0
        %2969 = vmatpush1.bf16.msra.mxu0 0
        %2970 = vmatprep.mubr.bf16.mxu0 0
        %2971 = vmatmul.mubr.bf16.gmra.mrb[0].mxu0 %v2924
        %v2972 = vpop.f32.mrb[0].mxu0
        %v2973 = vadd.f32 %v2912, %v2972
        %v2974 = vpop.f32.mrb[0].mxu0
        %v2975 = vpop.f32.mrb[0].mxu0
        %v2976 = vadd.f32 %v2912, %v2975
        %v2977 = vpop.f32.mrb[0].mxu0
        %2978 = vmatprep.mubr.bf16.mxu0 0
        %2979 = vmatmul.mubr.bf16.gmra.mrb[0].mxu0 %v2927
        %v2980 = vpop.f32.mrb[0].mxu0
        %v2981 = vadd.f32 %v2912, %v2980
        %v2982 = vpop.f32.mrb[0].mxu0
        %v2983 = vpop.f32.mrb[0].mxu0
        %v2984 = vadd.f32 %v2912, %v2983
        %v2985 = vpop.f32.mrb[0].mxu0
        %2986 = vmatprep.mubr.bf16.mxu0 0
        %2987 = vmatmul.mubr.bf16.gmra.mrb[0].mxu0 %v2930
        %v2988 = vpop.f32.mrb[0].mxu0
        %v2989 = vadd.f32 %v2912, %v2988
        %v2990 = vpop.f32.mrb[0].mxu0
        %v2991 = vpop.f32.mrb[0].mxu0
        %v2992 = vadd.f32 %v2912, %v2991
        %v2993 = vpop.f32.mrb[0].mxu0
        %2994 = vmatprep.mubr.bf16.mxu0 0
        %2995 = vmatmul.mubr.bf16.gmra.mrb[0].mxu0 %v2933
        %v2996 = vpop.f32.mrb[0].mxu0
        %v2997 = vadd.f32 %v2912, %v2996
        %v2998 = vpop.f32.mrb[0].mxu0
        %v2999 = vpop.f32.mrb[0].mxu0
        %v3000 = vadd.f32 %v2912, %v2999
        %v3001 = vpop.f32.mrb[0].mxu0
        %3002 = vdwg.mxu0
        %v3003 = vadd.f32 %v2898, %v2973
        %v3004 = vadd.f32 %v2899, %v2976
        %v3005 = vadd.f32 %v2900, %v2981
        %v3006 = vadd.f32 %v2901, %v2984
        %v3007 = vadd.f32 %v2902, %v2989
        %v3008 = vadd.f32 %v2903, %v2992
        %v3009 = vadd.f32 %v2904, %v2997
        %v3010 = vadd.f32 %v2905, %v3000
        %v3011 = vmax.f32 %v3003, 0.0
        %v3012 = vmax.f32 %v3004, 0.0
        %v3013 = vmax.f32 %v3005, 0.0
        %v3014 = vmax.f32 %v3006, 0.0
        %v3015 = vmax.f32 %v3007, 0.0
        %v3016 = vmax.f32 %v3008, 0.0
        %v3017 = vmax.f32 %v3009, 0.0
        %v3018 = vmax.f32 %v3010, 0.0
        %vm3019 = vcmask 64512
        %3020 = vst.msk [vmem:[%s286] sm:$0xff] %vm3019, %v3011
        %3021 = vst.msk [vmem:[%s286 + $0x8] sm:$0xff] %vm3019, %v3012
        %3022 = vst.msk [vmem:[%s286 + $0x10] sm:$0xff] %vm3019, %v3013
        %3023 = vst.msk [vmem:[%s286 + $0x18] sm:$0xff] %vm3019, %v3014
        %3024 = vst.msk [vmem:[%s286 + $0x20] sm:$0xff] %vm3019, %v3015
        %3025 = vst.msk [vmem:[%s286 + $0x28] sm:$0xff] %vm3019, %v3016
        %3026 = vst.msk [vmem:[%s286 + $0x30] sm:$0xff] %vm3019, %v3017
        %3027 = vst.msk [vmem:[%s286 + $0x38] sm:$0xff] %vm3019, %v3018
        %s3028 = sand.u32 %s182, 1
        %s3029 = scalar_lea.sflag [#allocation6], %s3028
        %s3030 = sand.u32 %s182, 1
        %s3031 = smul.addr %s3030, 64
        %s3032 = scalar_lea.vmem [#allocation7], %s3031
        // Predicated region
        $region53: #{tpu_custom_call.1} parent=47 // pred_check
          %p3033 = pneg %p192
        $region54: #{tpu_custom_call.1} parent=47 // pred_check_branch
          %3035 = sbr.rel (%p3033) target = $region56
        $region55: #{tpu_custom_call.1} parent=47 // pred_region
          %s3037 = ssub.s32 1024, 1024
          %3038 = vsyncadd %s3029, %s3037
          %s3039 = smul.addr %s22, 8
          %s3040 = smul.addr %s3039, 128
          %s3041 = scalar_lea.hbm %s7, %s3040
          %s3042 = sshll.u32 %s3032, 4
          %s3043 = int_to_ptr.vmem [resolvable:$true] %s3042
          %3048 = dma.vmem_to_hbm [thread:$0]  %s3043, 1024, %s3041, %s3029, 128, 128, 8
        $region56: #{tpu_custom_call.1} parent=47 // pred_fallthru
          _
      $region48: #{tpu_custom_call.1} parent=5 // pred_fallthru
        _
      %p3049 = scmp.le.s32.totalorder 2, %s17
      // Predicated region
      $region57: #{tpu_custom_call.1} parent=5 // pred_check
        %p3050 = pneg %p3049
      $region58: #{tpu_custom_call.1} parent=5 // pred_check_branch
        %3052 = sbr.rel (%p3050) target = $region60
      $region59: #{tpu_custom_call.1} parent=5 // pred_region
        %s3053 = ssub.s32 %s17, 2
        // Predicated region
        $region61: #{tpu_custom_call.1} parent=59 // pred_check
          %p3054 = pneg %p198
        $region62: #{tpu_custom_call.1} parent=59 // pred_check_branch
          %3056 = sbr.rel (%p3054) target = $region64
        $region63: #{tpu_custom_call.1} parent=59 // pred_region
          %s3057 = sand.u32 %s183, 1
          %s3058 = scalar_lea.sflag [#allocation6], %s3057
          %s3059 = sand.u32 %s183, 1
          %s3060 = smul.addr %s3059, 64
          %s3061 = scalar_lea.vmem [#allocation7], %s3060
          %3062 = dma.done %s3058, 1024
        $region64: #{tpu_custom_call.1} parent=59 // pred_fallthru
          _
      $region60: #{tpu_custom_call.1} parent=5 // pred_fallthru
        _
    $region6: #{tpu_custom_call.1} parent=1 // loop_footer
      %s21 = sadd.s32 1, %s17
    $region7: #{tpu_custom_call.1} parent=1 // loop_footer_branch
      %16 = sbr.rel target = $region3
    $region8: #{tpu_custom_call.1} parent=1 // loop_exit
      _
    %3063 = vsyncpa [#allocation5], 1
    %s3064 = scalar_lea.sflag [#allocation5], 1
    %3065 = vsyncpa %s3064, 1
    %3066 = vsyncpa [#allocation6], 1
    %s3067 = scalar_lea.sflag [#allocation6], 1
    %3068 = vsyncpa %s3067, 1

</llo_original>
